<compile_context>
chip_gen: v7x
topology: tpu7x:2x2x1
jax: 0.10.0
libtpu: 0.0.40
codegen_flags: <defaults>
</compile_context>

<pallas_src>
import jax
import jax.numpy as jnp
from jax import lax
from jax.experimental import pallas as pl
from jax.experimental.pallas import tpu as pltpu


# ----------------------------------------------------------------------------
# Kernel 1: fused input projection for all timesteps and both directions.
# ----------------------------------------------------------------------------
def _input_proj_kernel(x_ref, w_ref, b_ref, gx_ref):
    """x_ref : (T*B, D)       bf16  layer input, time-major rows (t*B + b)
       w_ref : (D, nd*4H)     bf16  [W_ih_fwd^T | W_ih_rev^T]
       b_ref : (1, nd*4H)     f32   [b_fwd | b_rev]   (b_ih + b_hh)
       gx_ref: (T*B, nd*4H)   bf16  gate pre-activations (bias folded in)."""
    gx = jnp.dot(x_ref[...], w_ref[...], preferred_element_type=jnp.float32)
    gx_ref[...] = (gx + b_ref[...]).astype(gx_ref.dtype)


# ----------------------------------------------------------------------------
# Kernel 2: serial recurrence.  grid = (num_directions,), each step handles
# one direction with a statically-specialized forward or reverse loop.
# ----------------------------------------------------------------------------
def _lstm_recurrence_kernel(gx_ref, whh_ref, out_ref, hT_ref):
    """gx_ref : (T, B, 4H)  bf16  this direction's precomputed input gates
       whh_ref: (H, 4H)     bf16  W_hh^T for this direction
       out_ref: (T, B, H)         per-step hidden states for this direction
       hT_ref : (B, H)      f32   final hidden state for this direction."""
    T, B, H = out_ref.shape
    whh = whh_ref[...]                      # hoisted: loaded once, reused T times

    def make_step(reverse):
        def step(t, carry):
            h, c = carry
            t_idx = (T - 1 - t) if reverse else t          # affine, no select
            gates = gx_ref[t_idx].astype(jnp.float32) + jnp.dot(
                h.astype(jnp.bfloat16), whh, preferred_element_type=jnp.float32)
            # 2 full-width (B, 4H) EUP passes instead of 5 sub-lane-slice ones.
            sig = jax.nn.sigmoid(gates)
            th = jnp.tanh(gates)
            # NOTE: H=32 gate slices are sub-lane-tile views; for production
            # make H a multiple of 128 (or align i/f/g/o with pltpu.roll).
            i_g = sig[:, 0 * H:1 * H]
            f_g = sig[:, 1 * H:2 * H]
            g_g = th[:, 2 * H:3 * H]
            o_g = sig[:, 3 * H:4 * H]
            c_new = f_g * c + i_g * g_g
            h_new = o_g * jnp.tanh(c_new)
            out_ref[t_idx] = h_new.astype(out_ref.dtype)
            return h_new, c_new
        return step

    h0 = jnp.zeros((B, H), jnp.float32)
    c0 = jnp.zeros((B, H), jnp.float32)
    unroll = True if T <= 16 else 8          # bounded unroll for large T

    @pl.when(pl.program_id(0) == 0)          # forward direction
    def _fwd():
        h_fin, _ = lax.fori_loop(0, T, make_step(False), (h0, c0), unroll=unroll)
        hT_ref[...] = h_fin

    @pl.when(pl.program_id(0) == 1)          # reverse direction
    def _rev():
        h_fin, _ = lax.fori_loop(0, T, make_step(True), (h0, c0), unroll=unroll)
        hT_ref[...] = h_fin


# ----------------------------------------------------------------------------
# One (bi)directional LSTM layer = projection call + recurrence call.
# ----------------------------------------------------------------------------
def lstm_layer(x2d, T, B, layer_p, out_dtype):
    """x2d     : (T*B, Din) bf16 time-major rows.
       layer_p : dict with wih_cat (Din, nd*4H) bf16, bias_cat (1, nd*4H) f32,
                 whh (nd, H, 4H) bf16.
       Returns (out (nd, T, B, H) out_dtype, hT (nd, B, H) f32)."""
    TB, Din = x2d.shape
    nd, H, G = layer_p["whh"].shape          # G = 4H

    vmem_params = pltpu.CompilerParams(
        dimension_semantics=("arbitrary",),
        vmem_limit_bytes=32 * 1024 * 1024)

    # Phase 1: fused both-direction input projection (single wide GEMM).
    gx2d = pl.pallas_call(
        _input_proj_kernel,
        out_shape=jax.ShapeDtypeStruct((TB, nd * G), jnp.bfloat16),
        grid=(1,),
        in_specs=[
            pl.BlockSpec((TB, Din), lambda i: (0, 0)),
            pl.BlockSpec((Din, nd * G), lambda i: (0, 0)),
            pl.BlockSpec((1, nd * G), lambda i: (0, 0)),
        ],
        out_specs=pl.BlockSpec((TB, nd * G), lambda i: (0, 0)),
        compiler_params=vmem_params,
    )(x2d, layer_p["wih_cat"], layer_p["bias_cat"])

    gx = gx2d.reshape(T, B, nd * G)          # free row-major split (no copy)

    # Phase 2: serial recurrence, direction axis "parallel" (v7x: 2 TCs).
    # TODO(synk): on single-TC chips (v5e/v6e) interleave both directions in
    # one fori_loop (stacked (2B, H) LHS) instead of two grid steps.
    out, hT = pl.pallas_call(
        _lstm_recurrence_kernel,
        out_shape=(jax.ShapeDtypeStruct((nd, T, B, H), out_dtype),
                   jax.ShapeDtypeStruct((nd, B, H), jnp.float32)),
        grid=(nd,),
        in_specs=[
            pl.BlockSpec((T, B, G), lambda d: (0, 0, d)),       # gx slice (dir d)
            pl.BlockSpec((None, H, G), lambda d: (d, 0, 0)),    # W_hh^T (dir d)
        ],
        out_specs=(
            pl.BlockSpec((None, T, B, H), lambda d: (d, 0, 0, 0)),
            pl.BlockSpec((None, B, H), lambda d: (d, 0, 0)),
        ),
        compiler_params=pltpu.CompilerParams(
            dimension_semantics=("parallel",),
            vmem_limit_bytes=32 * 1024 * 1024),
    )(gx, layer_p["whh"])
    return out, hT


# ----------------------------------------------------------------------------
# Parameter construction (PyTorch layout) and one-time device preparation.
# ----------------------------------------------------------------------------
def init_encoder_params(key, vocab_size, embedding_dim, hidden_dim,
                        num_layers, bidirectional):
    num_directions = 2 if bidirectional else 1
    k_emb, key = jax.random.split(key)
    params = {
        "embedding": 0.1 * jax.random.normal(
            k_emb, (vocab_size, embedding_dim), jnp.float32),
        "lstm": [],
    }
    bound = float(hidden_dim) ** -0.5
    for layer in range(num_layers):
        in_dim = embedding_dim if layer == 0 else hidden_dim * num_directions
        dirs = []
        for _ in range(num_directions):
            key, k1, k2, k3, k4 = jax.random.split(key, 5)
            dirs.append(dict(
                w_ih=jax.random.uniform(k1, (4 * hidden_dim, in_dim),
                                        jnp.float32, -bound, bound),
                w_hh=jax.random.uniform(k2, (4 * hidden_dim, hidden_dim),
                                        jnp.float32, -bound, bound),
                b_ih=jax.random.uniform(k3, (4 * hidden_dim,),
                                        jnp.float32, -bound, bound),
                b_hh=jax.random.uniform(k4, (4 * hidden_dim,),
                                        jnp.float32, -bound, bound),
            ))
        params["lstm"].append(dirs)
    return params


def prepare_encoder_params(params):
    """One-time transpose / concat / bf16 cast (kept out of the forward path)."""
    prep = {"embedding": params["embedding"], "lstm": []}
    for dirs in params["lstm"]:
        wih_cat = jnp.concatenate([p["w_ih"].T for p in dirs],
                                  axis=1).astype(jnp.bfloat16)       # (D, nd*4H)
        whh = jnp.stack([p["w_hh"].T for p in dirs]).astype(jnp.bfloat16)  # (nd,H,4H)
        bias_cat = jnp.concatenate([p["b_ih"] + p["b_hh"] for p in dirs],
                                   axis=0).reshape(1, -1).astype(jnp.float32)
        prep["lstm"].append({"wih_cat": wih_cat, "whh": whh, "bias_cat": bias_cat})
    return prep


# ----------------------------------------------------------------------------
# Encoder forward: embedding lookup (XLA glue gather) + stacked LSTM layers.
# ----------------------------------------------------------------------------
def encoder_forward(prep, token_ids):
    """token_ids: (B, T) int32 -> (outputs (B,T,nd*H), ht (layers*nd,B,H))."""
    B, T = token_ids.shape
    # TODO(synk): embedding gather kept as XLA glue; could be fused into the
    # projection kernel via PrefetchScalarGridSpec + pl.Element row gather.
    emb = prep["embedding"][token_ids]                         # (B, T, E) f32
    x2d = jnp.transpose(emb, (1, 0, 2)).reshape(T * B, -1)     # time-major rows
    x2d = x2d.astype(jnp.bfloat16)

    hts = []
    n_layers = len(prep["lstm"])
    nd = prep["lstm"][0]["whh"].shape[0]
    H = prep["lstm"][0]["whh"].shape[1]
    for li, layer_p in enumerate(prep["lstm"]):
        last = li == n_layers - 1
        out_dtype = jnp.float32 if last else jnp.bfloat16      # bf16 intermediates
        out, hT = lstm_layer(x2d, T, B, layer_p, out_dtype)    # (nd,T,B,H),(nd,B,H)
        hts.append(hT)
        # TODO(synk): this (nd,T,B,H)->(T*B, nd*H) transpose is XLA glue; a
        # (T,B,nd,H) kernel output layout removes it once H is a multiple of 128.
        x2d = jnp.transpose(out, (1, 2, 0, 3)).reshape(T * B, nd * H)

    outputs = jnp.transpose(x2d.reshape(T, B, nd * H), (1, 0, 2))  # (B,T,nd*H) f32
    ht = jnp.concatenate(hts, axis=0)                              # (layers*nd,B,H)
    return outputs, ht


encoder_forward_jit = jax.jit(encoder_forward)


# ----------------------------------------------------------------------------
# Pure-JAX f32 reference (matches PyTorch nn.LSTM math) for correctness check.
# ----------------------------------------------------------------------------
def _ref_lstm_dir(x_tbd, p, reverse):
    T, B, _ = x_tbd.shape
    H = p["w_hh"].shape[1]
    xs = x_tbd[::-1] if reverse else x_tbd

    def step(carry, x_t):
        h, c = carry
        gates = (jnp.dot(x_t, p["w_ih"].T, precision=lax.Precision.HIGHEST)
                 + jnp.dot(h, p["w_hh"].T, precision=lax.Precision.HIGHEST)
                 + p["b_ih"] + p["b_hh"])
        i = jax.nn.sigmoid(gates[:, :H])
        f = jax.nn.sigmoid(gates[:, H:2 * H])
        g = jnp.tanh(gates[:, 2 * H:3 * H])
        o = jax.nn.sigmoid(gates[:, 3 * H:])
        c = f * c + i * g
        h = o * jnp.tanh(c)
        return (h, c), h

    (h, _), ys = lax.scan(step, (jnp.zeros((B, H)), jnp.zeros((B, H))), xs)
    if reverse:
        ys = ys[::-1]
    return ys, h


def _ref_encoder_forward(params, token_ids):
    x = jnp.transpose(params["embedding"][token_ids], (1, 0, 2))
    hts = []
    for dirs in params["lstm"]:
        outs = []
        for d, p in enumerate(dirs):
            ys, h = _ref_lstm_dir(x, p, reverse=(d == 1))
            outs.append(ys)
            hts.append(h)
        x = jnp.concatenate(outs, axis=-1) if len(outs) > 1 else outs[0]
    return jnp.transpose(x, (1, 0, 2)), jnp.stack(hts, axis=0)


if __name__ == "__main__":
    VOCAB, EMBED, HIDDEN = 50, 16, 32
    NUM_LAYERS, BIDIRECTIONAL = 2, True
    B, T = 2, 8

    key = jax.random.PRNGKey(0)
    k_params, k_tokens = jax.random.split(key)
    params = init_encoder_params(k_params, VOCAB, EMBED, HIDDEN,
                                 NUM_LAYERS, BIDIRECTIONAL)
    prep = prepare_encoder_params(params)          # one-time weight prep
    token_ids = jax.random.randint(k_tokens, (B, T), 0, VOCAB, dtype=jnp.int32)

    outputs, ht = encoder_forward_jit(prep, token_ids)
    outputs = jax.block_until_ready(outputs)
    ht = jax.block_until_ready(ht)

    num_dirs = 2 if BIDIRECTIONAL else 1
    assert outputs.shape == (B, T, num_dirs * HIDDEN)
    assert ht.shape == (NUM_LAYERS * num_dirs, B, HIDDEN)
    assert outputs.dtype == jnp.float32 and ht.dtype == jnp.float32

    # bf16 MXU path + bf16 intermediates vs exact-f32 reference.
    ref_out, ref_ht = _ref_encoder_forward(params, token_ids)
    assert jnp.allclose(outputs, ref_out, atol=5e-2, rtol=5e-2)
    assert jnp.allclose(ht, ref_ht, atol=5e-2, rtol=5e-2)

    print("KERNEL_OK")
</pallas_src>

<mosaic_0001>
module attributes {stable_mosaic.version = 11 : i64} {
  func.func @_input_proj_kernel(%arg0: i32, %arg1: memref<16x16xbf16, #tpu.memory_space<vmem>>, %arg2: memref<16x256xbf16, #tpu.memory_space<vmem>>, %arg3: memref<1x256xf32, #tpu.memory_space<vmem>>, %arg4: memref<16x256xbf16, #tpu.memory_space<vmem>>) attributes {dimension_semantics = [#tpu.dimension_semantics<arbitrary>], iteration_bounds = array<i64: 1>, scalar_prefetch = 0 : i64, scratch_operands = 0 : i64, tpu.core_type = #tpu.core_type<tc>, window_params = [{pipeline_mode = #tpu.pipeline_mode<synchronous>, transform_indices = @transform_0, window_bounds = array<i64: 16, 16>}, {pipeline_mode = #tpu.pipeline_mode<synchronous>, transform_indices = @transform_1, window_bounds = array<i64: 16, 256>}, {pipeline_mode = #tpu.pipeline_mode<synchronous>, transform_indices = @transform_2, window_bounds = array<i64: 1, 256>}, {pipeline_mode = #tpu.pipeline_mode<synchronous>, transform_indices = @transform_3, window_bounds = array<i64: 16, 256>}]} {
    %c0 = arith.constant 0 : index
    %c0_0 = arith.constant 0 : index
    %0 = vector.load %arg1[%c0, %c0_0] : memref<16x16xbf16, #tpu.memory_space<vmem>>, vector<16x16xbf16>
    %c0_1 = arith.constant 0 : index
    %c0_2 = arith.constant 0 : index
    %1 = vector.load %arg2[%c0_1, %c0_2] : memref<16x256xbf16, #tpu.memory_space<vmem>>, vector<16x256xbf16>
    %cst = arith.constant dense<0.000000e+00> : vector<16x256xf32>
    %2 = tpu.matmul %0, %1, %cst {dimension_numbers = #tpu.dot_dimension_numbers<[1], [0], [0], [1], [0, 0, 1, 1], [], []>} : vector<16x16xbf16>, vector<16x256xbf16>, vector<16x256xf32> -> vector<16x256xf32>
    %c0_3 = arith.constant 0 : index
    %c0_4 = arith.constant 0 : index
    %3 = vector.load %arg3[%c0_3, %c0_4] : memref<1x256xf32, #tpu.memory_space<vmem>>, vector<1x256xf32>
    %4 = vector.broadcast %3 : vector<1x256xf32> to vector<16x256xf32>
    %5 = arith.addf %2, %4 : vector<16x256xf32>
    %6 = arith.truncf %5 : vector<16x256xf32> to vector<16x256xbf16>
    %c0_5 = arith.constant 0 : index
    %c0_6 = arith.constant 0 : index
    %7 = vector.load %arg4[%c0_5, %c0_6] : memref<16x256xbf16, #tpu.memory_space<vmem>>, vector<16x256xbf16>
    tpu.vector_store %arg4[%c0_5, %c0_6], %6 {strides = array<i32>} : memref<16x256xbf16, #tpu.memory_space<vmem>>, vector<16x256xbf16>,
    return
  }
  func.func @transform_0(%arg0: i32) -> (i32, i32) {
    %c0_i32 = arith.constant 0 : i32
    %c0_i32_0 = arith.constant 0 : i32
    %c0_i32_1 = arith.constant 0 : i32
    return %c0_i32, %c0_i32_0 : i32, i32
  }
  func.func @transform_1(%arg0: i32) -> (i32, i32) {
    %c0_i32 = arith.constant 0 : i32
    %c0_i32_0 = arith.constant 0 : i32
    %c0_i32_1 = arith.constant 0 : i32
    return %c0_i32, %c0_i32_0 : i32, i32
  }
  func.func @transform_2(%arg0: i32) -> (i32, i32) {
    %c0_i32 = arith.constant 0 : i32
    %c0_i32_0 = arith.constant 0 : i32
    %c0_i32_1 = arith.constant 0 : i32
    return %c0_i32, %c0_i32_0 : i32, i32
  }
  func.func @transform_3(%arg0: i32) -> (i32, i32) {
    %c0_i32 = arith.constant 0 : i32
    %c0_i32_0 = arith.constant 0 : i32
    %c0_i32_1 = arith.constant 0 : i32
    return %c0_i32, %c0_i32_0 : i32, i32
  }
}

module attributes {stable_mosaic.version = 11 : i64} {
  func.func @_input_proj_kernel(%arg0: i32, %arg1: memref<16x64xbf16, #tpu.memory_space<vmem>>, %arg2: memref<64x256xbf16, #tpu.memory_space<vmem>>, %arg3: memref<1x256xf32, #tpu.memory_space<vmem>>, %arg4: memref<16x256xbf16, #tpu.memory_space<vmem>>) attributes {dimension_semantics = [#tpu.dimension_semantics<arbitrary>], iteration_bounds = array<i64: 1>, scalar_prefetch = 0 : i64, scratch_operands = 0 : i64, tpu.core_type = #tpu.core_type<tc>, window_params = [{pipeline_mode = #tpu.pipeline_mode<synchronous>, transform_indices = @transform_0, window_bounds = array<i64: 16, 64>}, {pipeline_mode = #tpu.pipeline_mode<synchronous>, transform_indices = @transform_1, window_bounds = array<i64: 64, 256>}, {pipeline_mode = #tpu.pipeline_mode<synchronous>, transform_indices = @transform_2, window_bounds = array<i64: 1, 256>}, {pipeline_mode = #tpu.pipeline_mode<synchronous>, transform_indices = @transform_3, window_bounds = array<i64: 16, 256>}]} {
    %c0 = arith.constant 0 : index
    %c0_0 = arith.constant 0 : index
    %0 = vector.load %arg1[%c0, %c0_0] : memref<16x64xbf16, #tpu.memory_space<vmem>>, vector<16x64xbf16>
    %c0_1 = arith.constant 0 : index
    %c0_2 = arith.constant 0 : index
    %1 = vector.load %arg2[%c0_1, %c0_2] : memref<64x256xbf16, #tpu.memory_space<vmem>>, vector<64x256xbf16>
    %cst = arith.constant dense<0.000000e+00> : vector<16x256xf32>
    %2 = tpu.matmul %0, %1, %cst {dimension_numbers = #tpu.dot_dimension_numbers<[1], [0], [0], [1], [0, 0, 1, 1], [], []>} : vector<16x64xbf16>, vector<64x256xbf16>, vector<16x256xf32> -> vector<16x256xf32>
    %c0_3 = arith.constant 0 : index
    %c0_4 = arith.constant 0 : index
    %3 = vector.load %arg3[%c0_3, %c0_4] : memref<1x256xf32, #tpu.memory_space<vmem>>, vector<1x256xf32>
    %4 = vector.broadcast %3 : vector<1x256xf32> to vector<16x256xf32>
    %5 = arith.addf %2, %4 : vector<16x256xf32>
    %6 = arith.truncf %5 : vector<16x256xf32> to vector<16x256xbf16>
    %c0_5 = arith.constant 0 : index
    %c0_6 = arith.constant 0 : index
    %7 = vector.load %arg4[%c0_5, %c0_6] : memref<16x256xbf16, #tpu.memory_space<vmem>>, vector<16x256xbf16>
    tpu.vector_store %arg4[%c0_5, %c0_6], %6 {strides = array<i32>} : memref<16x256xbf16, #tpu.memory_space<vmem>>, vector<16x256xbf16>,
    return
  }
  func.func @transform_0(%arg0: i32) -> (i32, i32) {
    %c0_i32 = arith.constant 0 : i32
    %c0_i32_0 = arith.constant 0 : i32
    %c0_i32_1 = arith.constant 0 : i32
    return %c0_i32, %c0_i32_0 : i32, i32
  }
  func.func @transform_1(%arg0: i32) -> (i32, i32) {
    %c0_i32 = arith.constant 0 : i32
    %c0_i32_0 = arith.constant 0 : i32
    %c0_i32_1 = arith.constant 0 : i32
    return %c0_i32, %c0_i32_0 : i32, i32
  }
  func.func @transform_2(%arg0: i32) -> (i32, i32) {
    %c0_i32 = arith.constant 0 : i32
    %c0_i32_0 = arith.constant 0 : i32
    %c0_i32_1 = arith.constant 0 : i32
    return %c0_i32, %c0_i32_0 : i32, i32
  }
  func.func @transform_3(%arg0: i32) -> (i32, i32) {
    %c0_i32 = arith.constant 0 : i32
    %c0_i32_0 = arith.constant 0 : i32
    %c0_i32_1 = arith.constant 0 : i32
    return %c0_i32, %c0_i32_0 : i32, i32
  }
}

module attributes {stable_mosaic.version = 11 : i64} {
  func.func @_lstm_recurrence_kernel(%arg0: i32, %arg1: memref<8x2x128xbf16, #tpu.memory_space<vmem>>, %arg2: memref<1x32x128xbf16, #tpu.memory_space<vmem>>, %arg3: memref<1x8x2x32xbf16, #tpu.memory_space<vmem>>, %arg4: memref<1x2x32xf32, #tpu.memory_space<vmem>>) attributes {dimension_semantics = [#tpu.dimension_semantics<parallel>], iteration_bounds = array<i64: 2>, scalar_prefetch = 0 : i64, scratch_operands = 0 : i64, tpu.core_type = #tpu.core_type<tc>, window_params = [{transform_indices = @transform_0, window_bounds = array<i64: 8, 2, 128>}, {transform_indices = @transform_1, window_bounds = array<i64: 1, 32, 128>}, {transform_indices = @transform_2, window_bounds = array<i64: 1, 8, 2, 32>}, {transform_indices = @transform_3, window_bounds = array<i64: 1, 2, 32>}]} {
    %c0 = arith.constant 0 : index
    %c0_0 = arith.constant 0 : index
    %c0_1 = arith.constant 0 : index
    %0 = vector.load %arg2[%c0, %c0_0, %c0_1] : memref<1x32x128xbf16, #tpu.memory_space<vmem>>, vector<1x32x128xbf16>
    %1 = vector.shape_cast %0 : vector<1x32x128xbf16> to vector<32x128xbf16>
    %cst = arith.constant 0.000000e+00 : f32
    %2 = vector.broadcast %cst : f32 to vector<2x32xf32>
    %cst_2 = arith.constant 0.000000e+00 : f32
    %3 = vector.broadcast %cst_2 : f32 to vector<2x32xf32>
    %c0_i32 = arith.constant 0 : i32
    %4 = arith.cmpi eq, %arg0, %c0_i32 : i32
    %5 = arith.extui %4 : i1 to i32
    %c0_i32_3 = arith.constant 0 : i32
    %6 = arith.cmpi ne, %5, %c0_i32_3 : i32
    scf.if %6 {
      %c0_i32_5 = arith.constant 0 : i32
      %10 = arith.index_cast %c0_i32_5 : i32 to index
      %c0_6 = arith.constant 0 : index
      %c0_7 = arith.constant 0 : index
      %11 = vector.load %arg1[%10, %c0_6, %c0_7] : memref<8x2x128xbf16, #tpu.memory_space<vmem>>, vector<1x2x128xbf16>
      %12 = vector.shape_cast %11 : vector<1x2x128xbf16> to vector<2x128xbf16>
      %13 = arith.extf %12 : vector<2x128xbf16> to vector<2x128xf32>
      %14 = arith.truncf %2 : vector<2x32xf32> to vector<2x32xbf16>
      %cst_8 = arith.constant dense<0.000000e+00> : vector<2x128xf32>
      %15 = tpu.matmul %14, %1, %cst_8 {dimension_numbers = #tpu.dot_dimension_numbers<[1], [0], [0], [1], [0, 0, 1, 1], [], []>} : vector<2x32xbf16>, vector<32x128xbf16>, vector<2x128xf32> -> vector<2x128xf32>
      %16 = arith.addf %13, %15 : vector<2x128xf32>
      %17 = arith.negf %16 : vector<2x128xf32>
      %18 = math.exp %17 : vector<2x128xf32>
      %cst_9 = arith.constant 1.000000e+00 : f32
      %19 = vector.broadcast %cst_9 : f32 to vector<2x128xf32>
      %20 = arith.addf %19, %18 : vector<2x128xf32>
      %21 = arith.divf %19, %20 : vector<2x128xf32>
      %22 = math.tanh %16 : vector<2x128xf32>
      %23 = vector.extract_strided_slice %21 {offsets = [0, 0], sizes = [2, 32], strides = [1, 1]} : vector<2x128xf32> to vector<2x32xf32>
      %24 = vector.extract_strided_slice %21 {offsets = [0, 32], sizes = [2, 32], strides = [1, 1]} : vector<2x128xf32> to vector<2x32xf32>
      %25 = vector.extract_strided_slice %22 {offsets = [0, 64], sizes = [2, 32], strides = [1, 1]} : vector<2x128xf32> to vector<2x32xf32>
      %26 = vector.extract_strided_slice %21 {offsets = [0, 96], sizes = [2, 32], strides = [1, 1]} : vector<2x128xf32> to vector<2x32xf32>
      %27 = arith.mulf %24, %3 : vector<2x32xf32>
      %28 = arith.mulf %23, %25 : vector<2x32xf32>
      %29 = arith.addf %27, %28 : vector<2x32xf32>
      %30 = math.tanh %29 : vector<2x32xf32>
      %31 = arith.mulf %26, %30 : vector<2x32xf32>
      %32 = arith.truncf %31 : vector<2x32xf32> to vector<2x32xbf16>
      %c0_10 = arith.constant 0 : index
      %33 = arith.index_cast %c0_i32_5 : i32 to index
      %c0_11 = arith.constant 0 : index
      %c0_12 = arith.constant 0 : index
      %34 = vector.load %arg3[%c0_10, %33, %c0_11, %c0_12] : memref<1x8x2x32xbf16, #tpu.memory_space<vmem>>, vector<1x1x2x32xbf16>
      %35 = vector.shape_cast %34 : vector<1x1x2x32xbf16> to vector<2x32xbf16>
      %36 = vector.shape_cast %32 : vector<2x32xbf16> to vector<1x1x2x32xbf16>
      tpu.vector_store %arg3[%c0_10, %33, %c0_11, %c0_12], %36 {strides = array<i32>} : memref<1x8x2x32xbf16, #tpu.memory_space<vmem>>, vector<1x1x2x32xbf16>,
      %c1_i32_13 = arith.constant 1 : i32
      %37 = arith.index_cast %c1_i32_13 : i32 to index
      %c0_14 = arith.constant 0 : index
      %c0_15 = arith.constant 0 : index
      %38 = vector.load %arg1[%37, %c0_14, %c0_15] : memref<8x2x128xbf16, #tpu.memory_space<vmem>>, vector<1x2x128xbf16>
      %39 = vector.shape_cast %38 : vector<1x2x128xbf16> to vector<2x128xbf16>
      %40 = arith.extf %39 : vector<2x128xbf16> to vector<2x128xf32>
      %41 = arith.truncf %31 : vector<2x32xf32> to vector<2x32xbf16>
      %cst_16 = arith.constant dense<0.000000e+00> : vector<2x128xf32>
      %42 = tpu.matmul %41, %1, %cst_16 {dimension_numbers = #tpu.dot_dimension_numbers<[1], [0], [0], [1], [0, 0, 1, 1], [], []>} : vector<2x32xbf16>, vector<32x128xbf16>, vector<2x128xf32> -> vector<2x128xf32>
      %43 = arith.addf %40, %42 : vector<2x128xf32>
      %44 = arith.negf %43 : vector<2x128xf32>
      %45 = math.exp %44 : vector<2x128xf32>
      %cst_17 = arith.constant 1.000000e+00 : f32
      %46 = vector.broadcast %cst_17 : f32 to vector<2x128xf32>
      %47 = arith.addf %46, %45 : vector<2x128xf32>
      %48 = arith.divf %46, %47 : vector<2x128xf32>
      %49 = math.tanh %43 : vector<2x128xf32>
      %50 = vector.extract_strided_slice %48 {offsets = [0, 0], sizes = [2, 32], strides = [1, 1]} : vector<2x128xf32> to vector<2x32xf32>
      %51 = vector.extract_strided_slice %48 {offsets = [0, 32], sizes = [2, 32], strides = [1, 1]} : vector<2x128xf32> to vector<2x32xf32>
      %52 = vector.extract_strided_slice %49 {offsets = [0, 64], sizes = [2, 32], strides = [1, 1]} : vector<2x128xf32> to vector<2x32xf32>
      %53 = vector.extract_strided_slice %48 {offsets = [0, 96], sizes = [2, 32], strides = [1, 1]} : vector<2x128xf32> to vector<2x32xf32>
      %54 = arith.mulf %51, %29 : vector<2x32xf32>
      %55 = arith.mulf %50, %52 : vector<2x32xf32>
      %56 = arith.addf %54, %55 : vector<2x32xf32>
      %57 = math.tanh %56 : vector<2x32xf32>
      %58 = arith.mulf %53, %57 : vector<2x32xf32>
      %59 = arith.truncf %58 : vector<2x32xf32> to vector<2x32xbf16>
      %c0_18 = arith.constant 0 : index
      %60 = arith.index_cast %c1_i32_13 : i32 to index
      %c0_19 = arith.constant 0 : index
      %c0_20 = arith.constant 0 : index
      %61 = vector.load %arg3[%c0_18, %60, %c0_19, %c0_20] : memref<1x8x2x32xbf16, #tpu.memory_space<vmem>>, vector<1x1x2x32xbf16>
      %62 = vector.shape_cast %61 : vector<1x1x2x32xbf16> to vector<2x32xbf16>
      %63 = vector.shape_cast %59 : vector<2x32xbf16> to vector<1x1x2x32xbf16>
      tpu.vector_store %arg3[%c0_18, %60, %c0_19, %c0_20], %63 {strides = array<i32>} : memref<1x8x2x32xbf16, #tpu.memory_space<vmem>>, vector<1x1x2x32xbf16>,
      %c2_i32 = arith.constant 2 : i32
      %64 = arith.index_cast %c2_i32 : i32 to index
      %c0_21 = arith.constant 0 : index
      %c0_22 = arith.constant 0 : index
      %65 = vector.load %arg1[%64, %c0_21, %c0_22] : memref<8x2x128xbf16, #tpu.memory_space<vmem>>, vector<1x2x128xbf16>
      %66 = vector.shape_cast %65 : vector<1x2x128xbf16> to vector<2x128xbf16>
      %67 = arith.extf %66 : vector<2x128xbf16> to vector<2x128xf32>
      %68 = arith.truncf %58 : vector<2x32xf32> to vector<2x32xbf16>
      %cst_23 = arith.constant dense<0.000000e+00> : vector<2x128xf32>
      %69 = tpu.matmul %68, %1, %cst_23 {dimension_numbers = #tpu.dot_dimension_numbers<[1], [0], [0], [1], [0, 0, 1, 1], [], []>} : vector<2x32xbf16>, vector<32x128xbf16>, vector<2x128xf32> -> vector<2x128xf32>
      %70 = arith.addf %67, %69 : vector<2x128xf32>
      %71 = arith.negf %70 : vector<2x128xf32>
      %72 = math.exp %71 : vector<2x128xf32>
      %cst_24 = arith.constant 1.000000e+00 : f32
      %73 = vector.broadcast %cst_24 : f32 to vector<2x128xf32>
      %74 = arith.addf %73, %72 : vector<2x128xf32>
      %75 = arith.divf %73, %74 : vector<2x128xf32>
      %76 = math.tanh %70 : vector<2x128xf32>
      %77 = vector.extract_strided_slice %75 {offsets = [0, 0], sizes = [2, 32], strides = [1, 1]} : vector<2x128xf32> to vector<2x32xf32>
      %78 = vector.extract_strided_slice %75 {offsets = [0, 32], sizes = [2, 32], strides = [1, 1]} : vector<2x128xf32> to vector<2x32xf32>
      %79 = vector.extract_strided_slice %76 {offsets = [0, 64], sizes = [2, 32], strides = [1, 1]} : vector<2x128xf32> to vector<2x32xf32>
      %80 = vector.extract_strided_slice %75 {offsets = [0, 96], sizes = [2, 32], strides = [1, 1]} : vector<2x128xf32> to vector<2x32xf32>
      %81 = arith.mulf %78, %56 : vector<2x32xf32>
      %82 = arith.mulf %77, %79 : vector<2x32xf32>
      %83 = arith.addf %81, %82 : vector<2x32xf32>
      %84 = math.tanh %83 : vector<2x32xf32>
      %85 = arith.mulf %80, %84 : vector<2x32xf32>
      %86 = arith.truncf %85 : vector<2x32xf32> to vector<2x32xbf16>
      %c0_25 = arith.constant 0 : index
      %87 = arith.index_cast %c2_i32 : i32 to index
      %c0_26 = arith.constant 0 : index
      %c0_27 = arith.constant 0 : index
      %88 = vector.load %arg3[%c0_25, %87, %c0_26, %c0_27] : memref<1x8x2x32xbf16, #tpu.memory_space<vmem>>, vector<1x1x2x32xbf16>
      %89 = vector.shape_cast %88 : vector<1x1x2x32xbf16> to vector<2x32xbf16>
      %90 = vector.shape_cast %86 : vector<2x32xbf16> to vector<1x1x2x32xbf16>
      tpu.vector_store %arg3[%c0_25, %87, %c0_26, %c0_27], %90 {strides = array<i32>} : memref<1x8x2x32xbf16, #tpu.memory_space<vmem>>, vector<1x1x2x32xbf16>,
      %c3_i32 = arith.constant 3 : i32
      %91 = arith.index_cast %c3_i32 : i32 to index
      %c0_28 = arith.constant 0 : index
      %c0_29 = arith.constant 0 : index
      %92 = vector.load %arg1[%91, %c0_28, %c0_29] : memref<8x2x128xbf16, #tpu.memory_space<vmem>>, vector<1x2x128xbf16>
      %93 = vector.shape_cast %92 : vector<1x2x128xbf16> to vector<2x128xbf16>
      %94 = arith.extf %93 : vector<2x128xbf16> to vector<2x128xf32>
      %95 = arith.truncf %85 : vector<2x32xf32> to vector<2x32xbf16>
      %cst_30 = arith.constant dense<0.000000e+00> : vector<2x128xf32>
      %96 = tpu.matmul %95, %1, %cst_30 {dimension_numbers = #tpu.dot_dimension_numbers<[1], [0], [0], [1], [0, 0, 1, 1], [], []>} : vector<2x32xbf16>, vector<32x128xbf16>, vector<2x128xf32> -> vector<2x128xf32>
      %97 = arith.addf %94, %96 : vector<2x128xf32>
      %98 = arith.negf %97 : vector<2x128xf32>
      %99 = math.exp %98 : vector<2x128xf32>
      %cst_31 = arith.constant 1.000000e+00 : f32
      %100 = vector.broadcast %cst_31 : f32 to vector<2x128xf32>
      %101 = arith.addf %100, %99 : vector<2x128xf32>
      %102 = arith.divf %100, %101 : vector<2x128xf32>
      %103 = math.tanh %97 : vector<2x128xf32>
      %104 = vector.extract_strided_slice %102 {offsets = [0, 0], sizes = [2, 32], strides = [1, 1]} : vector<2x128xf32> to vector<2x32xf32>
      %105 = vector.extract_strided_slice %102 {offsets = [0, 32], sizes = [2, 32], strides = [1, 1]} : vector<2x128xf32> to vector<2x32xf32>
      %106 = vector.extract_strided_slice %103 {offsets = [0, 64], sizes = [2, 32], strides = [1, 1]} : vector<2x128xf32> to vector<2x32xf32>
      %107 = vector.extract_strided_slice %102 {offsets = [0, 96], sizes = [2, 32], strides = [1, 1]} : vector<2x128xf32> to vector<2x32xf32>
      %108 = arith.mulf %105, %83 : vector<2x32xf32>
      %109 = arith.mulf %104, %106 : vector<2x32xf32>
      %110 = arith.addf %108, %109 : vector<2x32xf32>
      %111 = math.tanh %110 : vector<2x32xf32>
      %112 = arith.mulf %107, %111 : vector<2x32xf32>
      %113 = arith.truncf %112 : vector<2x32xf32> to vector<2x32xbf16>
      %c0_32 = arith.constant 0 : index
      %114 = arith.index_cast %c3_i32 : i32 to index
      %c0_33 = arith.constant 0 : index
      %c0_34 = arith.constant 0 : index
      %115 = vector.load %arg3[%c0_32, %114, %c0_33, %c0_34] : memref<1x8x2x32xbf16, #tpu.memory_space<vmem>>, vector<1x1x2x32xbf16>
      %116 = vector.shape_cast %115 : vector<1x1x2x32xbf16> to vector<2x32xbf16>
      %117 = vector.shape_cast %113 : vector<2x32xbf16> to vector<1x1x2x32xbf16>
      tpu.vector_store %arg3[%c0_32, %114, %c0_33, %c0_34], %117 {strides = array<i32>} : memref<1x8x2x32xbf16, #tpu.memory_space<vmem>>, vector<1x1x2x32xbf16>,
      %c4_i32 = arith.constant 4 : i32
      %118 = arith.index_cast %c4_i32 : i32 to index
      %c0_35 = arith.constant 0 : index
      %c0_36 = arith.constant 0 : index
      %119 = vector.load %arg1[%118, %c0_35, %c0_36] : memref<8x2x128xbf16, #tpu.memory_space<vmem>>, vector<1x2x128xbf16>
      %120 = vector.shape_cast %119 : vector<1x2x128xbf16> to vector<2x128xbf16>
      %121 = arith.extf %120 : vector<2x128xbf16> to vector<2x128xf32>
      %122 = arith.truncf %112 : vector<2x32xf32> to vector<2x32xbf16>
      %cst_37 = arith.constant dense<0.000000e+00> : vector<2x128xf32>
      %123 = tpu.matmul %122, %1, %cst_37 {dimension_numbers = #tpu.dot_dimension_numbers<[1], [0], [0], [1], [0, 0, 1, 1], [], []>} : vector<2x32xbf16>, vector<32x128xbf16>, vector<2x128xf32> -> vector<2x128xf32>
      %124 = arith.addf %121, %123 : vector<2x128xf32>
      %125 = arith.negf %124 : vector<2x128xf32>
      %126 = math.exp %125 : vector<2x128xf32>
      %cst_38 = arith.constant 1.000000e+00 : f32
      %127 = vector.broadcast %cst_38 : f32 to vector<2x128xf32>
      %128 = arith.addf %127, %126 : vector<2x128xf32>
      %129 = arith.divf %127, %128 : vector<2x128xf32>
      %130 = math.tanh %124 : vector<2x128xf32>
      %131 = vector.extract_strided_slice %129 {offsets = [0, 0], sizes = [2, 32], strides = [1, 1]} : vector<2x128xf32> to vector<2x32xf32>
      %132 = vector.extract_strided_slice %129 {offsets = [0, 32], sizes = [2, 32], strides = [1, 1]} : vector<2x128xf32> to vector<2x32xf32>
      %133 = vector.extract_strided_slice %130 {offsets = [0, 64], sizes = [2, 32], strides = [1, 1]} : vector<2x128xf32> to vector<2x32xf32>
      %134 = vector.extract_strided_slice %129 {offsets = [0, 96], sizes = [2, 32], strides = [1, 1]} : vector<2x128xf32> to vector<2x32xf32>
      %135 = arith.mulf %132, %110 : vector<2x32xf32>
      %136 = arith.mulf %131, %133 : vector<2x32xf32>
      %137 = arith.addf %135, %136 : vector<2x32xf32>
      %138 = math.tanh %137 : vector<2x32xf32>
      %139 = arith.mulf %134, %138 : vector<2x32xf32>
      %140 = arith.truncf %139 : vector<2x32xf32> to vector<2x32xbf16>
      %c0_39 = arith.constant 0 : index
      %141 = arith.index_cast %c4_i32 : i32 to index
      %c0_40 = arith.constant 0 : index
      %c0_41 = arith.constant 0 : index
      %142 = vector.load %arg3[%c0_39, %141, %c0_40, %c0_41] : memref<1x8x2x32xbf16, #tpu.memory_space<vmem>>, vector<1x1x2x32xbf16>
      %143 = vector.shape_cast %142 : vector<1x1x2x32xbf16> to vector<2x32xbf16>
      %144 = vector.shape_cast %140 : vector<2x32xbf16> to vector<1x1x2x32xbf16>
      tpu.vector_store %arg3[%c0_39, %141, %c0_40, %c0_41], %144 {strides = array<i32>} : memref<1x8x2x32xbf16, #tpu.memory_space<vmem>>, vector<1x1x2x32xbf16>,
      %c5_i32 = arith.constant 5 : i32
      %145 = arith.index_cast %c5_i32 : i32 to index
      %c0_42 = arith.constant 0 : index
      %c0_43 = arith.constant 0 : index
      %146 = vector.load %arg1[%145, %c0_42, %c0_43] : memref<8x2x128xbf16, #tpu.memory_space<vmem>>, vector<1x2x128xbf16>
      %147 = vector.shape_cast %146 : vector<1x2x128xbf16> to vector<2x128xbf16>
      %148 = arith.extf %147 : vector<2x128xbf16> to vector<2x128xf32>
      %149 = arith.truncf %139 : vector<2x32xf32> to vector<2x32xbf16>
      %cst_44 = arith.constant dense<0.000000e+00> : vector<2x128xf32>
      %150 = tpu.matmul %149, %1, %cst_44 {dimension_numbers = #tpu.dot_dimension_numbers<[1], [0], [0], [1], [0, 0, 1, 1], [], []>} : vector<2x32xbf16>, vector<32x128xbf16>, vector<2x128xf32> -> vector<2x128xf32>
      %151 = arith.addf %148, %150 : vector<2x128xf32>
      %152 = arith.negf %151 : vector<2x128xf32>
      %153 = math.exp %152 : vector<2x128xf32>
      %cst_45 = arith.constant 1.000000e+00 : f32
      %154 = vector.broadcast %cst_45 : f32 to vector<2x128xf32>
      %155 = arith.addf %154, %153 : vector<2x128xf32>
      %156 = arith.divf %154, %155 : vector<2x128xf32>
      %157 = math.tanh %151 : vector<2x128xf32>
      %158 = vector.extract_strided_slice %156 {offsets = [0, 0], sizes = [2, 32], strides = [1, 1]} : vector<2x128xf32> to vector<2x32xf32>
      %159 = vector.extract_strided_slice %156 {offsets = [0, 32], sizes = [2, 32], strides = [1, 1]} : vector<2x128xf32> to vector<2x32xf32>
      %160 = vector.extract_strided_slice %157 {offsets = [0, 64], sizes = [2, 32], strides = [1, 1]} : vector<2x128xf32> to vector<2x32xf32>
      %161 = vector.extract_strided_slice %156 {offsets = [0, 96], sizes = [2, 32], strides = [1, 1]} : vector<2x128xf32> to vector<2x32xf32>
      %162 = arith.mulf %159, %137 : vector<2x32xf32>
      %163 = arith.mulf %158, %160 : vector<2x32xf32>
      %164 = arith.addf %162, %163 : vector<2x32xf32>
      %165 = math.tanh %164 : vector<2x32xf32>
      %166 = arith.mulf %161, %165 : vector<2x32xf32>
      %167 = arith.truncf %166 : vector<2x32xf32> to vector<2x32xbf16>
      %c0_46 = arith.constant 0 : index
      %168 = arith.index_cast %c5_i32 : i32 to index
      %c0_47 = arith.constant 0 : index
      %c0_48 = arith.constant 0 : index
      %169 = vector.load %arg3[%c0_46, %168, %c0_47, %c0_48] : memref<1x8x2x32xbf16, #tpu.memory_space<vmem>>, vector<1x1x2x32xbf16>
      %170 = vector.shape_cast %169 : vector<1x1x2x32xbf16> to vector<2x32xbf16>
      %171 = vector.shape_cast %167 : vector<2x32xbf16> to vector<1x1x2x32xbf16>
      tpu.vector_store %arg3[%c0_46, %168, %c0_47, %c0_48], %171 {strides = array<i32>} : memref<1x8x2x32xbf16, #tpu.memory_space<vmem>>, vector<1x1x2x32xbf16>,
      %c6_i32 = arith.constant 6 : i32
      %172 = arith.index_cast %c6_i32 : i32 to index
      %c0_49 = arith.constant 0 : index
      %c0_50 = arith.constant 0 : index
      %173 = vector.load %arg1[%172, %c0_49, %c0_50] : memref<8x2x128xbf16, #tpu.memory_space<vmem>>, vector<1x2x128xbf16>
      %174 = vector.shape_cast %173 : vector<1x2x128xbf16> to vector<2x128xbf16>
      %175 = arith.extf %174 : vector<2x128xbf16> to vector<2x128xf32>
      %176 = arith.truncf %166 : vector<2x32xf32> to vector<2x32xbf16>
      %cst_51 = arith.constant dense<0.000000e+00> : vector<2x128xf32>
      %177 = tpu.matmul %176, %1, %cst_51 {dimension_numbers = #tpu.dot_dimension_numbers<[1], [0], [0], [1], [0, 0, 1, 1], [], []>} : vector<2x32xbf16>, vector<32x128xbf16>, vector<2x128xf32> -> vector<2x128xf32>
      %178 = arith.addf %175, %177 : vector<2x128xf32>
      %179 = arith.negf %178 : vector<2x128xf32>
      %180 = math.exp %179 : vector<2x128xf32>
      %cst_52 = arith.constant 1.000000e+00 : f32
      %181 = vector.broadcast %cst_52 : f32 to vector<2x128xf32>
      %182 = arith.addf %181, %180 : vector<2x128xf32>
      %183 = arith.divf %181, %182 : vector<2x128xf32>
      %184 = math.tanh %178 : vector<2x128xf32>
      %185 = vector.extract_strided_slice %183 {offsets = [0, 0], sizes = [2, 32], strides = [1, 1]} : vector<2x128xf32> to vector<2x32xf32>
      %186 = vector.extract_strided_slice %183 {offsets = [0, 32], sizes = [2, 32], strides = [1, 1]} : vector<2x128xf32> to vector<2x32xf32>
      %187 = vector.extract_strided_slice %184 {offsets = [0, 64], sizes = [2, 32], strides = [1, 1]} : vector<2x128xf32> to vector<2x32xf32>
      %188 = vector.extract_strided_slice %183 {offsets = [0, 96], sizes = [2, 32], strides = [1, 1]} : vector<2x128xf32> to vector<2x32xf32>
      %189 = arith.mulf %186, %164 : vector<2x32xf32>
      %190 = arith.mulf %185, %187 : vector<2x32xf32>
      %191 = arith.addf %189, %190 : vector<2x32xf32>
      %192 = math.tanh %191 : vector<2x32xf32>
      %193 = arith.mulf %188, %192 : vector<2x32xf32>
      %194 = arith.truncf %193 : vector<2x32xf32> to vector<2x32xbf16>
      %c0_53 = arith.constant 0 : index
      %195 = arith.index_cast %c6_i32 : i32 to index
      %c0_54 = arith.constant 0 : index
      %c0_55 = arith.constant 0 : index
      %196 = vector.load %arg3[%c0_53, %195, %c0_54, %c0_55] : memref<1x8x2x32xbf16, #tpu.memory_space<vmem>>, vector<1x1x2x32xbf16>
      %197 = vector.shape_cast %196 : vector<1x1x2x32xbf16> to vector<2x32xbf16>
      %198 = vector.shape_cast %194 : vector<2x32xbf16> to vector<1x1x2x32xbf16>
      tpu.vector_store %arg3[%c0_53, %195, %c0_54, %c0_55], %198 {strides = array<i32>} : memref<1x8x2x32xbf16, #tpu.memory_space<vmem>>, vector<1x1x2x32xbf16>,
      %c7_i32 = arith.constant 7 : i32
      %199 = arith.index_cast %c7_i32 : i32 to index
      %c0_56 = arith.constant 0 : index
      %c0_57 = arith.constant 0 : index
      %200 = vector.load %arg1[%199, %c0_56, %c0_57] : memref<8x2x128xbf16, #tpu.memory_space<vmem>>, vector<1x2x128xbf16>
      %201 = vector.shape_cast %200 : vector<1x2x128xbf16> to vector<2x128xbf16>
      %202 = arith.extf %201 : vector<2x128xbf16> to vector<2x128xf32>
      %203 = arith.truncf %193 : vector<2x32xf32> to vector<2x32xbf16>
      %cst_58 = arith.constant dense<0.000000e+00> : vector<2x128xf32>
      %204 = tpu.matmul %203, %1, %cst_58 {dimension_numbers = #tpu.dot_dimension_numbers<[1], [0], [0], [1], [0, 0, 1, 1], [], []>} : vector<2x32xbf16>, vector<32x128xbf16>, vector<2x128xf32> -> vector<2x128xf32>
      %205 = arith.addf %202, %204 : vector<2x128xf32>
      %206 = arith.negf %205 : vector<2x128xf32>
      %207 = math.exp %206 : vector<2x128xf32>
      %cst_59 = arith.constant 1.000000e+00 : f32
      %208 = vector.broadcast %cst_59 : f32 to vector<2x128xf32>
      %209 = arith.addf %208, %207 : vector<2x128xf32>
      %210 = arith.divf %208, %209 : vector<2x128xf32>
      %211 = math.tanh %205 : vector<2x128xf32>
      %212 = vector.extract_strided_slice %210 {offsets = [0, 0], sizes = [2, 32], strides = [1, 1]} : vector<2x128xf32> to vector<2x32xf32>
      %213 = vector.extract_strided_slice %210 {offsets = [0, 32], sizes = [2, 32], strides = [1, 1]} : vector<2x128xf32> to vector<2x32xf32>
      %214 = vector.extract_strided_slice %211 {offsets = [0, 64], sizes = [2, 32], strides = [1, 1]} : vector<2x128xf32> to vector<2x32xf32>
      %215 = vector.extract_strided_slice %210 {offsets = [0, 96], sizes = [2, 32], strides = [1, 1]} : vector<2x128xf32> to vector<2x32xf32>
      %216 = arith.mulf %213, %191 : vector<2x32xf32>
      %217 = arith.mulf %212, %214 : vector<2x32xf32>
      %218 = arith.addf %216, %217 : vector<2x32xf32>
      %219 = math.tanh %218 : vector<2x32xf32>
      %220 = arith.mulf %215, %219 : vector<2x32xf32>
      %221 = arith.truncf %220 : vector<2x32xf32> to vector<2x32xbf16>
      %c0_60 = arith.constant 0 : index
      %222 = arith.index_cast %c7_i32 : i32 to index
      %c0_61 = arith.constant 0 : index
      %c0_62 = arith.constant 0 : index
      %223 = vector.load %arg3[%c0_60, %222, %c0_61, %c0_62] : memref<1x8x2x32xbf16, #tpu.memory_space<vmem>>, vector<1x1x2x32xbf16>
      %224 = vector.shape_cast %223 : vector<1x1x2x32xbf16> to vector<2x32xbf16>
      %225 = vector.shape_cast %221 : vector<2x32xbf16> to vector<1x1x2x32xbf16>
      tpu.vector_store %arg3[%c0_60, %222, %c0_61, %c0_62], %225 {strides = array<i32>} : memref<1x8x2x32xbf16, #tpu.memory_space<vmem>>, vector<1x1x2x32xbf16>,
      %c8_i32 = arith.constant 8 : i32
      %c0_63 = arith.constant 0 : index
      %c0_64 = arith.constant 0 : index
      %c0_65 = arith.constant 0 : index
      %226 = vector.load %arg4[%c0_63, %c0_64, %c0_65] : memref<1x2x32xf32, #tpu.memory_space<vmem>>, vector<1x2x32xf32>
      %227 = vector.shape_cast %226 : vector<1x2x32xf32> to vector<2x32xf32>
      %228 = vector.shape_cast %220 : vector<2x32xf32> to vector<1x2x32xf32>
      tpu.vector_store %arg4[%c0_63, %c0_64, %c0_65], %228 {strides = array<i32>} : memref<1x2x32xf32, #tpu.memory_space<vmem>>, vector<1x2x32xf32>,
    } else {
    }
    %c1_i32 = arith.constant 1 : i32
    %7 = arith.cmpi eq, %arg0, %c1_i32 : i32
    %8 = arith.extui %7 : i1 to i32
    %c0_i32_4 = arith.constant 0 : i32
    %9 = arith.cmpi ne, %8, %c0_i32_4 : i32
    scf.if %9 {
      %c0_i32_5 = arith.constant 0 : i32
      %c7_i32 = arith.constant 7 : i32
      %10 = arith.subi %c7_i32, %c0_i32_5 : i32
      %11 = arith.index_cast %10 : i32 to index
      %c0_6 = arith.constant 0 : index
      %c0_7 = arith.constant 0 : index
      %12 = vector.load %arg1[%11, %c0_6, %c0_7] : memref<8x2x128xbf16, #tpu.memory_space<vmem>>, vector<1x2x128xbf16>
      %13 = vector.shape_cast %12 : vector<1x2x128xbf16> to vector<2x128xbf16>
      %14 = arith.extf %13 : vector<2x128xbf16> to vector<2x128xf32>
      %15 = arith.truncf %2 : vector<2x32xf32> to vector<2x32xbf16>
      %cst_8 = arith.constant dense<0.000000e+00> : vector<2x128xf32>
      %16 = tpu.matmul %15, %1, %cst_8 {dimension_numbers = #tpu.dot_dimension_numbers<[1], [0], [0], [1], [0, 0, 1, 1], [], []>} : vector<2x32xbf16>, vector<32x128xbf16>, vector<2x128xf32> -> vector<2x128xf32>
      %17 = arith.addf %14, %16 : vector<2x128xf32>
      %18 = arith.negf %17 : vector<2x128xf32>
      %19 = math.exp %18 : vector<2x128xf32>
      %cst_9 = arith.constant 1.000000e+00 : f32
      %20 = vector.broadcast %cst_9 : f32 to vector<2x128xf32>
      %21 = arith.addf %20, %19 : vector<2x128xf32>
      %22 = arith.divf %20, %21 : vector<2x128xf32>
      %23 = math.tanh %17 : vector<2x128xf32>
      %24 = vector.extract_strided_slice %22 {offsets = [0, 0], sizes = [2, 32], strides = [1, 1]} : vector<2x128xf32> to vector<2x32xf32>
      %25 = vector.extract_strided_slice %22 {offsets = [0, 32], sizes = [2, 32], strides = [1, 1]} : vector<2x128xf32> to vector<2x32xf32>
      %26 = vector.extract_strided_slice %23 {offsets = [0, 64], sizes = [2, 32], strides = [1, 1]} : vector<2x128xf32> to vector<2x32xf32>
      %27 = vector.extract_strided_slice %22 {offsets = [0, 96], sizes = [2, 32], strides = [1, 1]} : vector<2x128xf32> to vector<2x32xf32>
      %28 = arith.mulf %25, %3 : vector<2x32xf32>
      %29 = arith.mulf %24, %26 : vector<2x32xf32>
      %30 = arith.addf %28, %29 : vector<2x32xf32>
      %31 = math.tanh %30 : vector<2x32xf32>
      %32 = arith.mulf %27, %31 : vector<2x32xf32>
      %33 = arith.truncf %32 : vector<2x32xf32> to vector<2x32xbf16>
      %c0_10 = arith.constant 0 : index
      %34 = arith.index_cast %10 : i32 to index
      %c0_11 = arith.constant 0 : index
      %c0_12 = arith.constant 0 : index
      %35 = vector.load %arg3[%c0_10, %34, %c0_11, %c0_12] : memref<1x8x2x32xbf16, #tpu.memory_space<vmem>>, vector<1x1x2x32xbf16>
      %36 = vector.shape_cast %35 : vector<1x1x2x32xbf16> to vector<2x32xbf16>
      %37 = vector.shape_cast %33 : vector<2x32xbf16> to vector<1x1x2x32xbf16>
      tpu.vector_store %arg3[%c0_10, %34, %c0_11, %c0_12], %37 {strides = array<i32>} : memref<1x8x2x32xbf16, #tpu.memory_space<vmem>>, vector<1x1x2x32xbf16>,
      %c1_i32_13 = arith.constant 1 : i32
      %c7_i32_14 = arith.constant 7 : i32
      %38 = arith.subi %c7_i32_14, %c1_i32_13 : i32
      %39 = arith.index_cast %38 : i32 to index
      %c0_15 = arith.constant 0 : index
      %c0_16 = arith.constant 0 : index
      %40 = vector.load %arg1[%39, %c0_15, %c0_16] : memref<8x2x128xbf16, #tpu.memory_space<vmem>>, vector<1x2x128xbf16>
      %41 = vector.shape_cast %40 : vector<1x2x128xbf16> to vector<2x128xbf16>
      %42 = arith.extf %41 : vector<2x128xbf16> to vector<2x128xf32>
      %43 = arith.truncf %32 : vector<2x32xf32> to vector<2x32xbf16>
      %cst_17 = arith.constant dense<0.000000e+00> : vector<2x128xf32>
      %44 = tpu.matmul %43, %1, %cst_17 {dimension_numbers = #tpu.dot_dimension_numbers<[1], [0], [0], [1], [0, 0, 1, 1], [], []>} : vector<2x32xbf16>, vector<32x128xbf16>, vector<2x128xf32> -> vector<2x128xf32>
      %45 = arith.addf %42, %44 : vector<2x128xf32>
      %46 = arith.negf %45 : vector<2x128xf32>
      %47 = math.exp %46 : vector<2x128xf32>
      %cst_18 = arith.constant 1.000000e+00 : f32
      %48 = vector.broadcast %cst_18 : f32 to vector<2x128xf32>
      %49 = arith.addf %48, %47 : vector<2x128xf32>
      %50 = arith.divf %48, %49 : vector<2x128xf32>
      %51 = math.tanh %45 : vector<2x128xf32>
      %52 = vector.extract_strided_slice %50 {offsets = [0, 0], sizes = [2, 32], strides = [1, 1]} : vector<2x128xf32> to vector<2x32xf32>
      %53 = vector.extract_strided_slice %50 {offsets = [0, 32], sizes = [2, 32], strides = [1, 1]} : vector<2x128xf32> to vector<2x32xf32>
      %54 = vector.extract_strided_slice %51 {offsets = [0, 64], sizes = [2, 32], strides = [1, 1]} : vector<2x128xf32> to vector<2x32xf32>
      %55 = vector.extract_strided_slice %50 {offsets = [0, 96], sizes = [2, 32], strides = [1, 1]} : vector<2x128xf32> to vector<2x32xf32>
      %56 = arith.mulf %53, %30 : vector<2x32xf32>
      %57 = arith.mulf %52, %54 : vector<2x32xf32>
      %58 = arith.addf %56, %57 : vector<2x32xf32>
      %59 = math.tanh %58 : vector<2x32xf32>
      %60 = arith.mulf %55, %59 : vector<2x32xf32>
      %61 = arith.truncf %60 : vector<2x32xf32> to vector<2x32xbf16>
      %c0_19 = arith.constant 0 : index
      %62 = arith.index_cast %38 : i32 to index
      %c0_20 = arith.constant 0 : index
      %c0_21 = arith.constant 0 : index
      %63 = vector.load %arg3[%c0_19, %62, %c0_20, %c0_21] : memref<1x8x2x32xbf16, #tpu.memory_space<vmem>>, vector<1x1x2x32xbf16>
      %64 = vector.shape_cast %63 : vector<1x1x2x32xbf16> to vector<2x32xbf16>
      %65 = vector.shape_cast %61 : vector<2x32xbf16> to vector<1x1x2x32xbf16>
      tpu.vector_store %arg3[%c0_19, %62, %c0_20, %c0_21], %65 {strides = array<i32>} : memref<1x8x2x32xbf16, #tpu.memory_space<vmem>>, vector<1x1x2x32xbf16>,
      %c2_i32 = arith.constant 2 : i32
      %c7_i32_22 = arith.constant 7 : i32
      %66 = arith.subi %c7_i32_22, %c2_i32 : i32
      %67 = arith.index_cast %66 : i32 to index
      %c0_23 = arith.constant 0 : index
      %c0_24 = arith.constant 0 : index
      %68 = vector.load %arg1[%67, %c0_23, %c0_24] : memref<8x2x128xbf16, #tpu.memory_space<vmem>>, vector<1x2x128xbf16>
      %69 = vector.shape_cast %68 : vector<1x2x128xbf16> to vector<2x128xbf16>
      %70 = arith.extf %69 : vector<2x128xbf16> to vector<2x128xf32>
      %71 = arith.truncf %60 : vector<2x32xf32> to vector<2x32xbf16>
      %cst_25 = arith.constant dense<0.000000e+00> : vector<2x128xf32>
      %72 = tpu.matmul %71, %1, %cst_25 {dimension_numbers = #tpu.dot_dimension_numbers<[1], [0], [0], [1], [0, 0, 1, 1], [], []>} : vector<2x32xbf16>, vector<32x128xbf16>, vector<2x128xf32> -> vector<2x128xf32>
      %73 = arith.addf %70, %72 : vector<2x128xf32>
      %74 = arith.negf %73 : vector<2x128xf32>
      %75 = math.exp %74 : vector<2x128xf32>
      %cst_26 = arith.constant 1.000000e+00 : f32
      %76 = vector.broadcast %cst_26 : f32 to vector<2x128xf32>
      %77 = arith.addf %76, %75 : vector<2x128xf32>
      %78 = arith.divf %76, %77 : vector<2x128xf32>
      %79 = math.tanh %73 : vector<2x128xf32>
      %80 = vector.extract_strided_slice %78 {offsets = [0, 0], sizes = [2, 32], strides = [1, 1]} : vector<2x128xf32> to vector<2x32xf32>
      %81 = vector.extract_strided_slice %78 {offsets = [0, 32], sizes = [2, 32], strides = [1, 1]} : vector<2x128xf32> to vector<2x32xf32>
      %82 = vector.extract_strided_slice %79 {offsets = [0, 64], sizes = [2, 32], strides = [1, 1]} : vector<2x128xf32> to vector<2x32xf32>
      %83 = vector.extract_strided_slice %78 {offsets = [0, 96], sizes = [2, 32], strides = [1, 1]} : vector<2x128xf32> to vector<2x32xf32>
      %84 = arith.mulf %81, %58 : vector<2x32xf32>
      %85 = arith.mulf %80, %82 : vector<2x32xf32>
      %86 = arith.addf %84, %85 : vector<2x32xf32>
      %87 = math.tanh %86 : vector<2x32xf32>
      %88 = arith.mulf %83, %87 : vector<2x32xf32>
      %89 = arith.truncf %88 : vector<2x32xf32> to vector<2x32xbf16>
      %c0_27 = arith.constant 0 : index
      %90 = arith.index_cast %66 : i32 to index
      %c0_28 = arith.constant 0 : index
      %c0_29 = arith.constant 0 : index
      %91 = vector.load %arg3[%c0_27, %90, %c0_28, %c0_29] : memref<1x8x2x32xbf16, #tpu.memory_space<vmem>>, vector<1x1x2x32xbf16>
      %92 = vector.shape_cast %91 : vector<1x1x2x32xbf16> to vector<2x32xbf16>
      %93 = vector.shape_cast %89 : vector<2x32xbf16> to vector<1x1x2x32xbf16>
      tpu.vector_store %arg3[%c0_27, %90, %c0_28, %c0_29], %93 {strides = array<i32>} : memref<1x8x2x32xbf16, #tpu.memory_space<vmem>>, vector<1x1x2x32xbf16>,
      %c3_i32 = arith.constant 3 : i32
      %c7_i32_30 = arith.constant 7 : i32
      %94 = arith.subi %c7_i32_30, %c3_i32 : i32
      %95 = arith.index_cast %94 : i32 to index
      %c0_31 = arith.constant 0 : index
      %c0_32 = arith.constant 0 : index
      %96 = vector.load %arg1[%95, %c0_31, %c0_32] : memref<8x2x128xbf16, #tpu.memory_space<vmem>>, vector<1x2x128xbf16>
      %97 = vector.shape_cast %96 : vector<1x2x128xbf16> to vector<2x128xbf16>
      %98 = arith.extf %97 : vector<2x128xbf16> to vector<2x128xf32>
      %99 = arith.truncf %88 : vector<2x32xf32> to vector<2x32xbf16>
      %cst_33 = arith.constant dense<0.000000e+00> : vector<2x128xf32>
      %100 = tpu.matmul %99, %1, %cst_33 {dimension_numbers = #tpu.dot_dimension_numbers<[1], [0], [0], [1], [0, 0, 1, 1], [], []>} : vector<2x32xbf16>, vector<32x128xbf16>, vector<2x128xf32> -> vector<2x128xf32>
      %101 = arith.addf %98, %100 : vector<2x128xf32>
      %102 = arith.negf %101 : vector<2x128xf32>
      %103 = math.exp %102 : vector<2x128xf32>
      %cst_34 = arith.constant 1.000000e+00 : f32
      %104 = vector.broadcast %cst_34 : f32 to vector<2x128xf32>
      %105 = arith.addf %104, %103 : vector<2x128xf32>
      %106 = arith.divf %104, %105 : vector<2x128xf32>
      %107 = math.tanh %101 : vector<2x128xf32>
      %108 = vector.extract_strided_slice %106 {offsets = [0, 0], sizes = [2, 32], strides = [1, 1]} : vector<2x128xf32> to vector<2x32xf32>
      %109 = vector.extract_strided_slice %106 {offsets = [0, 32], sizes = [2, 32], strides = [1, 1]} : vector<2x128xf32> to vector<2x32xf32>
      %110 = vector.extract_strided_slice %107 {offsets = [0, 64], sizes = [2, 32], strides = [1, 1]} : vector<2x128xf32> to vector<2x32xf32>
      %111 = vector.extract_strided_slice %106 {offsets = [0, 96], sizes = [2, 32], strides = [1, 1]} : vector<2x128xf32> to vector<2x32xf32>
      %112 = arith.mulf %109, %86 : vector<2x32xf32>
      %113 = arith.mulf %108, %110 : vector<2x32xf32>
      %114 = arith.addf %112, %113 : vector<2x32xf32>
      %115 = math.tanh %114 : vector<2x32xf32>
      %116 = arith.mulf %111, %115 : vector<2x32xf32>
      %117 = arith.truncf %116 : vector<2x32xf32> to vector<2x32xbf16>
      %c0_35 = arith.constant 0 : index
      %118 = arith.index_cast %94 : i32 to index
      %c0_36 = arith.constant 0 : index
      %c0_37 = arith.constant 0 : index
      %119 = vector.load %arg3[%c0_35, %118, %c0_36, %c0_37] : memref<1x8x2x32xbf16, #tpu.memory_space<vmem>>, vector<1x1x2x32xbf16>
      %120 = vector.shape_cast %119 : vector<1x1x2x32xbf16> to vector<2x32xbf16>
      %121 = vector.shape_cast %117 : vector<2x32xbf16> to vector<1x1x2x32xbf16>
      tpu.vector_store %arg3[%c0_35, %118, %c0_36, %c0_37], %121 {strides = array<i32>} : memref<1x8x2x32xbf16, #tpu.memory_space<vmem>>, vector<1x1x2x32xbf16>,
      %c4_i32 = arith.constant 4 : i32
      %c7_i32_38 = arith.constant 7 : i32
      %122 = arith.subi %c7_i32_38, %c4_i32 : i32
      %123 = arith.index_cast %122 : i32 to index
      %c0_39 = arith.constant 0 : index
      %c0_40 = arith.constant 0 : index
      %124 = vector.load %arg1[%123, %c0_39, %c0_40] : memref<8x2x128xbf16, #tpu.memory_space<vmem>>, vector<1x2x128xbf16>
      %125 = vector.shape_cast %124 : vector<1x2x128xbf16> to vector<2x128xbf16>
      %126 = arith.extf %125 : vector<2x128xbf16> to vector<2x128xf32>
      %127 = arith.truncf %116 : vector<2x32xf32> to vector<2x32xbf16>
      %cst_41 = arith.constant dense<0.000000e+00> : vector<2x128xf32>
      %128 = tpu.matmul %127, %1, %cst_41 {dimension_numbers = #tpu.dot_dimension_numbers<[1], [0], [0], [1], [0, 0, 1, 1], [], []>} : vector<2x32xbf16>, vector<32x128xbf16>, vector<2x128xf32> -> vector<2x128xf32>
      %129 = arith.addf %126, %128 : vector<2x128xf32>
      %130 = arith.negf %129 : vector<2x128xf32>
      %131 = math.exp %130 : vector<2x128xf32>
      %cst_42 = arith.constant 1.000000e+00 : f32
      %132 = vector.broadcast %cst_42 : f32 to vector<2x128xf32>
      %133 = arith.addf %132, %131 : vector<2x128xf32>
      %134 = arith.divf %132, %133 : vector<2x128xf32>
      %135 = math.tanh %129 : vector<2x128xf32>
      %136 = vector.extract_strided_slice %134 {offsets = [0, 0], sizes = [2, 32], strides = [1, 1]} : vector<2x128xf32> to vector<2x32xf32>
      %137 = vector.extract_strided_slice %134 {offsets = [0, 32], sizes = [2, 32], strides = [1, 1]} : vector<2x128xf32> to vector<2x32xf32>
      %138 = vector.extract_strided_slice %135 {offsets = [0, 64], sizes = [2, 32], strides = [1, 1]} : vector<2x128xf32> to vector<2x32xf32>
      %139 = vector.extract_strided_slice %134 {offsets = [0, 96], sizes = [2, 32], strides = [1, 1]} : vector<2x128xf32> to vector<2x32xf32>
      %140 = arith.mulf %137, %114 : vector<2x32xf32>
      %141 = arith.mulf %136, %138 : vector<2x32xf32>
      %142 = arith.addf %140, %141 : vector<2x32xf32>
      %143 = math.tanh %142 : vector<2x32xf32>
      %144 = arith.mulf %139, %143 : vector<2x32xf32>
      %145 = arith.truncf %144 : vector<2x32xf32> to vector<2x32xbf16>
      %c0_43 = arith.constant 0 : index
      %146 = arith.index_cast %122 : i32 to index
      %c0_44 = arith.constant 0 : index
      %c0_45 = arith.constant 0 : index
      %147 = vector.load %arg3[%c0_43, %146, %c0_44, %c0_45] : memref<1x8x2x32xbf16, #tpu.memory_space<vmem>>, vector<1x1x2x32xbf16>
      %148 = vector.shape_cast %147 : vector<1x1x2x32xbf16> to vector<2x32xbf16>
      %149 = vector.shape_cast %145 : vector<2x32xbf16> to vector<1x1x2x32xbf16>
      tpu.vector_store %arg3[%c0_43, %146, %c0_44, %c0_45], %149 {strides = array<i32>} : memref<1x8x2x32xbf16, #tpu.memory_space<vmem>>, vector<1x1x2x32xbf16>,
      %c5_i32 = arith.constant 5 : i32
      %c7_i32_46 = arith.constant 7 : i32
      %150 = arith.subi %c7_i32_46, %c5_i32 : i32
      %151 = arith.index_cast %150 : i32 to index
      %c0_47 = arith.constant 0 : index
      %c0_48 = arith.constant 0 : index
      %152 = vector.load %arg1[%151, %c0_47, %c0_48] : memref<8x2x128xbf16, #tpu.memory_space<vmem>>, vector<1x2x128xbf16>
      %153 = vector.shape_cast %152 : vector<1x2x128xbf16> to vector<2x128xbf16>
      %154 = arith.extf %153 : vector<2x128xbf16> to vector<2x128xf32>
      %155 = arith.truncf %144 : vector<2x32xf32> to vector<2x32xbf16>
      %cst_49 = arith.constant dense<0.000000e+00> : vector<2x128xf32>
      %156 = tpu.matmul %155, %1, %cst_49 {dimension_numbers = #tpu.dot_dimension_numbers<[1], [0], [0], [1], [0, 0, 1, 1], [], []>} : vector<2x32xbf16>, vector<32x128xbf16>, vector<2x128xf32> -> vector<2x128xf32>
      %157 = arith.addf %154, %156 : vector<2x128xf32>
      %158 = arith.negf %157 : vector<2x128xf32>
      %159 = math.exp %158 : vector<2x128xf32>
      %cst_50 = arith.constant 1.000000e+00 : f32
      %160 = vector.broadcast %cst_50 : f32 to vector<2x128xf32>
      %161 = arith.addf %160, %159 : vector<2x128xf32>
      %162 = arith.divf %160, %161 : vector<2x128xf32>
      %163 = math.tanh %157 : vector<2x128xf32>
      %164 = vector.extract_strided_slice %162 {offsets = [0, 0], sizes = [2, 32], strides = [1, 1]} : vector<2x128xf32> to vector<2x32xf32>
      %165 = vector.extract_strided_slice %162 {offsets = [0, 32], sizes = [2, 32], strides = [1, 1]} : vector<2x128xf32> to vector<2x32xf32>
      %166 = vector.extract_strided_slice %163 {offsets = [0, 64], sizes = [2, 32], strides = [1, 1]} : vector<2x128xf32> to vector<2x32xf32>
      %167 = vector.extract_strided_slice %162 {offsets = [0, 96], sizes = [2, 32], strides = [1, 1]} : vector<2x128xf32> to vector<2x32xf32>
      %168 = arith.mulf %165, %142 : vector<2x32xf32>
      %169 = arith.mulf %164, %166 : vector<2x32xf32>
      %170 = arith.addf %168, %169 : vector<2x32xf32>
      %171 = math.tanh %170 : vector<2x32xf32>
      %172 = arith.mulf %167, %171 : vector<2x32xf32>
      %173 = arith.truncf %172 : vector<2x32xf32> to vector<2x32xbf16>
      %c0_51 = arith.constant 0 : index
      %174 = arith.index_cast %150 : i32 to index
      %c0_52 = arith.constant 0 : index
      %c0_53 = arith.constant 0 : index
      %175 = vector.load %arg3[%c0_51, %174, %c0_52, %c0_53] : memref<1x8x2x32xbf16, #tpu.memory_space<vmem>>, vector<1x1x2x32xbf16>
      %176 = vector.shape_cast %175 : vector<1x1x2x32xbf16> to vector<2x32xbf16>
      %177 = vector.shape_cast %173 : vector<2x32xbf16> to vector<1x1x2x32xbf16>
      tpu.vector_store %arg3[%c0_51, %174, %c0_52, %c0_53], %177 {strides = array<i32>} : memref<1x8x2x32xbf16, #tpu.memory_space<vmem>>, vector<1x1x2x32xbf16>,
      %c6_i32 = arith.constant 6 : i32
      %c7_i32_54 = arith.constant 7 : i32
      %178 = arith.subi %c7_i32_54, %c6_i32 : i32
      %179 = arith.index_cast %178 : i32 to index
      %c0_55 = arith.constant 0 : index
      %c0_56 = arith.constant 0 : index
      %180 = vector.load %arg1[%179, %c0_55, %c0_56] : memref<8x2x128xbf16, #tpu.memory_space<vmem>>, vector<1x2x128xbf16>
      %181 = vector.shape_cast %180 : vector<1x2x128xbf16> to vector<2x128xbf16>
      %182 = arith.extf %181 : vector<2x128xbf16> to vector<2x128xf32>
      %183 = arith.truncf %172 : vector<2x32xf32> to vector<2x32xbf16>
      %cst_57 = arith.constant dense<0.000000e+00> : vector<2x128xf32>
      %184 = tpu.matmul %183, %1, %cst_57 {dimension_numbers = #tpu.dot_dimension_numbers<[1], [0], [0], [1], [0, 0, 1, 1], [], []>} : vector<2x32xbf16>, vector<32x128xbf16>, vector<2x128xf32> -> vector<2x128xf32>
      %185 = arith.addf %182, %184 : vector<2x128xf32>
      %186 = arith.negf %185 : vector<2x128xf32>
      %187 = math.exp %186 : vector<2x128xf32>
      %cst_58 = arith.constant 1.000000e+00 : f32
      %188 = vector.broadcast %cst_58 : f32 to vector<2x128xf32>
      %189 = arith.addf %188, %187 : vector<2x128xf32>
      %190 = arith.divf %188, %189 : vector<2x128xf32>
      %191 = math.tanh %185 : vector<2x128xf32>
      %192 = vector.extract_strided_slice %190 {offsets = [0, 0], sizes = [2, 32], strides = [1, 1]} : vector<2x128xf32> to vector<2x32xf32>
      %193 = vector.extract_strided_slice %190 {offsets = [0, 32], sizes = [2, 32], strides = [1, 1]} : vector<2x128xf32> to vector<2x32xf32>
      %194 = vector.extract_strided_slice %191 {offsets = [0, 64], sizes = [2, 32], strides = [1, 1]} : vector<2x128xf32> to vector<2x32xf32>
      %195 = vector.extract_strided_slice %190 {offsets = [0, 96], sizes = [2, 32], strides = [1, 1]} : vector<2x128xf32> to vector<2x32xf32>
      %196 = arith.mulf %193, %170 : vector<2x32xf32>
      %197 = arith.mulf %192, %194 : vector<2x32xf32>
      %198 = arith.addf %196, %197 : vector<2x32xf32>
      %199 = math.tanh %198 : vector<2x32xf32>
      %200 = arith.mulf %195, %199 : vector<2x32xf32>
      %201 = arith.truncf %200 : vector<2x32xf32> to vector<2x32xbf16>
      %c0_59 = arith.constant 0 : index
      %202 = arith.index_cast %178 : i32 to index
      %c0_60 = arith.constant 0 : index
      %c0_61 = arith.constant 0 : index
      %203 = vector.load %arg3[%c0_59, %202, %c0_60, %c0_61] : memref<1x8x2x32xbf16, #tpu.memory_space<vmem>>, vector<1x1x2x32xbf16>
      %204 = vector.shape_cast %203 : vector<1x1x2x32xbf16> to vector<2x32xbf16>
      %205 = vector.shape_cast %201 : vector<2x32xbf16> to vector<1x1x2x32xbf16>
      tpu.vector_store %arg3[%c0_59, %202, %c0_60, %c0_61], %205 {strides = array<i32>} : memref<1x8x2x32xbf16, #tpu.memory_space<vmem>>, vector<1x1x2x32xbf16>,
      %c7_i32_62 = arith.constant 7 : i32
      %c7_i32_63 = arith.constant 7 : i32
      %206 = arith.subi %c7_i32_63, %c7_i32_62 : i32
      %207 = arith.index_cast %206 : i32 to index
      %c0_64 = arith.constant 0 : index
      %c0_65 = arith.constant 0 : index
      %208 = vector.load %arg1[%207, %c0_64, %c0_65] : memref<8x2x128xbf16, #tpu.memory_space<vmem>>, vector<1x2x128xbf16>
      %209 = vector.shape_cast %208 : vector<1x2x128xbf16> to vector<2x128xbf16>
      %210 = arith.extf %209 : vector<2x128xbf16> to vector<2x128xf32>
      %211 = arith.truncf %200 : vector<2x32xf32> to vector<2x32xbf16>
      %cst_66 = arith.constant dense<0.000000e+00> : vector<2x128xf32>
      %212 = tpu.matmul %211, %1, %cst_66 {dimension_numbers = #tpu.dot_dimension_numbers<[1], [0], [0], [1], [0, 0, 1, 1], [], []>} : vector<2x32xbf16>, vector<32x128xbf16>, vector<2x128xf32> -> vector<2x128xf32>
      %213 = arith.addf %210, %212 : vector<2x128xf32>
      %214 = arith.negf %213 : vector<2x128xf32>
      %215 = math.exp %214 : vector<2x128xf32>
      %cst_67 = arith.constant 1.000000e+00 : f32
      %216 = vector.broadcast %cst_67 : f32 to vector<2x128xf32>
      %217 = arith.addf %216, %215 : vector<2x128xf32>
      %218 = arith.divf %216, %217 : vector<2x128xf32>
      %219 = math.tanh %213 : vector<2x128xf32>
      %220 = vector.extract_strided_slice %218 {offsets = [0, 0], sizes = [2, 32], strides = [1, 1]} : vector<2x128xf32> to vector<2x32xf32>
      %221 = vector.extract_strided_slice %218 {offsets = [0, 32], sizes = [2, 32], strides = [1, 1]} : vector<2x128xf32> to vector<2x32xf32>
      %222 = vector.extract_strided_slice %219 {offsets = [0, 64], sizes = [2, 32], strides = [1, 1]} : vector<2x128xf32> to vector<2x32xf32>
      %223 = vector.extract_strided_slice %218 {offsets = [0, 96], sizes = [2, 32], strides = [1, 1]} : vector<2x128xf32> to vector<2x32xf32>
      %224 = arith.mulf %221, %198 : vector<2x32xf32>
      %225 = arith.mulf %220, %222 : vector<2x32xf32>
      %226 = arith.addf %224, %225 : vector<2x32xf32>
      %227 = math.tanh %226 : vector<2x32xf32>
      %228 = arith.mulf %223, %227 : vector<2x32xf32>
      %229 = arith.truncf %228 : vector<2x32xf32> to vector<2x32xbf16>
      %c0_68 = arith.constant 0 : index
      %230 = arith.index_cast %206 : i32 to index
      %c0_69 = arith.constant 0 : index
      %c0_70 = arith.constant 0 : index
      %231 = vector.load %arg3[%c0_68, %230, %c0_69, %c0_70] : memref<1x8x2x32xbf16, #tpu.memory_space<vmem>>, vector<1x1x2x32xbf16>
      %232 = vector.shape_cast %231 : vector<1x1x2x32xbf16> to vector<2x32xbf16>
      %233 = vector.shape_cast %229 : vector<2x32xbf16> to vector<1x1x2x32xbf16>
      tpu.vector_store %arg3[%c0_68, %230, %c0_69, %c0_70], %233 {strides = array<i32>} : memref<1x8x2x32xbf16, #tpu.memory_space<vmem>>, vector<1x1x2x32xbf16>,
      %c8_i32 = arith.constant 8 : i32
      %c0_71 = arith.constant 0 : index
      %c0_72 = arith.constant 0 : index
      %c0_73 = arith.constant 0 : index
      %234 = vector.load %arg4[%c0_71, %c0_72, %c0_73] : memref<1x2x32xf32, #tpu.memory_space<vmem>>, vector<1x2x32xf32>
      %235 = vector.shape_cast %234 : vector<1x2x32xf32> to vector<2x32xf32>
      %236 = vector.shape_cast %228 : vector<2x32xf32> to vector<1x2x32xf32>
      tpu.vector_store %arg4[%c0_71, %c0_72, %c0_73], %236 {strides = array<i32>} : memref<1x2x32xf32, #tpu.memory_space<vmem>>, vector<1x2x32xf32>,
    } else {
    }
    return
  }
  func.func @transform_0(%arg0: i32) -> (i32, i32, i32) {
    %c0_i32 = arith.constant 0 : i32
    %c0_i32_0 = arith.constant 0 : i32
    %c0_i32_1 = arith.constant 0 : i32
    return %c0_i32, %c0_i32_0, %arg0 : i32, i32, i32
  }
  func.func @transform_1(%arg0: i32) -> (i32, i32, i32) {
    %c0_i32 = arith.constant 0 : i32
    %c0_i32_0 = arith.constant 0 : i32
    %c0_i32_1 = arith.constant 0 : i32
    return %arg0, %c0_i32, %c0_i32_0 : i32, i32, i32
  }
  func.func @transform_2(%arg0: i32) -> (i32, i32, i32, i32) {
    %c0_i32 = arith.constant 0 : i32
    %c0_i32_0 = arith.constant 0 : i32
    %c0_i32_1 = arith.constant 0 : i32
    %c0_i32_2 = arith.constant 0 : i32
    return %arg0, %c0_i32, %c0_i32_0, %c0_i32_1 : i32, i32, i32, i32
  }
  func.func @transform_3(%arg0: i32) -> (i32, i32, i32) {
    %c0_i32 = arith.constant 0 : i32
    %c0_i32_0 = arith.constant 0 : i32
    %c0_i32_1 = arith.constant 0 : i32
    return %arg0, %c0_i32, %c0_i32_0 : i32, i32, i32
  }
}

module attributes {stable_mosaic.version = 11 : i64} {
  func.func @_lstm_recurrence_kernel(%arg0: i32, %arg1: memref<8x2x128xbf16, #tpu.memory_space<vmem>>, %arg2: memref<1x32x128xbf16, #tpu.memory_space<vmem>>, %arg3: memref<1x8x2x32xf32, #tpu.memory_space<vmem>>, %arg4: memref<1x2x32xf32, #tpu.memory_space<vmem>>) attributes {dimension_semantics = [#tpu.dimension_semantics<parallel>], iteration_bounds = array<i64: 2>, scalar_prefetch = 0 : i64, scratch_operands = 0 : i64, tpu.core_type = #tpu.core_type<tc>, window_params = [{transform_indices = @transform_0, window_bounds = array<i64: 8, 2, 128>}, {transform_indices = @transform_1, window_bounds = array<i64: 1, 32, 128>}, {transform_indices = @transform_2, window_bounds = array<i64: 1, 8, 2, 32>}, {transform_indices = @transform_3, window_bounds = array<i64: 1, 2, 32>}]} {
    %c0 = arith.constant 0 : index
    %c0_0 = arith.constant 0 : index
    %c0_1 = arith.constant 0 : index
    %0 = vector.load %arg2[%c0, %c0_0, %c0_1] : memref<1x32x128xbf16, #tpu.memory_space<vmem>>, vector<1x32x128xbf16>
    %1 = vector.shape_cast %0 : vector<1x32x128xbf16> to vector<32x128xbf16>
    %cst = arith.constant 0.000000e+00 : f32
    %2 = vector.broadcast %cst : f32 to vector<2x32xf32>
    %cst_2 = arith.constant 0.000000e+00 : f32
    %3 = vector.broadcast %cst_2 : f32 to vector<2x32xf32>
    %c0_i32 = arith.constant 0 : i32
    %4 = arith.cmpi eq, %arg0, %c0_i32 : i32
    %5 = arith.extui %4 : i1 to i32
    %c0_i32_3 = arith.constant 0 : i32
    %6 = arith.cmpi ne, %5, %c0_i32_3 : i32
    scf.if %6 {
      %c0_i32_5 = arith.constant 0 : i32
      %10 = arith.index_cast %c0_i32_5 : i32 to index
      %c0_6 = arith.constant 0 : index
      %c0_7 = arith.constant 0 : index
      %11 = vector.load %arg1[%10, %c0_6, %c0_7] : memref<8x2x128xbf16, #tpu.memory_space<vmem>>, vector<1x2x128xbf16>
      %12 = vector.shape_cast %11 : vector<1x2x128xbf16> to vector<2x128xbf16>
      %13 = arith.extf %12 : vector<2x128xbf16> to vector<2x128xf32>
      %14 = arith.truncf %2 : vector<2x32xf32> to vector<2x32xbf16>
      %cst_8 = arith.constant dense<0.000000e+00> : vector<2x128xf32>
      %15 = tpu.matmul %14, %1, %cst_8 {dimension_numbers = #tpu.dot_dimension_numbers<[1], [0], [0], [1], [0, 0, 1, 1], [], []>} : vector<2x32xbf16>, vector<32x128xbf16>, vector<2x128xf32> -> vector<2x128xf32>
      %16 = arith.addf %13, %15 : vector<2x128xf32>
      %17 = arith.negf %16 : vector<2x128xf32>
      %18 = math.exp %17 : vector<2x128xf32>
      %cst_9 = arith.constant 1.000000e+00 : f32
      %19 = vector.broadcast %cst_9 : f32 to vector<2x128xf32>
      %20 = arith.addf %19, %18 : vector<2x128xf32>
      %21 = arith.divf %19, %20 : vector<2x128xf32>
      %22 = math.tanh %16 : vector<2x128xf32>
      %23 = vector.extract_strided_slice %21 {offsets = [0, 0], sizes = [2, 32], strides = [1, 1]} : vector<2x128xf32> to vector<2x32xf32>
      %24 = vector.extract_strided_slice %21 {offsets = [0, 32], sizes = [2, 32], strides = [1, 1]} : vector<2x128xf32> to vector<2x32xf32>
      %25 = vector.extract_strided_slice %22 {offsets = [0, 64], sizes = [2, 32], strides = [1, 1]} : vector<2x128xf32> to vector<2x32xf32>
      %26 = vector.extract_strided_slice %21 {offsets = [0, 96], sizes = [2, 32], strides = [1, 1]} : vector<2x128xf32> to vector<2x32xf32>
      %27 = arith.mulf %24, %3 : vector<2x32xf32>
      %28 = arith.mulf %23, %25 : vector<2x32xf32>
      %29 = arith.addf %27, %28 : vector<2x32xf32>
      %30 = math.tanh %29 : vector<2x32xf32>
      %31 = arith.mulf %26, %30 : vector<2x32xf32>
      %c0_10 = arith.constant 0 : index
      %32 = arith.index_cast %c0_i32_5 : i32 to index
      %c0_11 = arith.constant 0 : index
      %c0_12 = arith.constant 0 : index
      %33 = vector.load %arg3[%c0_10, %32, %c0_11, %c0_12] : memref<1x8x2x32xf32, #tpu.memory_space<vmem>>, vector<1x1x2x32xf32>
      %34 = vector.shape_cast %33 : vector<1x1x2x32xf32> to vector<2x32xf32>
      %35 = vector.shape_cast %31 : vector<2x32xf32> to vector<1x1x2x32xf32>
      tpu.vector_store %arg3[%c0_10, %32, %c0_11, %c0_12], %35 {strides = array<i32>} : memref<1x8x2x32xf32, #tpu.memory_space<vmem>>, vector<1x1x2x32xf32>,
      %c1_i32_13 = arith.constant 1 : i32
      %36 = arith.index_cast %c1_i32_13 : i32 to index
      %c0_14 = arith.constant 0 : index
      %c0_15 = arith.constant 0 : index
      %37 = vector.load %arg1[%36, %c0_14, %c0_15] : memref<8x2x128xbf16, #tpu.memory_space<vmem>>, vector<1x2x128xbf16>
      %38 = vector.shape_cast %37 : vector<1x2x128xbf16> to vector<2x128xbf16>
      %39 = arith.extf %38 : vector<2x128xbf16> to vector<2x128xf32>
      %40 = arith.truncf %31 : vector<2x32xf32> to vector<2x32xbf16>
      %cst_16 = arith.constant dense<0.000000e+00> : vector<2x128xf32>
      %41 = tpu.matmul %40, %1, %cst_16 {dimension_numbers = #tpu.dot_dimension_numbers<[1], [0], [0], [1], [0, 0, 1, 1], [], []>} : vector<2x32xbf16>, vector<32x128xbf16>, vector<2x128xf32> -> vector<2x128xf32>
      %42 = arith.addf %39, %41 : vector<2x128xf32>
      %43 = arith.negf %42 : vector<2x128xf32>
      %44 = math.exp %43 : vector<2x128xf32>
      %cst_17 = arith.constant 1.000000e+00 : f32
      %45 = vector.broadcast %cst_17 : f32 to vector<2x128xf32>
      %46 = arith.addf %45, %44 : vector<2x128xf32>
      %47 = arith.divf %45, %46 : vector<2x128xf32>
      %48 = math.tanh %42 : vector<2x128xf32>
      %49 = vector.extract_strided_slice %47 {offsets = [0, 0], sizes = [2, 32], strides = [1, 1]} : vector<2x128xf32> to vector<2x32xf32>
      %50 = vector.extract_strided_slice %47 {offsets = [0, 32], sizes = [2, 32], strides = [1, 1]} : vector<2x128xf32> to vector<2x32xf32>
      %51 = vector.extract_strided_slice %48 {offsets = [0, 64], sizes = [2, 32], strides = [1, 1]} : vector<2x128xf32> to vector<2x32xf32>
      %52 = vector.extract_strided_slice %47 {offsets = [0, 96], sizes = [2, 32], strides = [1, 1]} : vector<2x128xf32> to vector<2x32xf32>
      %53 = arith.mulf %50, %29 : vector<2x32xf32>
      %54 = arith.mulf %49, %51 : vector<2x32xf32>
      %55 = arith.addf %53, %54 : vector<2x32xf32>
      %56 = math.tanh %55 : vector<2x32xf32>
      %57 = arith.mulf %52, %56 : vector<2x32xf32>
      %c0_18 = arith.constant 0 : index
      %58 = arith.index_cast %c1_i32_13 : i32 to index
      %c0_19 = arith.constant 0 : index
      %c0_20 = arith.constant 0 : index
      %59 = vector.load %arg3[%c0_18, %58, %c0_19, %c0_20] : memref<1x8x2x32xf32, #tpu.memory_space<vmem>>, vector<1x1x2x32xf32>
      %60 = vector.shape_cast %59 : vector<1x1x2x32xf32> to vector<2x32xf32>
      %61 = vector.shape_cast %57 : vector<2x32xf32> to vector<1x1x2x32xf32>
      tpu.vector_store %arg3[%c0_18, %58, %c0_19, %c0_20], %61 {strides = array<i32>} : memref<1x8x2x32xf32, #tpu.memory_space<vmem>>, vector<1x1x2x32xf32>,
      %c2_i32 = arith.constant 2 : i32
      %62 = arith.index_cast %c2_i32 : i32 to index
      %c0_21 = arith.constant 0 : index
      %c0_22 = arith.constant 0 : index
      %63 = vector.load %arg1[%62, %c0_21, %c0_22] : memref<8x2x128xbf16, #tpu.memory_space<vmem>>, vector<1x2x128xbf16>
      %64 = vector.shape_cast %63 : vector<1x2x128xbf16> to vector<2x128xbf16>
      %65 = arith.extf %64 : vector<2x128xbf16> to vector<2x128xf32>
      %66 = arith.truncf %57 : vector<2x32xf32> to vector<2x32xbf16>
      %cst_23 = arith.constant dense<0.000000e+00> : vector<2x128xf32>
      %67 = tpu.matmul %66, %1, %cst_23 {dimension_numbers = #tpu.dot_dimension_numbers<[1], [0], [0], [1], [0, 0, 1, 1], [], []>} : vector<2x32xbf16>, vector<32x128xbf16>, vector<2x128xf32> -> vector<2x128xf32>
      %68 = arith.addf %65, %67 : vector<2x128xf32>
      %69 = arith.negf %68 : vector<2x128xf32>
      %70 = math.exp %69 : vector<2x128xf32>
      %cst_24 = arith.constant 1.000000e+00 : f32
      %71 = vector.broadcast %cst_24 : f32 to vector<2x128xf32>
      %72 = arith.addf %71, %70 : vector<2x128xf32>
      %73 = arith.divf %71, %72 : vector<2x128xf32>
      %74 = math.tanh %68 : vector<2x128xf32>
      %75 = vector.extract_strided_slice %73 {offsets = [0, 0], sizes = [2, 32], strides = [1, 1]} : vector<2x128xf32> to vector<2x32xf32>
      %76 = vector.extract_strided_slice %73 {offsets = [0, 32], sizes = [2, 32], strides = [1, 1]} : vector<2x128xf32> to vector<2x32xf32>
      %77 = vector.extract_strided_slice %74 {offsets = [0, 64], sizes = [2, 32], strides = [1, 1]} : vector<2x128xf32> to vector<2x32xf32>
      %78 = vector.extract_strided_slice %73 {offsets = [0, 96], sizes = [2, 32], strides = [1, 1]} : vector<2x128xf32> to vector<2x32xf32>
      %79 = arith.mulf %76, %55 : vector<2x32xf32>
      %80 = arith.mulf %75, %77 : vector<2x32xf32>
      %81 = arith.addf %79, %80 : vector<2x32xf32>
      %82 = math.tanh %81 : vector<2x32xf32>
      %83 = arith.mulf %78, %82 : vector<2x32xf32>
      %c0_25 = arith.constant 0 : index
      %84 = arith.index_cast %c2_i32 : i32 to index
      %c0_26 = arith.constant 0 : index
      %c0_27 = arith.constant 0 : index
      %85 = vector.load %arg3[%c0_25, %84, %c0_26, %c0_27] : memref<1x8x2x32xf32, #tpu.memory_space<vmem>>, vector<1x1x2x32xf32>
      %86 = vector.shape_cast %85 : vector<1x1x2x32xf32> to vector<2x32xf32>
      %87 = vector.shape_cast %83 : vector<2x32xf32> to vector<1x1x2x32xf32>
      tpu.vector_store %arg3[%c0_25, %84, %c0_26, %c0_27], %87 {strides = array<i32>} : memref<1x8x2x32xf32, #tpu.memory_space<vmem>>, vector<1x1x2x32xf32>,
      %c3_i32 = arith.constant 3 : i32
      %88 = arith.index_cast %c3_i32 : i32 to index
      %c0_28 = arith.constant 0 : index
      %c0_29 = arith.constant 0 : index
      %89 = vector.load %arg1[%88, %c0_28, %c0_29] : memref<8x2x128xbf16, #tpu.memory_space<vmem>>, vector<1x2x128xbf16>
      %90 = vector.shape_cast %89 : vector<1x2x128xbf16> to vector<2x128xbf16>
      %91 = arith.extf %90 : vector<2x128xbf16> to vector<2x128xf32>
      %92 = arith.truncf %83 : vector<2x32xf32> to vector<2x32xbf16>
      %cst_30 = arith.constant dense<0.000000e+00> : vector<2x128xf32>
      %93 = tpu.matmul %92, %1, %cst_30 {dimension_numbers = #tpu.dot_dimension_numbers<[1], [0], [0], [1], [0, 0, 1, 1], [], []>} : vector<2x32xbf16>, vector<32x128xbf16>, vector<2x128xf32> -> vector<2x128xf32>
      %94 = arith.addf %91, %93 : vector<2x128xf32>
      %95 = arith.negf %94 : vector<2x128xf32>
      %96 = math.exp %95 : vector<2x128xf32>
      %cst_31 = arith.constant 1.000000e+00 : f32
      %97 = vector.broadcast %cst_31 : f32 to vector<2x128xf32>
      %98 = arith.addf %97, %96 : vector<2x128xf32>
      %99 = arith.divf %97, %98 : vector<2x128xf32>
      %100 = math.tanh %94 : vector<2x128xf32>
      %101 = vector.extract_strided_slice %99 {offsets = [0, 0], sizes = [2, 32], strides = [1, 1]} : vector<2x128xf32> to vector<2x32xf32>
      %102 = vector.extract_strided_slice %99 {offsets = [0, 32], sizes = [2, 32], strides = [1, 1]} : vector<2x128xf32> to vector<2x32xf32>
      %103 = vector.extract_strided_slice %100 {offsets = [0, 64], sizes = [2, 32], strides = [1, 1]} : vector<2x128xf32> to vector<2x32xf32>
      %104 = vector.extract_strided_slice %99 {offsets = [0, 96], sizes = [2, 32], strides = [1, 1]} : vector<2x128xf32> to vector<2x32xf32>
      %105 = arith.mulf %102, %81 : vector<2x32xf32>
      %106 = arith.mulf %101, %103 : vector<2x32xf32>
      %107 = arith.addf %105, %106 : vector<2x32xf32>
      %108 = math.tanh %107 : vector<2x32xf32>
      %109 = arith.mulf %104, %108 : vector<2x32xf32>
      %c0_32 = arith.constant 0 : index
      %110 = arith.index_cast %c3_i32 : i32 to index
      %c0_33 = arith.constant 0 : index
      %c0_34 = arith.constant 0 : index
      %111 = vector.load %arg3[%c0_32, %110, %c0_33, %c0_34] : memref<1x8x2x32xf32, #tpu.memory_space<vmem>>, vector<1x1x2x32xf32>
      %112 = vector.shape_cast %111 : vector<1x1x2x32xf32> to vector<2x32xf32>
      %113 = vector.shape_cast %109 : vector<2x32xf32> to vector<1x1x2x32xf32>
      tpu.vector_store %arg3[%c0_32, %110, %c0_33, %c0_34], %113 {strides = array<i32>} : memref<1x8x2x32xf32, #tpu.memory_space<vmem>>, vector<1x1x2x32xf32>,
      %c4_i32 = arith.constant 4 : i32
      %114 = arith.index_cast %c4_i32 : i32 to index
      %c0_35 = arith.constant 0 : index
      %c0_36 = arith.constant 0 : index
      %115 = vector.load %arg1[%114, %c0_35, %c0_36] : memref<8x2x128xbf16, #tpu.memory_space<vmem>>, vector<1x2x128xbf16>
      %116 = vector.shape_cast %115 : vector<1x2x128xbf16> to vector<2x128xbf16>
      %117 = arith.extf %116 : vector<2x128xbf16> to vector<2x128xf32>
      %118 = arith.truncf %109 : vector<2x32xf32> to vector<2x32xbf16>
      %cst_37 = arith.constant dense<0.000000e+00> : vector<2x128xf32>
      %119 = tpu.matmul %118, %1, %cst_37 {dimension_numbers = #tpu.dot_dimension_numbers<[1], [0], [0], [1], [0, 0, 1, 1], [], []>} : vector<2x32xbf16>, vector<32x128xbf16>, vector<2x128xf32> -> vector<2x128xf32>
      %120 = arith.addf %117, %119 : vector<2x128xf32>
      %121 = arith.negf %120 : vector<2x128xf32>
      %122 = math.exp %121 : vector<2x128xf32>
      %cst_38 = arith.constant 1.000000e+00 : f32
      %123 = vector.broadcast %cst_38 : f32 to vector<2x128xf32>
      %124 = arith.addf %123, %122 : vector<2x128xf32>
      %125 = arith.divf %123, %124 : vector<2x128xf32>
      %126 = math.tanh %120 : vector<2x128xf32>
      %127 = vector.extract_strided_slice %125 {offsets = [0, 0], sizes = [2, 32], strides = [1, 1]} : vector<2x128xf32> to vector<2x32xf32>
      %128 = vector.extract_strided_slice %125 {offsets = [0, 32], sizes = [2, 32], strides = [1, 1]} : vector<2x128xf32> to vector<2x32xf32>
      %129 = vector.extract_strided_slice %126 {offsets = [0, 64], sizes = [2, 32], strides = [1, 1]} : vector<2x128xf32> to vector<2x32xf32>
      %130 = vector.extract_strided_slice %125 {offsets = [0, 96], sizes = [2, 32], strides = [1, 1]} : vector<2x128xf32> to vector<2x32xf32>
      %131 = arith.mulf %128, %107 : vector<2x32xf32>
      %132 = arith.mulf %127, %129 : vector<2x32xf32>
      %133 = arith.addf %131, %132 : vector<2x32xf32>
      %134 = math.tanh %133 : vector<2x32xf32>
      %135 = arith.mulf %130, %134 : vector<2x32xf32>
      %c0_39 = arith.constant 0 : index
      %136 = arith.index_cast %c4_i32 : i32 to index
      %c0_40 = arith.constant 0 : index
      %c0_41 = arith.constant 0 : index
      %137 = vector.load %arg3[%c0_39, %136, %c0_40, %c0_41] : memref<1x8x2x32xf32, #tpu.memory_space<vmem>>, vector<1x1x2x32xf32>
      %138 = vector.shape_cast %137 : vector<1x1x2x32xf32> to vector<2x32xf32>
      %139 = vector.shape_cast %135 : vector<2x32xf32> to vector<1x1x2x32xf32>
      tpu.vector_store %arg3[%c0_39, %136, %c0_40, %c0_41], %139 {strides = array<i32>} : memref<1x8x2x32xf32, #tpu.memory_space<vmem>>, vector<1x1x2x32xf32>,
      %c5_i32 = arith.constant 5 : i32
      %140 = arith.index_cast %c5_i32 : i32 to index
      %c0_42 = arith.constant 0 : index
      %c0_43 = arith.constant 0 : index
      %141 = vector.load %arg1[%140, %c0_42, %c0_43] : memref<8x2x128xbf16, #tpu.memory_space<vmem>>, vector<1x2x128xbf16>
      %142 = vector.shape_cast %141 : vector<1x2x128xbf16> to vector<2x128xbf16>
      %143 = arith.extf %142 : vector<2x128xbf16> to vector<2x128xf32>
      %144 = arith.truncf %135 : vector<2x32xf32> to vector<2x32xbf16>
      %cst_44 = arith.constant dense<0.000000e+00> : vector<2x128xf32>
      %145 = tpu.matmul %144, %1, %cst_44 {dimension_numbers = #tpu.dot_dimension_numbers<[1], [0], [0], [1], [0, 0, 1, 1], [], []>} : vector<2x32xbf16>, vector<32x128xbf16>, vector<2x128xf32> -> vector<2x128xf32>
      %146 = arith.addf %143, %145 : vector<2x128xf32>
      %147 = arith.negf %146 : vector<2x128xf32>
      %148 = math.exp %147 : vector<2x128xf32>
      %cst_45 = arith.constant 1.000000e+00 : f32
      %149 = vector.broadcast %cst_45 : f32 to vector<2x128xf32>
      %150 = arith.addf %149, %148 : vector<2x128xf32>
      %151 = arith.divf %149, %150 : vector<2x128xf32>
      %152 = math.tanh %146 : vector<2x128xf32>
      %153 = vector.extract_strided_slice %151 {offsets = [0, 0], sizes = [2, 32], strides = [1, 1]} : vector<2x128xf32> to vector<2x32xf32>
      %154 = vector.extract_strided_slice %151 {offsets = [0, 32], sizes = [2, 32], strides = [1, 1]} : vector<2x128xf32> to vector<2x32xf32>
      %155 = vector.extract_strided_slice %152 {offsets = [0, 64], sizes = [2, 32], strides = [1, 1]} : vector<2x128xf32> to vector<2x32xf32>
      %156 = vector.extract_strided_slice %151 {offsets = [0, 96], sizes = [2, 32], strides = [1, 1]} : vector<2x128xf32> to vector<2x32xf32>
      %157 = arith.mulf %154, %133 : vector<2x32xf32>
      %158 = arith.mulf %153, %155 : vector<2x32xf32>
      %159 = arith.addf %157, %158 : vector<2x32xf32>
      %160 = math.tanh %159 : vector<2x32xf32>
      %161 = arith.mulf %156, %160 : vector<2x32xf32>
      %c0_46 = arith.constant 0 : index
      %162 = arith.index_cast %c5_i32 : i32 to index
      %c0_47 = arith.constant 0 : index
      %c0_48 = arith.constant 0 : index
      %163 = vector.load %arg3[%c0_46, %162, %c0_47, %c0_48] : memref<1x8x2x32xf32, #tpu.memory_space<vmem>>, vector<1x1x2x32xf32>
      %164 = vector.shape_cast %163 : vector<1x1x2x32xf32> to vector<2x32xf32>
      %165 = vector.shape_cast %161 : vector<2x32xf32> to vector<1x1x2x32xf32>
      tpu.vector_store %arg3[%c0_46, %162, %c0_47, %c0_48], %165 {strides = array<i32>} : memref<1x8x2x32xf32, #tpu.memory_space<vmem>>, vector<1x1x2x32xf32>,
      %c6_i32 = arith.constant 6 : i32
      %166 = arith.index_cast %c6_i32 : i32 to index
      %c0_49 = arith.constant 0 : index
      %c0_50 = arith.constant 0 : index
      %167 = vector.load %arg1[%166, %c0_49, %c0_50] : memref<8x2x128xbf16, #tpu.memory_space<vmem>>, vector<1x2x128xbf16>
      %168 = vector.shape_cast %167 : vector<1x2x128xbf16> to vector<2x128xbf16>
      %169 = arith.extf %168 : vector<2x128xbf16> to vector<2x128xf32>
      %170 = arith.truncf %161 : vector<2x32xf32> to vector<2x32xbf16>
      %cst_51 = arith.constant dense<0.000000e+00> : vector<2x128xf32>
      %171 = tpu.matmul %170, %1, %cst_51 {dimension_numbers = #tpu.dot_dimension_numbers<[1], [0], [0], [1], [0, 0, 1, 1], [], []>} : vector<2x32xbf16>, vector<32x128xbf16>, vector<2x128xf32> -> vector<2x128xf32>
      %172 = arith.addf %169, %171 : vector<2x128xf32>
      %173 = arith.negf %172 : vector<2x128xf32>
      %174 = math.exp %173 : vector<2x128xf32>
      %cst_52 = arith.constant 1.000000e+00 : f32
      %175 = vector.broadcast %cst_52 : f32 to vector<2x128xf32>
      %176 = arith.addf %175, %174 : vector<2x128xf32>
      %177 = arith.divf %175, %176 : vector<2x128xf32>
      %178 = math.tanh %172 : vector<2x128xf32>
      %179 = vector.extract_strided_slice %177 {offsets = [0, 0], sizes = [2, 32], strides = [1, 1]} : vector<2x128xf32> to vector<2x32xf32>
      %180 = vector.extract_strided_slice %177 {offsets = [0, 32], sizes = [2, 32], strides = [1, 1]} : vector<2x128xf32> to vector<2x32xf32>
      %181 = vector.extract_strided_slice %178 {offsets = [0, 64], sizes = [2, 32], strides = [1, 1]} : vector<2x128xf32> to vector<2x32xf32>
      %182 = vector.extract_strided_slice %177 {offsets = [0, 96], sizes = [2, 32], strides = [1, 1]} : vector<2x128xf32> to vector<2x32xf32>
      %183 = arith.mulf %180, %159 : vector<2x32xf32>
      %184 = arith.mulf %179, %181 : vector<2x32xf32>
      %185 = arith.addf %183, %184 : vector<2x32xf32>
      %186 = math.tanh %185 : vector<2x32xf32>
      %187 = arith.mulf %182, %186 : vector<2x32xf32>
      %c0_53 = arith.constant 0 : index
      %188 = arith.index_cast %c6_i32 : i32 to index
      %c0_54 = arith.constant 0 : index
      %c0_55 = arith.constant 0 : index
      %189 = vector.load %arg3[%c0_53, %188, %c0_54, %c0_55] : memref<1x8x2x32xf32, #tpu.memory_space<vmem>>, vector<1x1x2x32xf32>
      %190 = vector.shape_cast %189 : vector<1x1x2x32xf32> to vector<2x32xf32>
      %191 = vector.shape_cast %187 : vector<2x32xf32> to vector<1x1x2x32xf32>
      tpu.vector_store %arg3[%c0_53, %188, %c0_54, %c0_55], %191 {strides = array<i32>} : memref<1x8x2x32xf32, #tpu.memory_space<vmem>>, vector<1x1x2x32xf32>,
      %c7_i32 = arith.constant 7 : i32
      %192 = arith.index_cast %c7_i32 : i32 to index
      %c0_56 = arith.constant 0 : index
      %c0_57 = arith.constant 0 : index
      %193 = vector.load %arg1[%192, %c0_56, %c0_57] : memref<8x2x128xbf16, #tpu.memory_space<vmem>>, vector<1x2x128xbf16>
      %194 = vector.shape_cast %193 : vector<1x2x128xbf16> to vector<2x128xbf16>
      %195 = arith.extf %194 : vector<2x128xbf16> to vector<2x128xf32>
      %196 = arith.truncf %187 : vector<2x32xf32> to vector<2x32xbf16>
      %cst_58 = arith.constant dense<0.000000e+00> : vector<2x128xf32>
      %197 = tpu.matmul %196, %1, %cst_58 {dimension_numbers = #tpu.dot_dimension_numbers<[1], [0], [0], [1], [0, 0, 1, 1], [], []>} : vector<2x32xbf16>, vector<32x128xbf16>, vector<2x128xf32> -> vector<2x128xf32>
      %198 = arith.addf %195, %197 : vector<2x128xf32>
      %199 = arith.negf %198 : vector<2x128xf32>
      %200 = math.exp %199 : vector<2x128xf32>
      %cst_59 = arith.constant 1.000000e+00 : f32
      %201 = vector.broadcast %cst_59 : f32 to vector<2x128xf32>
      %202 = arith.addf %201, %200 : vector<2x128xf32>
      %203 = arith.divf %201, %202 : vector<2x128xf32>
      %204 = math.tanh %198 : vector<2x128xf32>
      %205 = vector.extract_strided_slice %203 {offsets = [0, 0], sizes = [2, 32], strides = [1, 1]} : vector<2x128xf32> to vector<2x32xf32>
      %206 = vector.extract_strided_slice %203 {offsets = [0, 32], sizes = [2, 32], strides = [1, 1]} : vector<2x128xf32> to vector<2x32xf32>
      %207 = vector.extract_strided_slice %204 {offsets = [0, 64], sizes = [2, 32], strides = [1, 1]} : vector<2x128xf32> to vector<2x32xf32>
      %208 = vector.extract_strided_slice %203 {offsets = [0, 96], sizes = [2, 32], strides = [1, 1]} : vector<2x128xf32> to vector<2x32xf32>
      %209 = arith.mulf %206, %185 : vector<2x32xf32>
      %210 = arith.mulf %205, %207 : vector<2x32xf32>
      %211 = arith.addf %209, %210 : vector<2x32xf32>
      %212 = math.tanh %211 : vector<2x32xf32>
      %213 = arith.mulf %208, %212 : vector<2x32xf32>
      %c0_60 = arith.constant 0 : index
      %214 = arith.index_cast %c7_i32 : i32 to index
      %c0_61 = arith.constant 0 : index
      %c0_62 = arith.constant 0 : index
      %215 = vector.load %arg3[%c0_60, %214, %c0_61, %c0_62] : memref<1x8x2x32xf32, #tpu.memory_space<vmem>>, vector<1x1x2x32xf32>
      %216 = vector.shape_cast %215 : vector<1x1x2x32xf32> to vector<2x32xf32>
      %217 = vector.shape_cast %213 : vector<2x32xf32> to vector<1x1x2x32xf32>
      tpu.vector_store %arg3[%c0_60, %214, %c0_61, %c0_62], %217 {strides = array<i32>} : memref<1x8x2x32xf32, #tpu.memory_space<vmem>>, vector<1x1x2x32xf32>,
      %c8_i32 = arith.constant 8 : i32
      %c0_63 = arith.constant 0 : index
      %c0_64 = arith.constant 0 : index
      %c0_65 = arith.constant 0 : index
      %218 = vector.load %arg4[%c0_63, %c0_64, %c0_65] : memref<1x2x32xf32, #tpu.memory_space<vmem>>, vector<1x2x32xf32>
      %219 = vector.shape_cast %218 : vector<1x2x32xf32> to vector<2x32xf32>
      %220 = vector.shape_cast %213 : vector<2x32xf32> to vector<1x2x32xf32>
      tpu.vector_store %arg4[%c0_63, %c0_64, %c0_65], %220 {strides = array<i32>} : memref<1x2x32xf32, #tpu.memory_space<vmem>>, vector<1x2x32xf32>,
    } else {
    }
    %c1_i32 = arith.constant 1 : i32
    %7 = arith.cmpi eq, %arg0, %c1_i32 : i32
    %8 = arith.extui %7 : i1 to i32
    %c0_i32_4 = arith.constant 0 : i32
    %9 = arith.cmpi ne, %8, %c0_i32_4 : i32
    scf.if %9 {
      %c0_i32_5 = arith.constant 0 : i32
      %c7_i32 = arith.constant 7 : i32
      %10 = arith.subi %c7_i32, %c0_i32_5 : i32
      %11 = arith.index_cast %10 : i32 to index
      %c0_6 = arith.constant 0 : index
      %c0_7 = arith.constant 0 : index
      %12 = vector.load %arg1[%11, %c0_6, %c0_7] : memref<8x2x128xbf16, #tpu.memory_space<vmem>>, vector<1x2x128xbf16>
      %13 = vector.shape_cast %12 : vector<1x2x128xbf16> to vector<2x128xbf16>
      %14 = arith.extf %13 : vector<2x128xbf16> to vector<2x128xf32>
      %15 = arith.truncf %2 : vector<2x32xf32> to vector<2x32xbf16>
      %cst_8 = arith.constant dense<0.000000e+00> : vector<2x128xf32>
      %16 = tpu.matmul %15, %1, %cst_8 {dimension_numbers = #tpu.dot_dimension_numbers<[1], [0], [0], [1], [0, 0, 1, 1], [], []>} : vector<2x32xbf16>, vector<32x128xbf16>, vector<2x128xf32> -> vector<2x128xf32>
      %17 = arith.addf %14, %16 : vector<2x128xf32>
      %18 = arith.negf %17 : vector<2x128xf32>
      %19 = math.exp %18 : vector<2x128xf32>
      %cst_9 = arith.constant 1.000000e+00 : f32
      %20 = vector.broadcast %cst_9 : f32 to vector<2x128xf32>
      %21 = arith.addf %20, %19 : vector<2x128xf32>
      %22 = arith.divf %20, %21 : vector<2x128xf32>
      %23 = math.tanh %17 : vector<2x128xf32>
      %24 = vector.extract_strided_slice %22 {offsets = [0, 0], sizes = [2, 32], strides = [1, 1]} : vector<2x128xf32> to vector<2x32xf32>
      %25 = vector.extract_strided_slice %22 {offsets = [0, 32], sizes = [2, 32], strides = [1, 1]} : vector<2x128xf32> to vector<2x32xf32>
      %26 = vector.extract_strided_slice %23 {offsets = [0, 64], sizes = [2, 32], strides = [1, 1]} : vector<2x128xf32> to vector<2x32xf32>
      %27 = vector.extract_strided_slice %22 {offsets = [0, 96], sizes = [2, 32], strides = [1, 1]} : vector<2x128xf32> to vector<2x32xf32>
      %28 = arith.mulf %25, %3 : vector<2x32xf32>
      %29 = arith.mulf %24, %26 : vector<2x32xf32>
      %30 = arith.addf %28, %29 : vector<2x32xf32>
      %31 = math.tanh %30 : vector<2x32xf32>
      %32 = arith.mulf %27, %31 : vector<2x32xf32>
      %c0_10 = arith.constant 0 : index
      %33 = arith.index_cast %10 : i32 to index
      %c0_11 = arith.constant 0 : index
      %c0_12 = arith.constant 0 : index
      %34 = vector.load %arg3[%c0_10, %33, %c0_11, %c0_12] : memref<1x8x2x32xf32, #tpu.memory_space<vmem>>, vector<1x1x2x32xf32>
      %35 = vector.shape_cast %34 : vector<1x1x2x32xf32> to vector<2x32xf32>
      %36 = vector.shape_cast %32 : vector<2x32xf32> to vector<1x1x2x32xf32>
      tpu.vector_store %arg3[%c0_10, %33, %c0_11, %c0_12], %36 {strides = array<i32>} : memref<1x8x2x32xf32, #tpu.memory_space<vmem>>, vector<1x1x2x32xf32>,
      %c1_i32_13 = arith.constant 1 : i32
      %c7_i32_14 = arith.constant 7 : i32
      %37 = arith.subi %c7_i32_14, %c1_i32_13 : i32
      %38 = arith.index_cast %37 : i32 to index
      %c0_15 = arith.constant 0 : index
      %c0_16 = arith.constant 0 : index
      %39 = vector.load %arg1[%38, %c0_15, %c0_16] : memref<8x2x128xbf16, #tpu.memory_space<vmem>>, vector<1x2x128xbf16>
      %40 = vector.shape_cast %39 : vector<1x2x128xbf16> to vector<2x128xbf16>
      %41 = arith.extf %40 : vector<2x128xbf16> to vector<2x128xf32>
      %42 = arith.truncf %32 : vector<2x32xf32> to vector<2x32xbf16>
      %cst_17 = arith.constant dense<0.000000e+00> : vector<2x128xf32>
      %43 = tpu.matmul %42, %1, %cst_17 {dimension_numbers = #tpu.dot_dimension_numbers<[1], [0], [0], [1], [0, 0, 1, 1], [], []>} : vector<2x32xbf16>, vector<32x128xbf16>, vector<2x128xf32> -> vector<2x128xf32>
      %44 = arith.addf %41, %43 : vector<2x128xf32>
      %45 = arith.negf %44 : vector<2x128xf32>
      %46 = math.exp %45 : vector<2x128xf32>
      %cst_18 = arith.constant 1.000000e+00 : f32
      %47 = vector.broadcast %cst_18 : f32 to vector<2x128xf32>
      %48 = arith.addf %47, %46 : vector<2x128xf32>
      %49 = arith.divf %47, %48 : vector<2x128xf32>
      %50 = math.tanh %44 : vector<2x128xf32>
      %51 = vector.extract_strided_slice %49 {offsets = [0, 0], sizes = [2, 32], strides = [1, 1]} : vector<2x128xf32> to vector<2x32xf32>
      %52 = vector.extract_strided_slice %49 {offsets = [0, 32], sizes = [2, 32], strides = [1, 1]} : vector<2x128xf32> to vector<2x32xf32>
      %53 = vector.extract_strided_slice %50 {offsets = [0, 64], sizes = [2, 32], strides = [1, 1]} : vector<2x128xf32> to vector<2x32xf32>
      %54 = vector.extract_strided_slice %49 {offsets = [0, 96], sizes = [2, 32], strides = [1, 1]} : vector<2x128xf32> to vector<2x32xf32>
      %55 = arith.mulf %52, %30 : vector<2x32xf32>
      %56 = arith.mulf %51, %53 : vector<2x32xf32>
      %57 = arith.addf %55, %56 : vector<2x32xf32>
      %58 = math.tanh %57 : vector<2x32xf32>
      %59 = arith.mulf %54, %58 : vector<2x32xf32>
      %c0_19 = arith.constant 0 : index
      %60 = arith.index_cast %37 : i32 to index
      %c0_20 = arith.constant 0 : index
      %c0_21 = arith.constant 0 : index
      %61 = vector.load %arg3[%c0_19, %60, %c0_20, %c0_21] : memref<1x8x2x32xf32, #tpu.memory_space<vmem>>, vector<1x1x2x32xf32>
      %62 = vector.shape_cast %61 : vector<1x1x2x32xf32> to vector<2x32xf32>
      %63 = vector.shape_cast %59 : vector<2x32xf32> to vector<1x1x2x32xf32>
      tpu.vector_store %arg3[%c0_19, %60, %c0_20, %c0_21], %63 {strides = array<i32>} : memref<1x8x2x32xf32, #tpu.memory_space<vmem>>, vector<1x1x2x32xf32>,
      %c2_i32 = arith.constant 2 : i32
      %c7_i32_22 = arith.constant 7 : i32
      %64 = arith.subi %c7_i32_22, %c2_i32 : i32
      %65 = arith.index_cast %64 : i32 to index
      %c0_23 = arith.constant 0 : index
      %c0_24 = arith.constant 0 : index
      %66 = vector.load %arg1[%65, %c0_23, %c0_24] : memref<8x2x128xbf16, #tpu.memory_space<vmem>>, vector<1x2x128xbf16>
      %67 = vector.shape_cast %66 : vector<1x2x128xbf16> to vector<2x128xbf16>
      %68 = arith.extf %67 : vector<2x128xbf16> to vector<2x128xf32>
      %69 = arith.truncf %59 : vector<2x32xf32> to vector<2x32xbf16>
      %cst_25 = arith.constant dense<0.000000e+00> : vector<2x128xf32>
      %70 = tpu.matmul %69, %1, %cst_25 {dimension_numbers = #tpu.dot_dimension_numbers<[1], [0], [0], [1], [0, 0, 1, 1], [], []>} : vector<2x32xbf16>, vector<32x128xbf16>, vector<2x128xf32> -> vector<2x128xf32>
      %71 = arith.addf %68, %70 : vector<2x128xf32>
      %72 = arith.negf %71 : vector<2x128xf32>
      %73 = math.exp %72 : vector<2x128xf32>
      %cst_26 = arith.constant 1.000000e+00 : f32
      %74 = vector.broadcast %cst_26 : f32 to vector<2x128xf32>
      %75 = arith.addf %74, %73 : vector<2x128xf32>
      %76 = arith.divf %74, %75 : vector<2x128xf32>
      %77 = math.tanh %71 : vector<2x128xf32>
      %78 = vector.extract_strided_slice %76 {offsets = [0, 0], sizes = [2, 32], strides = [1, 1]} : vector<2x128xf32> to vector<2x32xf32>
      %79 = vector.extract_strided_slice %76 {offsets = [0, 32], sizes = [2, 32], strides = [1, 1]} : vector<2x128xf32> to vector<2x32xf32>
      %80 = vector.extract_strided_slice %77 {offsets = [0, 64], sizes = [2, 32], strides = [1, 1]} : vector<2x128xf32> to vector<2x32xf32>
      %81 = vector.extract_strided_slice %76 {offsets = [0, 96], sizes = [2, 32], strides = [1, 1]} : vector<2x128xf32> to vector<2x32xf32>
      %82 = arith.mulf %79, %57 : vector<2x32xf32>
      %83 = arith.mulf %78, %80 : vector<2x32xf32>
      %84 = arith.addf %82, %83 : vector<2x32xf32>
      %85 = math.tanh %84 : vector<2x32xf32>
      %86 = arith.mulf %81, %85 : vector<2x32xf32>
      %c0_27 = arith.constant 0 : index
      %87 = arith.index_cast %64 : i32 to index
      %c0_28 = arith.constant 0 : index
      %c0_29 = arith.constant 0 : index
      %88 = vector.load %arg3[%c0_27, %87, %c0_28, %c0_29] : memref<1x8x2x32xf32, #tpu.memory_space<vmem>>, vector<1x1x2x32xf32>
      %89 = vector.shape_cast %88 : vector<1x1x2x32xf32> to vector<2x32xf32>
      %90 = vector.shape_cast %86 : vector<2x32xf32> to vector<1x1x2x32xf32>
      tpu.vector_store %arg3[%c0_27, %87, %c0_28, %c0_29], %90 {strides = array<i32>} : memref<1x8x2x32xf32, #tpu.memory_space<vmem>>, vector<1x1x2x32xf32>,
      %c3_i32 = arith.constant 3 : i32
      %c7_i32_30 = arith.constant 7 : i32
      %91 = arith.subi %c7_i32_30, %c3_i32 : i32
      %92 = arith.index_cast %91 : i32 to index
      %c0_31 = arith.constant 0 : index
      %c0_32 = arith.constant 0 : index
      %93 = vector.load %arg1[%92, %c0_31, %c0_32] : memref<8x2x128xbf16, #tpu.memory_space<vmem>>, vector<1x2x128xbf16>
      %94 = vector.shape_cast %93 : vector<1x2x128xbf16> to vector<2x128xbf16>
      %95 = arith.extf %94 : vector<2x128xbf16> to vector<2x128xf32>
      %96 = arith.truncf %86 : vector<2x32xf32> to vector<2x32xbf16>
      %cst_33 = arith.constant dense<0.000000e+00> : vector<2x128xf32>
      %97 = tpu.matmul %96, %1, %cst_33 {dimension_numbers = #tpu.dot_dimension_numbers<[1], [0], [0], [1], [0, 0, 1, 1], [], []>} : vector<2x32xbf16>, vector<32x128xbf16>, vector<2x128xf32> -> vector<2x128xf32>
      %98 = arith.addf %95, %97 : vector<2x128xf32>
      %99 = arith.negf %98 : vector<2x128xf32>
      %100 = math.exp %99 : vector<2x128xf32>
      %cst_34 = arith.constant 1.000000e+00 : f32
      %101 = vector.broadcast %cst_34 : f32 to vector<2x128xf32>
      %102 = arith.addf %101, %100 : vector<2x128xf32>
      %103 = arith.divf %101, %102 : vector<2x128xf32>
      %104 = math.tanh %98 : vector<2x128xf32>
      %105 = vector.extract_strided_slice %103 {offsets = [0, 0], sizes = [2, 32], strides = [1, 1]} : vector<2x128xf32> to vector<2x32xf32>
      %106 = vector.extract_strided_slice %103 {offsets = [0, 32], sizes = [2, 32], strides = [1, 1]} : vector<2x128xf32> to vector<2x32xf32>
      %107 = vector.extract_strided_slice %104 {offsets = [0, 64], sizes = [2, 32], strides = [1, 1]} : vector<2x128xf32> to vector<2x32xf32>
      %108 = vector.extract_strided_slice %103 {offsets = [0, 96], sizes = [2, 32], strides = [1, 1]} : vector<2x128xf32> to vector<2x32xf32>
      %109 = arith.mulf %106, %84 : vector<2x32xf32>
      %110 = arith.mulf %105, %107 : vector<2x32xf32>
      %111 = arith.addf %109, %110 : vector<2x32xf32>
      %112 = math.tanh %111 : vector<2x32xf32>
      %113 = arith.mulf %108, %112 : vector<2x32xf32>
      %c0_35 = arith.constant 0 : index
      %114 = arith.index_cast %91 : i32 to index
      %c0_36 = arith.constant 0 : index
      %c0_37 = arith.constant 0 : index
      %115 = vector.load %arg3[%c0_35, %114, %c0_36, %c0_37] : memref<1x8x2x32xf32, #tpu.memory_space<vmem>>, vector<1x1x2x32xf32>
      %116 = vector.shape_cast %115 : vector<1x1x2x32xf32> to vector<2x32xf32>
      %117 = vector.shape_cast %113 : vector<2x32xf32> to vector<1x1x2x32xf32>
      tpu.vector_store %arg3[%c0_35, %114, %c0_36, %c0_37], %117 {strides = array<i32>} : memref<1x8x2x32xf32, #tpu.memory_space<vmem>>, vector<1x1x2x32xf32>,
      %c4_i32 = arith.constant 4 : i32
      %c7_i32_38 = arith.constant 7 : i32
      %118 = arith.subi %c7_i32_38, %c4_i32 : i32
      %119 = arith.index_cast %118 : i32 to index
      %c0_39 = arith.constant 0 : index
      %c0_40 = arith.constant 0 : index
      %120 = vector.load %arg1[%119, %c0_39, %c0_40] : memref<8x2x128xbf16, #tpu.memory_space<vmem>>, vector<1x2x128xbf16>
      %121 = vector.shape_cast %120 : vector<1x2x128xbf16> to vector<2x128xbf16>
      %122 = arith.extf %121 : vector<2x128xbf16> to vector<2x128xf32>
      %123 = arith.truncf %113 : vector<2x32xf32> to vector<2x32xbf16>
      %cst_41 = arith.constant dense<0.000000e+00> : vector<2x128xf32>
      %124 = tpu.matmul %123, %1, %cst_41 {dimension_numbers = #tpu.dot_dimension_numbers<[1], [0], [0], [1], [0, 0, 1, 1], [], []>} : vector<2x32xbf16>, vector<32x128xbf16>, vector<2x128xf32> -> vector<2x128xf32>
      %125 = arith.addf %122, %124 : vector<2x128xf32>
      %126 = arith.negf %125 : vector<2x128xf32>
      %127 = math.exp %126 : vector<2x128xf32>
      %cst_42 = arith.constant 1.000000e+00 : f32
      %128 = vector.broadcast %cst_42 : f32 to vector<2x128xf32>
      %129 = arith.addf %128, %127 : vector<2x128xf32>
      %130 = arith.divf %128, %129 : vector<2x128xf32>
      %131 = math.tanh %125 : vector<2x128xf32>
      %132 = vector.extract_strided_slice %130 {offsets = [0, 0], sizes = [2, 32], strides = [1, 1]} : vector<2x128xf32> to vector<2x32xf32>
      %133 = vector.extract_strided_slice %130 {offsets = [0, 32], sizes = [2, 32], strides = [1, 1]} : vector<2x128xf32> to vector<2x32xf32>
      %134 = vector.extract_strided_slice %131 {offsets = [0, 64], sizes = [2, 32], strides = [1, 1]} : vector<2x128xf32> to vector<2x32xf32>
      %135 = vector.extract_strided_slice %130 {offsets = [0, 96], sizes = [2, 32], strides = [1, 1]} : vector<2x128xf32> to vector<2x32xf32>
      %136 = arith.mulf %133, %111 : vector<2x32xf32>
      %137 = arith.mulf %132, %134 : vector<2x32xf32>
      %138 = arith.addf %136, %137 : vector<2x32xf32>
      %139 = math.tanh %138 : vector<2x32xf32>
      %140 = arith.mulf %135, %139 : vector<2x32xf32>
      %c0_43 = arith.constant 0 : index
      %141 = arith.index_cast %118 : i32 to index
      %c0_44 = arith.constant 0 : index
      %c0_45 = arith.constant 0 : index
      %142 = vector.load %arg3[%c0_43, %141, %c0_44, %c0_45] : memref<1x8x2x32xf32, #tpu.memory_space<vmem>>, vector<1x1x2x32xf32>
      %143 = vector.shape_cast %142 : vector<1x1x2x32xf32> to vector<2x32xf32>
      %144 = vector.shape_cast %140 : vector<2x32xf32> to vector<1x1x2x32xf32>
      tpu.vector_store %arg3[%c0_43, %141, %c0_44, %c0_45], %144 {strides = array<i32>} : memref<1x8x2x32xf32, #tpu.memory_space<vmem>>, vector<1x1x2x32xf32>,
      %c5_i32 = arith.constant 5 : i32
      %c7_i32_46 = arith.constant 7 : i32
      %145 = arith.subi %c7_i32_46, %c5_i32 : i32
      %146 = arith.index_cast %145 : i32 to index
      %c0_47 = arith.constant 0 : index
      %c0_48 = arith.constant 0 : index
      %147 = vector.load %arg1[%146, %c0_47, %c0_48] : memref<8x2x128xbf16, #tpu.memory_space<vmem>>, vector<1x2x128xbf16>
      %148 = vector.shape_cast %147 : vector<1x2x128xbf16> to vector<2x128xbf16>
      %149 = arith.extf %148 : vector<2x128xbf16> to vector<2x128xf32>
      %150 = arith.truncf %140 : vector<2x32xf32> to vector<2x32xbf16>
      %cst_49 = arith.constant dense<0.000000e+00> : vector<2x128xf32>
      %151 = tpu.matmul %150, %1, %cst_49 {dimension_numbers = #tpu.dot_dimension_numbers<[1], [0], [0], [1], [0, 0, 1, 1], [], []>} : vector<2x32xbf16>, vector<32x128xbf16>, vector<2x128xf32> -> vector<2x128xf32>
      %152 = arith.addf %149, %151 : vector<2x128xf32>
      %153 = arith.negf %152 : vector<2x128xf32>
      %154 = math.exp %153 : vector<2x128xf32>
      %cst_50 = arith.constant 1.000000e+00 : f32
      %155 = vector.broadcast %cst_50 : f32 to vector<2x128xf32>
      %156 = arith.addf %155, %154 : vector<2x128xf32>
      %157 = arith.divf %155, %156 : vector<2x128xf32>
      %158 = math.tanh %152 : vector<2x128xf32>
      %159 = vector.extract_strided_slice %157 {offsets = [0, 0], sizes = [2, 32], strides = [1, 1]} : vector<2x128xf32> to vector<2x32xf32>
      %160 = vector.extract_strided_slice %157 {offsets = [0, 32], sizes = [2, 32], strides = [1, 1]} : vector<2x128xf32> to vector<2x32xf32>
      %161 = vector.extract_strided_slice %158 {offsets = [0, 64], sizes = [2, 32], strides = [1, 1]} : vector<2x128xf32> to vector<2x32xf32>
      %162 = vector.extract_strided_slice %157 {offsets = [0, 96], sizes = [2, 32], strides = [1, 1]} : vector<2x128xf32> to vector<2x32xf32>
      %163 = arith.mulf %160, %138 : vector<2x32xf32>
      %164 = arith.mulf %159, %161 : vector<2x32xf32>
      %165 = arith.addf %163, %164 : vector<2x32xf32>
      %166 = math.tanh %165 : vector<2x32xf32>
      %167 = arith.mulf %162, %166 : vector<2x32xf32>
      %c0_51 = arith.constant 0 : index
      %168 = arith.index_cast %145 : i32 to index
      %c0_52 = arith.constant 0 : index
      %c0_53 = arith.constant 0 : index
      %169 = vector.load %arg3[%c0_51, %168, %c0_52, %c0_53] : memref<1x8x2x32xf32, #tpu.memory_space<vmem>>, vector<1x1x2x32xf32>
      %170 = vector.shape_cast %169 : vector<1x1x2x32xf32> to vector<2x32xf32>
      %171 = vector.shape_cast %167 : vector<2x32xf32> to vector<1x1x2x32xf32>
      tpu.vector_store %arg3[%c0_51, %168, %c0_52, %c0_53], %171 {strides = array<i32>} : memref<1x8x2x32xf32, #tpu.memory_space<vmem>>, vector<1x1x2x32xf32>,
      %c6_i32 = arith.constant 6 : i32
      %c7_i32_54 = arith.constant 7 : i32
      %172 = arith.subi %c7_i32_54, %c6_i32 : i32
      %173 = arith.index_cast %172 : i32 to index
      %c0_55 = arith.constant 0 : index
      %c0_56 = arith.constant 0 : index
      %174 = vector.load %arg1[%173, %c0_55, %c0_56] : memref<8x2x128xbf16, #tpu.memory_space<vmem>>, vector<1x2x128xbf16>
      %175 = vector.shape_cast %174 : vector<1x2x128xbf16> to vector<2x128xbf16>
      %176 = arith.extf %175 : vector<2x128xbf16> to vector<2x128xf32>
      %177 = arith.truncf %167 : vector<2x32xf32> to vector<2x32xbf16>
      %cst_57 = arith.constant dense<0.000000e+00> : vector<2x128xf32>
      %178 = tpu.matmul %177, %1, %cst_57 {dimension_numbers = #tpu.dot_dimension_numbers<[1], [0], [0], [1], [0, 0, 1, 1], [], []>} : vector<2x32xbf16>, vector<32x128xbf16>, vector<2x128xf32> -> vector<2x128xf32>
      %179 = arith.addf %176, %178 : vector<2x128xf32>
      %180 = arith.negf %179 : vector<2x128xf32>
      %181 = math.exp %180 : vector<2x128xf32>
      %cst_58 = arith.constant 1.000000e+00 : f32
      %182 = vector.broadcast %cst_58 : f32 to vector<2x128xf32>
      %183 = arith.addf %182, %181 : vector<2x128xf32>
      %184 = arith.divf %182, %183 : vector<2x128xf32>
      %185 = math.tanh %179 : vector<2x128xf32>
      %186 = vector.extract_strided_slice %184 {offsets = [0, 0], sizes = [2, 32], strides = [1, 1]} : vector<2x128xf32> to vector<2x32xf32>
      %187 = vector.extract_strided_slice %184 {offsets = [0, 32], sizes = [2, 32], strides = [1, 1]} : vector<2x128xf32> to vector<2x32xf32>
      %188 = vector.extract_strided_slice %185 {offsets = [0, 64], sizes = [2, 32], strides = [1, 1]} : vector<2x128xf32> to vector<2x32xf32>
      %189 = vector.extract_strided_slice %184 {offsets = [0, 96], sizes = [2, 32], strides = [1, 1]} : vector<2x128xf32> to vector<2x32xf32>
      %190 = arith.mulf %187, %165 : vector<2x32xf32>
      %191 = arith.mulf %186, %188 : vector<2x32xf32>
      %192 = arith.addf %190, %191 : vector<2x32xf32>
      %193 = math.tanh %192 : vector<2x32xf32>
      %194 = arith.mulf %189, %193 : vector<2x32xf32>
      %c0_59 = arith.constant 0 : index
      %195 = arith.index_cast %172 : i32 to index
      %c0_60 = arith.constant 0 : index
      %c0_61 = arith.constant 0 : index
      %196 = vector.load %arg3[%c0_59, %195, %c0_60, %c0_61] : memref<1x8x2x32xf32, #tpu.memory_space<vmem>>, vector<1x1x2x32xf32>
      %197 = vector.shape_cast %196 : vector<1x1x2x32xf32> to vector<2x32xf32>
      %198 = vector.shape_cast %194 : vector<2x32xf32> to vector<1x1x2x32xf32>
      tpu.vector_store %arg3[%c0_59, %195, %c0_60, %c0_61], %198 {strides = array<i32>} : memref<1x8x2x32xf32, #tpu.memory_space<vmem>>, vector<1x1x2x32xf32>,
      %c7_i32_62 = arith.constant 7 : i32
      %c7_i32_63 = arith.constant 7 : i32
      %199 = arith.subi %c7_i32_63, %c7_i32_62 : i32
      %200 = arith.index_cast %199 : i32 to index
      %c0_64 = arith.constant 0 : index
      %c0_65 = arith.constant 0 : index
      %201 = vector.load %arg1[%200, %c0_64, %c0_65] : memref<8x2x128xbf16, #tpu.memory_space<vmem>>, vector<1x2x128xbf16>
      %202 = vector.shape_cast %201 : vector<1x2x128xbf16> to vector<2x128xbf16>
      %203 = arith.extf %202 : vector<2x128xbf16> to vector<2x128xf32>
      %204 = arith.truncf %194 : vector<2x32xf32> to vector<2x32xbf16>
      %cst_66 = arith.constant dense<0.000000e+00> : vector<2x128xf32>
      %205 = tpu.matmul %204, %1, %cst_66 {dimension_numbers = #tpu.dot_dimension_numbers<[1], [0], [0], [1], [0, 0, 1, 1], [], []>} : vector<2x32xbf16>, vector<32x128xbf16>, vector<2x128xf32> -> vector<2x128xf32>
      %206 = arith.addf %203, %205 : vector<2x128xf32>
      %207 = arith.negf %206 : vector<2x128xf32>
      %208 = math.exp %207 : vector<2x128xf32>
      %cst_67 = arith.constant 1.000000e+00 : f32
      %209 = vector.broadcast %cst_67 : f32 to vector<2x128xf32>
      %210 = arith.addf %209, %208 : vector<2x128xf32>
      %211 = arith.divf %209, %210 : vector<2x128xf32>
      %212 = math.tanh %206 : vector<2x128xf32>
      %213 = vector.extract_strided_slice %211 {offsets = [0, 0], sizes = [2, 32], strides = [1, 1]} : vector<2x128xf32> to vector<2x32xf32>
      %214 = vector.extract_strided_slice %211 {offsets = [0, 32], sizes = [2, 32], strides = [1, 1]} : vector<2x128xf32> to vector<2x32xf32>
      %215 = vector.extract_strided_slice %212 {offsets = [0, 64], sizes = [2, 32], strides = [1, 1]} : vector<2x128xf32> to vector<2x32xf32>
      %216 = vector.extract_strided_slice %211 {offsets = [0, 96], sizes = [2, 32], strides = [1, 1]} : vector<2x128xf32> to vector<2x32xf32>
      %217 = arith.mulf %214, %192 : vector<2x32xf32>
      %218 = arith.mulf %213, %215 : vector<2x32xf32>
      %219 = arith.addf %217, %218 : vector<2x32xf32>
      %220 = math.tanh %219 : vector<2x32xf32>
      %221 = arith.mulf %216, %220 : vector<2x32xf32>
      %c0_68 = arith.constant 0 : index
      %222 = arith.index_cast %199 : i32 to index
      %c0_69 = arith.constant 0 : index
      %c0_70 = arith.constant 0 : index
      %223 = vector.load %arg3[%c0_68, %222, %c0_69, %c0_70] : memref<1x8x2x32xf32, #tpu.memory_space<vmem>>, vector<1x1x2x32xf32>
      %224 = vector.shape_cast %223 : vector<1x1x2x32xf32> to vector<2x32xf32>
      %225 = vector.shape_cast %221 : vector<2x32xf32> to vector<1x1x2x32xf32>
      tpu.vector_store %arg3[%c0_68, %222, %c0_69, %c0_70], %225 {strides = array<i32>} : memref<1x8x2x32xf32, #tpu.memory_space<vmem>>, vector<1x1x2x32xf32>,
      %c8_i32 = arith.constant 8 : i32
      %c0_71 = arith.constant 0 : index
      %c0_72 = arith.constant 0 : index
      %c0_73 = arith.constant 0 : index
      %226 = vector.load %arg4[%c0_71, %c0_72, %c0_73] : memref<1x2x32xf32, #tpu.memory_space<vmem>>, vector<1x2x32xf32>
      %227 = vector.shape_cast %226 : vector<1x2x32xf32> to vector<2x32xf32>
      %228 = vector.shape_cast %221 : vector<2x32xf32> to vector<1x2x32xf32>
      tpu.vector_store %arg4[%c0_71, %c0_72, %c0_73], %228 {strides = array<i32>} : memref<1x2x32xf32, #tpu.memory_space<vmem>>, vector<1x2x32xf32>,
    } else {
    }
    return
  }
  func.func @transform_0(%arg0: i32) -> (i32, i32, i32) {
    %c0_i32 = arith.constant 0 : i32
    %c0_i32_0 = arith.constant 0 : i32
    %c0_i32_1 = arith.constant 0 : i32
    return %c0_i32, %c0_i32_0, %arg0 : i32, i32, i32
  }
  func.func @transform_1(%arg0: i32) -> (i32, i32, i32) {
    %c0_i32 = arith.constant 0 : i32
    %c0_i32_0 = arith.constant 0 : i32
    %c0_i32_1 = arith.constant 0 : i32
    return %arg0, %c0_i32, %c0_i32_0 : i32, i32, i32
  }
  func.func @transform_2(%arg0: i32) -> (i32, i32, i32, i32) {
    %c0_i32 = arith.constant 0 : i32
    %c0_i32_0 = arith.constant 0 : i32
    %c0_i32_1 = arith.constant 0 : i32
    %c0_i32_2 = arith.constant 0 : i32
    return %arg0, %c0_i32, %c0_i32_0, %c0_i32_1 : i32, i32, i32, i32
  }
  func.func @transform_3(%arg0: i32) -> (i32, i32, i32) {
    %c0_i32 = arith.constant 0 : i32
    %c0_i32_0 = arith.constant 0 : i32
    %c0_i32_1 = arith.constant 0 : i32
    return %arg0, %c0_i32, %c0_i32_0 : i32, i32, i32
  }
}

</mosaic_0001>

<llo_original>
// kernel: encoder_forward.4
$region0: #{encoder_forward.4}
  #allocation0 [shape = 'u32[]', space=smem, size = 0x4, offset = 0x4, fixed_abs, tag = 'smem constant byte address 0x4 - core index']
  #allocation1 [shape = 'u32[144,128]{1,0:T(1,128)}', space=vmem, size = 0x12000, scoped, tag = 'internal scratch']
  %s0 = inlined_call_operand.vmem [shape: bf16[16,16], index: 0, kind: input, shape index: {}]
  %s1 = inlined_call_operand.vmem [shape: bf16[16,256], index: 1, kind: input, shape index: {}]
  %s2 = inlined_call_operand.vmem [shape: f32[1,256], index: 2, kind: input, shape index: {}]
  %s3 = inlined_call_operand.vmem [shape: bf16[16,256], index: 3, kind: output, shape index: {}]
  %s4 = sld [smem:[#allocation0]]
  $region22: #{encoder_forward.4} parent=0
    _
  %s6 = ssub.s32 1, %s4
  %s7 = scalar_select 0, %s6, %s4
  // Predicated region
  $region2: #{encoder_forward.4} parent=0 // pred_check
    _
  $region3: #{encoder_forward.4} parent=0 // pred_check_branch
    %9 = sbr.rel (0) target = $region5
  $region4: #{encoder_forward.4} parent=0 // pred_region
    _
  $region5: #{encoder_forward.4} parent=0 // pred_fallthru
    _
  // Predicated region
  $region6: #{encoder_forward.4} parent=0 // pred_check
    _
  $region7: #{encoder_forward.4} parent=0 // pred_check_branch
    %11 = sbr.rel (0) target = $region9
  $region8: #{encoder_forward.4} parent=0 // pred_region
    _
  $region9: #{encoder_forward.4} parent=0 // pred_fallthru
    _
  // Predicated region
  $region10: #{encoder_forward.4} parent=0 // pred_check
    _
  $region11: #{encoder_forward.4} parent=0 // pred_check_branch
    %13 = sbr.rel (0) target = $region13
  $region12: #{encoder_forward.4} parent=0 // pred_region
    _
  $region13: #{encoder_forward.4} parent=0 // pred_fallthru
    _
  %v15 = vld [vmem:[%s0] sm:$0xf]
  %v16 = vld [vmem:[%s0 + $0x4] sm:$0xf]
  %v17 = vld [vmem:[%s1] sm:$0xff]
  %v18 = vld [vmem:[%s1 + $0x8] sm:$0xff]
  %v19 = vld [vmem:[%s2] sm:$0x3]
  %v21 = vlaneseq
  %v22 = vshrl.u32 %v21, 7
  %v23 = vsub.s32 0, %v22
  %v24 = vrot.slane %v19, %v23
  %v25 = vlaneseq
  %v26 = vshrl.u32 %v25, 7
  %v27 = vsub.s32 1, %v26
  %v28 = vrot.slane %v19, %v27
  %v33 = vunpack.c.l.b16 %v15
  %v34 = vunpack.c.l.b16 %v16
  %v35 = vpack.c.b16 %v34, %v33
  %v38 = vunpack.c.l.b16 %v17
  %v39 = vunpack.c.h.b16 %v17
  %v40 = vunpack.c.l.b16 %v18
  %v41 = vunpack.c.h.b16 %v18
  %v42 = vpack.c.b16 %v40, %v38
  %v43 = vpack.c.b16 %v41, %v39
  %vm46 = vcmask 130048
  %v48 = vsel %vm46, %v35, 0
  %50 = vmatprep.subr.bf16.mxu0 %v43
  %51 = vmatpush1.bf16.msra.mxu0 %v42
  %52 = vmatprep.subr.bf16.mxu0 0
  %53 = vmatpush1.bf16.msra.mxu0 0
  %54 = vmatprep.subr.bf16.mxu0 0
  %55 = vmatpush1.bf16.msra.mxu0 0
  %56 = vmatprep.subr.bf16.mxu0 0
  %57 = vmatpush1.bf16.msra.mxu0 0
  %58 = vmatprep.subr.bf16.mxu0 0
  %59 = vmatpush1.bf16.msra.mxu0 0
  %60 = vmatprep.subr.bf16.mxu0 0
  %61 = vmatpush1.bf16.msra.mxu0 0
  %62 = vmatprep.subr.bf16.mxu0 0
  %63 = vmatpush1.bf16.msra.mxu0 0
  %64 = vmatprep.subr.bf16.mxu0 0
  %65 = vmatpush1.bf16.msra.mxu0 0
  %66 = vmatprep.subr.bf16.mxu0 0
  %67 = vmatpush1.bf16.msra.mxu0 0
  %68 = vmatprep.subr.bf16.mxu0 0
  %69 = vmatpush1.bf16.msra.mxu0 0
  %70 = vmatprep.subr.bf16.mxu0 0
  %71 = vmatpush1.bf16.msra.mxu0 0
  %72 = vmatprep.subr.bf16.mxu0 0
  %73 = vmatpush1.bf16.msra.mxu0 0
  %74 = vmatprep.subr.bf16.mxu0 0
  %75 = vmatpush1.bf16.msra.mxu0 0
  %76 = vmatprep.subr.bf16.mxu0 0
  %77 = vmatpush1.bf16.msra.mxu0 0
  %78 = vmatprep.subr.bf16.mxu0 0
  %79 = vmatpush1.bf16.msra.mxu0 0
  %80 = vmatprep.subr.bf16.mxu0 0
  %81 = vmatpush1.bf16.msra.mxu0 0
  %82 = vmatprep.mubr.bf16.mxu0 0
  %83 = vmatmul.mubr.bf16.gmra.mrb[0].mxu0 %v48
  %v84 = vpop.f32.mrb[0].mxu0
  %v85 = vadd.f32 %v24, %v84
  %v86 = vpop.f32.mrb[0].mxu0
  %v87 = vadd.f32 %v28, %v86
  %v88 = vpop.f32.mrb[0].mxu0
  %v89 = vadd.f32 %v24, %v88
  %v90 = vpop.f32.mrb[0].mxu0
  %v91 = vadd.f32 %v28, %v90
  %92 = vdwg.mxu0
  %v93 = vpack.c.bf16 %v89, %v85
  %v94 = vpack.c.bf16 %v91, %v87
  %v97 = vunpack.c.l.b16 %v93
  %v98 = vunpack.c.l.b16 %v94
  %v99 = vunpack.c.h.b16 %v93
  %v100 = vunpack.c.h.b16 %v94
  %v101 = vpack.c.b16 %v98, %v97
  %v102 = vpack.c.b16 %v100, %v99
  %105 = vst [vmem:[%s3] sm:$0xff] %v101
  %106 = vst [vmem:[%s3 + $0x8] sm:$0xff] %v102
  // Predicated region
  $region14: #{encoder_forward.4} parent=0 // pred_check
    _
  $region15: #{encoder_forward.4} parent=0 // pred_check_branch
    %108 = sbr.rel (0) target = $region17
  $region16: #{encoder_forward.4} parent=0 // pred_region
    _
  $region17: #{encoder_forward.4} parent=0 // pred_fallthru
    _
  // Predicated region
  $region18: #{encoder_forward.4} parent=0 // pred_check
    _
  $region19: #{encoder_forward.4} parent=0 // pred_check_branch
    %110 = sbr.rel (0) target = $region21
  $region20: #{encoder_forward.4} parent=0 // pred_region
    _
  $region21: #{encoder_forward.4} parent=0 // pred_fallthru
    _

// kernel: encoder_forward.6
$region0: #{encoder_forward.6}
  #allocation0 [shape = 'u32[]', space=smem, size = 0x4, offset = 0x4, fixed_abs, tag = 'smem constant byte address 0x4 - core index']
  #allocation1 [shape = 'u32[144,128]{1,0:T(1,128)}', space=vmem, size = 0x12000, scoped, tag = 'internal scratch']
  %s0 = inlined_call_operand.vmem [shape: bf16[16,64], index: 0, kind: input, shape index: {}]
  %s1 = inlined_call_operand.vmem [shape: bf16[64,256], index: 1, kind: input, shape index: {}]
  %s2 = inlined_call_operand.vmem [shape: f32[1,256], index: 2, kind: input, shape index: {}]
  %s3 = inlined_call_operand.vmem [shape: bf16[16,256], index: 3, kind: output, shape index: {}]
  %s4 = sld [smem:[#allocation0]]
  $region22: #{encoder_forward.6} parent=0
    _
  %s6 = ssub.s32 1, %s4
  %s7 = scalar_select 0, %s6, %s4
  // Predicated region
  $region2: #{encoder_forward.6} parent=0 // pred_check
    _
  $region3: #{encoder_forward.6} parent=0 // pred_check_branch
    %9 = sbr.rel (0) target = $region5
  $region4: #{encoder_forward.6} parent=0 // pred_region
    _
  $region5: #{encoder_forward.6} parent=0 // pred_fallthru
    _
  // Predicated region
  $region6: #{encoder_forward.6} parent=0 // pred_check
    _
  $region7: #{encoder_forward.6} parent=0 // pred_check_branch
    %11 = sbr.rel (0) target = $region9
  $region8: #{encoder_forward.6} parent=0 // pred_region
    _
  $region9: #{encoder_forward.6} parent=0 // pred_fallthru
    _
  // Predicated region
  $region10: #{encoder_forward.6} parent=0 // pred_check
    _
  $region11: #{encoder_forward.6} parent=0 // pred_check_branch
    %13 = sbr.rel (0) target = $region13
  $region12: #{encoder_forward.6} parent=0 // pred_region
    _
  $region13: #{encoder_forward.6} parent=0 // pred_fallthru
    _
  %v15 = vld [vmem:[%s0] sm:$0xf]
  %v16 = vld [vmem:[%s0 + $0x4] sm:$0xf]
  %v17 = vld [vmem:[%s1] sm:$0xff]
  %v18 = vld [vmem:[%s1 + $0x8] sm:$0xff]
  %v19 = vld [vmem:[%s1 + $0x10] sm:$0xff]
  %v20 = vld [vmem:[%s1 + $0x18] sm:$0xff]
  %v21 = vld [vmem:[%s1 + $0x20] sm:$0xff]
  %v22 = vld [vmem:[%s1 + $0x28] sm:$0xff]
  %v23 = vld [vmem:[%s1 + $0x30] sm:$0xff]
  %v24 = vld [vmem:[%s1 + $0x38] sm:$0xff]
  %v25 = vld [vmem:[%s2] sm:$0x3]
  %v27 = vlaneseq
  %v28 = vshrl.u32 %v27, 7
  %v29 = vsub.s32 0, %v28
  %v30 = vrot.slane %v25, %v29
  %v31 = vlaneseq
  %v32 = vshrl.u32 %v31, 7
  %v33 = vsub.s32 1, %v32
  %v34 = vrot.slane %v25, %v33
  %v39 = vunpack.c.l.b16 %v15
  %v40 = vunpack.c.l.b16 %v16
  %v41 = vpack.c.b16 %v40, %v39
  %v50 = vunpack.c.l.b16 %v17
  %v51 = vunpack.c.h.b16 %v17
  %v52 = vunpack.c.l.b16 %v18
  %v53 = vunpack.c.h.b16 %v18
  %v54 = vunpack.c.l.b16 %v19
  %v55 = vunpack.c.h.b16 %v19
  %v56 = vunpack.c.l.b16 %v20
  %v57 = vunpack.c.h.b16 %v20
  %v58 = vunpack.c.l.b16 %v21
  %v59 = vunpack.c.h.b16 %v21
  %v60 = vunpack.c.l.b16 %v22
  %v61 = vunpack.c.h.b16 %v22
  %v62 = vunpack.c.l.b16 %v23
  %v63 = vunpack.c.h.b16 %v23
  %v64 = vunpack.c.l.b16 %v24
  %v65 = vunpack.c.h.b16 %v24
  %v66 = vpack.c.b16 %v52, %v50
  %v67 = vpack.c.b16 %v53, %v51
  %v68 = vpack.c.b16 %v56, %v54
  %v69 = vpack.c.b16 %v57, %v55
  %v70 = vpack.c.b16 %v60, %v58
  %v71 = vpack.c.b16 %v61, %v59
  %v72 = vpack.c.b16 %v64, %v62
  %v73 = vpack.c.b16 %v65, %v63
  %vm82 = vcmask 523264
  %v84 = vsel %vm82, %v41, 0
  %86 = vmatprep.subr.bf16.mxu0 %v67
  %87 = vmatpush1.bf16.msra.mxu0 %v66
  %88 = vmatprep.subr.bf16.mxu0 %v69
  %89 = vmatpush1.bf16.msra.mxu0 %v68
  %90 = vmatprep.subr.bf16.mxu0 %v71
  %91 = vmatpush1.bf16.msra.mxu0 %v70
  %92 = vmatprep.subr.bf16.mxu0 %v73
  %93 = vmatpush1.bf16.msra.mxu0 %v72
  %94 = vmatprep.subr.bf16.mxu0 0
  %95 = vmatpush1.bf16.msra.mxu0 0
  %96 = vmatprep.subr.bf16.mxu0 0
  %97 = vmatpush1.bf16.msra.mxu0 0
  %98 = vmatprep.subr.bf16.mxu0 0
  %99 = vmatpush1.bf16.msra.mxu0 0
  %100 = vmatprep.subr.bf16.mxu0 0
  %101 = vmatpush1.bf16.msra.mxu0 0
  %102 = vmatprep.subr.bf16.mxu0 0
  %103 = vmatpush1.bf16.msra.mxu0 0
  %104 = vmatprep.subr.bf16.mxu0 0
  %105 = vmatpush1.bf16.msra.mxu0 0
  %106 = vmatprep.subr.bf16.mxu0 0
  %107 = vmatpush1.bf16.msra.mxu0 0
  %108 = vmatprep.subr.bf16.mxu0 0
  %109 = vmatpush1.bf16.msra.mxu0 0
  %110 = vmatprep.subr.bf16.mxu0 0
  %111 = vmatpush1.bf16.msra.mxu0 0
  %112 = vmatprep.subr.bf16.mxu0 0
  %113 = vmatpush1.bf16.msra.mxu0 0
  %114 = vmatprep.subr.bf16.mxu0 0
  %115 = vmatpush1.bf16.msra.mxu0 0
  %116 = vmatprep.subr.bf16.mxu0 0
  %117 = vmatpush1.bf16.msra.mxu0 0
  %118 = vmatprep.mubr.bf16.mxu0 0
  %119 = vmatmul.mubr.bf16.gmra.mrb[0].mxu0 %v84
  %v120 = vpop.f32.mrb[0].mxu0
  %v121 = vadd.f32 %v30, %v120
  %v122 = vpop.f32.mrb[0].mxu0
  %v123 = vadd.f32 %v34, %v122
  %v124 = vpop.f32.mrb[0].mxu0
  %v125 = vadd.f32 %v30, %v124
  %v126 = vpop.f32.mrb[0].mxu0
  %v127 = vadd.f32 %v34, %v126
  %128 = vdwg.mxu0
  %v129 = vpack.c.bf16 %v125, %v121
  %v130 = vpack.c.bf16 %v127, %v123
  %v133 = vunpack.c.l.b16 %v129
  %v134 = vunpack.c.l.b16 %v130
  %v135 = vunpack.c.h.b16 %v129
  %v136 = vunpack.c.h.b16 %v130
  %v137 = vpack.c.b16 %v134, %v133
  %v138 = vpack.c.b16 %v136, %v135
  %141 = vst [vmem:[%s3] sm:$0xff] %v137
  %142 = vst [vmem:[%s3 + $0x8] sm:$0xff] %v138
  // Predicated region
  $region14: #{encoder_forward.6} parent=0 // pred_check
    _
  $region15: #{encoder_forward.6} parent=0 // pred_check_branch
    %144 = sbr.rel (0) target = $region17
  $region16: #{encoder_forward.6} parent=0 // pred_region
    _
  $region17: #{encoder_forward.6} parent=0 // pred_fallthru
    _
  // Predicated region
  $region18: #{encoder_forward.6} parent=0 // pred_check
    _
  $region19: #{encoder_forward.6} parent=0 // pred_check_branch
    %146 = sbr.rel (0) target = $region21
  $region20: #{encoder_forward.6} parent=0 // pred_region
    _
  $region21: #{encoder_forward.6} parent=0 // pred_fallthru
    _

// kernel: encoder_forward.7
$region0: #{encoder_forward.7}
  #allocation0 [shape = 'u32[]', space=smem, size = 0x4, offset = 0x4, fixed_abs, tag = 'smem constant byte address 0x4 - core index']
  #allocation1 [shape = 'u32[144,128]{1,0:T(1,128)}', space=vmem, size = 0x12000, scoped, tag = 'internal scratch']
  %s0 = inlined_call_operand.vmem [shape: bf16[8,2,256], index: 0, kind: input, shape index: {}]
  %s1 = inlined_call_operand.vmem [shape: bf16[2,32,128], index: 1, kind: input, shape index: {}]
  %s2 = inlined_call_operand.vmem [shape: f32[2,8,2,32], index: 2, kind: output, shape index: {0}]
  %s3 = inlined_call_operand.vmem [shape: f32[2,2,32], index: 3, kind: output, shape index: {1}]
  %4 = xla_tuple %s2, %s3
  %s5 = sld [smem:[#allocation0]]
  $region98: #{encoder_forward.7} parent=0
    _
  %s7 = ssub.s32 1, %s5
  %s8 = scalar_select 0, %s7, %s5
  $region1: #{encoder_forward.7} parent=0
    #allocation2 [shape = 'u8[8192]{0}', space=vmem, size = 0x2000, scoped, tag = 'input window, operand 0']
    loop: start=0, step=1, limit=4
    $region2: #{encoder_forward.7} parent=1 // loop_pre_header
      _
    $region3: #{encoder_forward.7} parent=1 // loop_header
      %s10 = sphi 0, %s14
      %p11 = scmp.ge.s32.totalorder %s10, 4
      %s20 = sphi 0, %s22
      %s23 = sphi 0, %s20
      %s24 = sphi 0, %s23
      %s40 = sphi 0, %s24
      %s46 = sphi 0, %s48
      %s49 = sphi 0, %s46
      %s50 = sphi 0, %s49
      %s66 = sphi 0, %s50
      %s72 = sphi 0, %s74
      %s75 = sphi 0, %s72
      %s76 = sphi 0, %s75
      %s92 = sphi 0, %s76
      %s98 = sphi 0, %s100
      %s101 = sphi 0, %s98
      %s102 = sphi 0, %s101
      %s118 = sphi 0, %s102
    $region4: #{encoder_forward.7} parent=1 // loop_header_branch
      %13 = sbr.rel (%p11) target = $region8
    $region5: #{encoder_forward.7} parent=1 // loop_body
      %s15 = ssub.s32 %s10, 1
      %s16 = ssub.s32 %s10, 2
      %s17 = sadd.s32 %s10, 1
      %s18 = ssub.s32 %s10, %s17
      %p19 = scmp.eq.s32.totalorder %s18, 0
      %s21 = sadd.s32 %s20, 1
      %s22 = scalar_select %p19, %s20, %s21
      %p25 = pneg %p19
      %p26 = scmp.eq.s32.totalorder %s10, 1
      %p27 = por %p25, %p26
      %p28 = scmp.ne.s32.totalorder %s20, %s23
      %p29 = scmp.eq.s32.totalorder %s10, 0
      %p30 = por %p28, %p29
      %p31 = scmp.ne.s32.totalorder %s20, %s23
      %p32 = scmp.eq.s32.totalorder %s15, 1
      %p33 = por %p31, %p32
      %p34 = scmp.ne.s32.totalorder %s23, %s24
      %p35 = scmp.eq.s32.totalorder %s15, 0
      %p36 = por %p34, %p35
      %p37 = scmp.ne.s32.totalorder %s23, %s24
      %p38 = scmp.eq.s32.totalorder %s16, 1
      %p39 = por %p37, %p38
      %p41 = scmp.ne.s32.totalorder %s24, %s40
      %p42 = scmp.eq.s32.totalorder %s16, 0
      %p43 = por %p41, %p42
      %s44 = ssub.s32 %s10, %s17
      %p45 = scmp.eq.s32.totalorder %s44, 0
      %s47 = sadd.s32 %s46, 1
      %s48 = scalar_select %p45, %s46, %s47
      %p51 = pneg %p45
      %p52 = scmp.eq.s32.totalorder %s10, 1
      %p53 = por %p51, %p52
      %p54 = scmp.ne.s32.totalorder %s46, %s49
      %p55 = scmp.eq.s32.totalorder %s10, 0
      %p56 = por %p54, %p55
      %p57 = scmp.ne.s32.totalorder %s46, %s49
      %p58 = scmp.eq.s32.totalorder %s15, 1
      %p59 = por %p57, %p58
      %p60 = scmp.ne.s32.totalorder %s49, %s50
      %p61 = scmp.eq.s32.totalorder %s15, 0
      %p62 = por %p60, %p61
      %p63 = scmp.ne.s32.totalorder %s49, %s50
      %p64 = scmp.eq.s32.totalorder %s16, 1
      %p65 = por %p63, %p64
      %p67 = scmp.ne.s32.totalorder %s50, %s66
      %p68 = scmp.eq.s32.totalorder %s16, 0
      %p69 = por %p67, %p68
      %s70 = ssub.s32 %s10, %s17
      %p71 = scmp.eq.s32.totalorder %s70, 0
      %s73 = sadd.s32 %s72, 1
      %s74 = scalar_select %p71, %s72, %s73
      %p77 = pneg %p71
      %p78 = scmp.eq.s32.totalorder %s10, 1
      %p79 = por %p77, %p78
      %p80 = scmp.ne.s32.totalorder %s72, %s75
      %p81 = scmp.eq.s32.totalorder %s10, 0
      %p82 = por %p80, %p81
      %p83 = scmp.ne.s32.totalorder %s72, %s75
      %p84 = scmp.eq.s32.totalorder %s15, 1
      %p85 = por %p83, %p84
      %p86 = scmp.ne.s32.totalorder %s75, %s76
      %p87 = scmp.eq.s32.totalorder %s15, 0
      %p88 = por %p86, %p87
      %p89 = scmp.ne.s32.totalorder %s75, %s76
      %p90 = scmp.eq.s32.totalorder %s16, 1
      %p91 = por %p89, %p90
      %p93 = scmp.ne.s32.totalorder %s76, %s92
      %p94 = scmp.eq.s32.totalorder %s16, 0
      %p95 = por %p93, %p94
      %s96 = ssub.s32 %s10, %s17
      %p97 = scmp.eq.s32.totalorder %s96, 0
      %s99 = sadd.s32 %s98, 1
      %s100 = scalar_select %p97, %s98, %s99
      %p103 = pneg %p97
      %p104 = scmp.eq.s32.totalorder %s10, 1
      %p105 = por %p103, %p104
      %p106 = scmp.ne.s32.totalorder %s98, %s101
      %p107 = scmp.eq.s32.totalorder %s10, 0
      %p108 = por %p106, %p107
      %p109 = scmp.ne.s32.totalorder %s98, %s101
      %p110 = scmp.eq.s32.totalorder %s15, 1
      %p111 = por %p109, %p110
      %p112 = scmp.ne.s32.totalorder %s101, %s102
      %p113 = scmp.eq.s32.totalorder %s15, 0
      %p114 = por %p112, %p113
      %p115 = scmp.ne.s32.totalorder %s101, %s102
      %p116 = scmp.eq.s32.totalorder %s16, 1
      %p117 = por %p115, %p116
      %p119 = scmp.ne.s32.totalorder %s102, %s118
      %p120 = scmp.eq.s32.totalorder %s16, 0
      %p121 = por %p119, %p120
      %p122 = scmp.le.s32.totalorder 1, %s10
      %p123 = scmp.lt.s32.totalorder %s10, 3
      %p124 = pnand %p122, %p123
      %p125 = pneg %p124
      // Predicated region
      $region9: #{encoder_forward.7} parent=5 // pred_check
        _
      $region10: #{encoder_forward.7} parent=5 // pred_check_branch
        %127 = sbr.rel (%p124) target = $region12
      $region11: #{encoder_forward.7} parent=5 // pred_region
        %s128 = ssub.s32 %s10, 1
      $region12: #{encoder_forward.7} parent=5 // pred_fallthru
        _
      %p129 = scmp.lt.s32.totalorder %s10, 2
      // Predicated region
      $region13: #{encoder_forward.7} parent=5 // pred_check
        %p130 = pneg %p129
      $region14: #{encoder_forward.7} parent=5 // pred_check_branch
        %132 = sbr.rel (%p130) target = $region16
      $region15: #{encoder_forward.7} parent=5 // pred_region
        // Predicated region
        $region17: #{encoder_forward.7} parent=15 // pred_check
          %p133 = pneg %p30
        $region18: #{encoder_forward.7} parent=15 // pred_check_branch
          %135 = sbr.rel (%p133) target = $region20
        $region19: #{encoder_forward.7} parent=15 // pred_region
          %s136 = sand.u32 %s20, 1
          %s137 = sand.u32 %s20, 1
          %s138 = smul.addr %s137, 8
          %s139 = scalar_lea.vmem [#allocation2], %s138
          %s140 = scalar_lea.vmem %s0, %s10
          // Predicated region
          $region21: #{encoder_forward.7} parent=19 // pred_check
            _
          $region22: #{encoder_forward.7} parent=19 // pred_check_branch
            %142 = sbr.rel (0) target = $region24
          $region23: #{encoder_forward.7} parent=19 // pred_region
            // Predicated region
            $region25: #{encoder_forward.7} parent=23 // pred_check
              _
            $region26: #{encoder_forward.7} parent=23 // pred_check_branch
              %144 = sbr.rel target = $region28
            $region27: #{encoder_forward.7} parent=23 // pred_region
              // Predicated region
              $region40: #{encoder_forward.7} parent=27 // pred_check
                _
              $region41: #{encoder_forward.7} parent=27 // pred_check_branch
                %173 = sbr.rel (0) target = $region43
              $region42: #{encoder_forward.7} parent=27 // pred_region
                loop: start=0, step=1, limit=1
                $region44: #{encoder_forward.7} parent=42 // loop_pre_header
                  _
                $region45: #{encoder_forward.7} parent=42 // loop_header
                  %s175 = sphi 0, %s179
                  %p176 = scmp.ge.s32.totalorder %s175, 1
                  %s180 = sphi %s140, %s140
                  %s181 = sphi %s139, %s139
                $region46: #{encoder_forward.7} parent=42 // loop_header_branch
                  %178 = sbr.rel (%p176) target = $region50
                $region47: #{encoder_forward.7} parent=42 // loop_body
                  _
                $region48: #{encoder_forward.7} parent=42 // loop_footer
                  %s179 = sadd.s32 1, %s175
                $region49: #{encoder_forward.7} parent=42 // loop_footer_branch
                  %174 = sbr.rel target = $region45
                $region50: #{encoder_forward.7} parent=42 // loop_exit
                  _
                loop: start=0, step=1, limit=1
                $region51: #{encoder_forward.7} parent=42 // loop_pre_header
                  _
                $region52: #{encoder_forward.7} parent=42 // loop_header
                  %s184 = sphi 0, %s188
                  %p185 = scmp.ge.s32.totalorder %s184, 1
                  %s189 = sphi %s140, %s140
                  %s190 = sphi %s139, %s139
                $region53: #{encoder_forward.7} parent=42 // loop_header_branch
                  %187 = sbr.rel (%p185) target = $region57
                $region54: #{encoder_forward.7} parent=42 // loop_body
                  %v191 = vld [vmem:[%s189] sm:$0x1]
                  %192 = vst [vmem:[%s190] sm:$0x1] %v191
                  %v193 = vld [vmem:[%s189 + $0x2] sm:$0x1]
                  %194 = vst [vmem:[%s190 + $0x1] sm:$0x1] %v193
                  %v195 = vld [vmem:[%s189 + $0x4] sm:$0x1]
                  %196 = vst [vmem:[%s190 + $0x2] sm:$0x1] %v195
                  %v197 = vld [vmem:[%s189 + $0x6] sm:$0x1]
                  %198 = vst [vmem:[%s190 + $0x3] sm:$0x1] %v197
                  %v199 = vld [vmem:[%s189 + $0x8] sm:$0x1]
                  %200 = vst [vmem:[%s190 + $0x4] sm:$0x1] %v199
                  %v201 = vld [vmem:[%s189 + $0xa] sm:$0x1]
                  %202 = vst [vmem:[%s190 + $0x5] sm:$0x1] %v201
                  %v203 = vld [vmem:[%s189 + $0xc] sm:$0x1]
                  %204 = vst [vmem:[%s190 + $0x6] sm:$0x1] %v203
                  %v205 = vld [vmem:[%s189 + $0xe] sm:$0x1]
                  %206 = vst [vmem:[%s190 + $0x7] sm:$0x1] %v205
                $region55: #{encoder_forward.7} parent=42 // loop_footer
                  %s188 = sadd.s32 1, %s184
                $region56: #{encoder_forward.7} parent=42 // loop_footer_branch
                  %183 = sbr.rel target = $region52
                $region57: #{encoder_forward.7} parent=42 // loop_exit
                  _
              $region43: #{encoder_forward.7} parent=27 // pred_fallthru
                _
            $region28: #{encoder_forward.7} parent=23 // pred_fallthru
              _
            // Predicated region
            $region29: #{encoder_forward.7} parent=23 // pred_check
              _
            $region30: #{encoder_forward.7} parent=23 // pred_check_branch
              %146 = sbr.rel (0) target = $region32
            $region31: #{encoder_forward.7} parent=23 // pred_region
              loop: start=0, step=1, limit=1
              $region33: #{encoder_forward.7} parent=31 // loop_pre_header
                _
              $region34: #{encoder_forward.7} parent=31 // loop_header
                %s149 = sphi 0, %s153
                %p150 = scmp.ge.s32.totalorder %s149, 1
                %s154 = sphi %s140, %s140
                %s155 = sphi %s139, %s139
              $region35: #{encoder_forward.7} parent=31 // loop_header_branch
                %152 = sbr.rel (%p150) target = $region39
              $region36: #{encoder_forward.7} parent=31 // loop_body
                %v156 = vld [vmem:[%s154] sm:$0x1]
                %157 = vst [vmem:[%s155] sm:$0x1] %v156
                %v158 = vld [vmem:[%s154 + $0x2] sm:$0x1]
                %159 = vst [vmem:[%s155 + $0x1] sm:$0x1] %v158
                %v160 = vld [vmem:[%s154 + $0x4] sm:$0x1]
                %161 = vst [vmem:[%s155 + $0x2] sm:$0x1] %v160
                %v162 = vld [vmem:[%s154 + $0x6] sm:$0x1]
                %163 = vst [vmem:[%s155 + $0x3] sm:$0x1] %v162
                %v164 = vld [vmem:[%s154 + $0x8] sm:$0x1]
                %165 = vst [vmem:[%s155 + $0x4] sm:$0x1] %v164
                %v166 = vld [vmem:[%s154 + $0xa] sm:$0x1]
                %167 = vst [vmem:[%s155 + $0x5] sm:$0x1] %v166
                %v168 = vld [vmem:[%s154 + $0xc] sm:$0x1]
                %169 = vst [vmem:[%s155 + $0x6] sm:$0x1] %v168
                %v170 = vld [vmem:[%s154 + $0xe] sm:$0x1]
                %171 = vst [vmem:[%s155 + $0x7] sm:$0x1] %v170
              $region37: #{encoder_forward.7} parent=31 // loop_footer
                %s153 = sadd.s32 1, %s149
              $region38: #{encoder_forward.7} parent=31 // loop_footer_branch
                %148 = sbr.rel target = $region34
              $region39: #{encoder_forward.7} parent=31 // loop_exit
                _
            $region32: #{encoder_forward.7} parent=23 // pred_fallthru
              _
          $region24: #{encoder_forward.7} parent=19 // pred_fallthru
            _
          %207 = vnop
        $region20: #{encoder_forward.7} parent=15 // pred_fallthru
          _
        // Predicated region
        $region58: #{encoder_forward.7} parent=15 // pred_check
          %p208 = pneg %p56
        $region59: #{encoder_forward.7} parent=15 // pred_check_branch
          %210 = sbr.rel (%p208) target = $region61
        $region60: #{encoder_forward.7} parent=15 // pred_region
          %p211 = scmp.lt.s32.totalorder %s10, 1
          %s212 = scalar_select %p211, %s10, 1
          %s213 = smul.addr %s212, 4
          %s214 = smul.addr %s213, 4
          %s215 = scalar_lea.vmem %s1, %s214
        $region61: #{encoder_forward.7} parent=15 // pred_fallthru
          _
      $region16: #{encoder_forward.7} parent=5 // pred_fallthru
        _
      %p216 = scmp.le.s32.totalorder 1, %s10
      %p217 = scmp.lt.s32.totalorder %s10, 3
      %p218 = pnand %p216, %p217
      %p219 = pneg %p218
      // Predicated region
      $region62: #{encoder_forward.7} parent=5 // pred_check
        _
      $region63: #{encoder_forward.7} parent=5 // pred_check_branch
        %221 = sbr.rel (%p218) target = $region65
      $region64: #{encoder_forward.7} parent=5 // pred_region
        %s222 = ssub.s32 %s10, 1
        %s223 = sand.u32 %s23, 1
        %s224 = sand.u32 %s23, 1
        %s225 = smul.addr %s224, 8
        %s226 = scalar_lea.vmem [#allocation2], %s225
        // Predicated region
        $region66: #{encoder_forward.7} parent=64 // pred_check
          %p227 = pneg %p36
        $region67: #{encoder_forward.7} parent=64 // pred_check_branch
          %229 = sbr.rel (%p227) target = $region69
        $region68: #{encoder_forward.7} parent=64 // pred_region
          _
        $region69: #{encoder_forward.7} parent=64 // pred_fallthru
          _
        %s230 = sand.u32 %s23, 1
        %s231 = sand.u32 %s23, 1
        %s232 = smul.addr %s231, 8
        %s233 = scalar_lea.vmem [#allocation2], %s232
        %p234 = pneg %p36
        %p235 = pneg %p33
        %p236 = scmp.lt.s32.totalorder %s15, 1
        %s237 = scalar_select %p236, %s15, 1
        %s238 = smul.addr %s237, 4
        %s239 = smul.addr %s238, 4
        %s240 = scalar_lea.vmem %s1, %s239
        %p241 = pneg %p62
        %p242 = pneg %p59
        %p243 = pneg %p88
        %p244 = pneg %p85
        %p245 = scmp.lt.s32.totalorder %s15, 1
        %s246 = scalar_select %p245, %s15, 1
        %s247 = smul.addr %s246, 8
        %s248 = smul.addr %s247, 2
        %s249 = scalar_lea.vmem %s2, %s248
        %p250 = pneg %p114
        %p251 = pneg %p111
        %p252 = scmp.lt.s32.totalorder %s15, 1
        %s253 = scalar_select %p252, %s15, 1
        %s254 = smul.addr %s253, 2
        %s255 = scalar_lea.vmem %s3, %s254
        %p256 = scmp.lt.s32.totalorder %s15, 1
        %s257 = scalar_select %p256, %s15, 1
        %s258 = smul.addr %s257, 4
        %s259 = smul.addr %s258, 4
        %s260 = scalar_lea.vmem %s1, %s259
        %p261 = scmp.lt.s32.totalorder %s15, 1
        %s262 = scalar_select %p261, %s15, 1
        %s263 = smul.addr %s262, 8
        %s264 = smul.addr %s263, 2
        %s265 = scalar_lea.vmem %s2, %s264
        %p266 = scmp.lt.s32.totalorder %s15, 1
        %s267 = scalar_select %p266, %s15, 1
        %s268 = smul.addr %s267, 2
        %s269 = scalar_lea.vmem %s3, %s268
        %v271 = vld [vmem:[%s260] sm:$0xf]
        %v272 = vld [vmem:[%s260 + $0x4] sm:$0xf]
        %v273 = vld [vmem:[%s260 + $0x8] sm:$0xf]
        %v274 = vld [vmem:[%s260 + $0xc] sm:$0xf]
        %p275 = scmp.eq.s32.totalorder %s15, 0
        // Predicated region
        $region70: #{encoder_forward.7} parent=64 // pred_check
          %p276 = pneg %p275
        $region71: #{encoder_forward.7} parent=64 // pred_check_branch
          %278 = sbr.rel (%p276) target = $region73
        $region72: #{encoder_forward.7} parent=64 // pred_region
          %v279 = vld [vmem:[%s226] sm:$0x1]
          %v280 = vunpack.c.l.bf16 %v279
          %v285 = vunpack.c.l.b16 %v271
          %v286 = vunpack.c.l.b16 %v272
          %v287 = vunpack.c.l.b16 %v273
          %v288 = vunpack.c.l.b16 %v274
          %v289 = vpack.c.b16 %v286, %v285
          %v290 = vpack.c.b16 %v288, %v287
          %vm293 = vcmask 261120
          %v295 = vsel %vm293, 0, 0
          %297 = vmatprep.subr.bf16.mxu0 0
          %298 = vmatpush1.bf16.msra.mxu0 %v289
          %299 = vmatprep.subr.bf16.mxu0 0
          %300 = vmatpush1.bf16.msra.mxu0 %v290
          %301 = vmatprep.subr.bf16.mxu0 0
          %302 = vmatpush1.bf16.msra.mxu0 0
          %303 = vmatprep.subr.bf16.mxu0 0
          %304 = vmatpush1.bf16.msra.mxu0 0
          %305 = vmatprep.subr.bf16.mxu0 0
          %306 = vmatpush1.bf16.msra.mxu0 0
          %307 = vmatprep.subr.bf16.mxu0 0
          %308 = vmatpush1.bf16.msra.mxu0 0
          %309 = vmatprep.subr.bf16.mxu0 0
          %310 = vmatpush1.bf16.msra.mxu0 0
          %311 = vmatprep.subr.bf16.mxu0 0
          %312 = vmatpush1.bf16.msra.mxu0 0
          %313 = vmatprep.subr.bf16.mxu0 0
          %314 = vmatpush1.bf16.msra.mxu0 0
          %315 = vmatprep.subr.bf16.mxu0 0
          %316 = vmatpush1.bf16.msra.mxu0 0
          %317 = vmatprep.subr.bf16.mxu0 0
          %318 = vmatpush1.bf16.msra.mxu0 0
          %319 = vmatprep.subr.bf16.mxu0 0
          %320 = vmatpush1.bf16.msra.mxu0 0
          %321 = vmatprep.subr.bf16.mxu0 0
          %322 = vmatpush1.bf16.msra.mxu0 0
          %323 = vmatprep.subr.bf16.mxu0 0
          %324 = vmatpush1.bf16.msra.mxu0 0
          %325 = vmatprep.subr.bf16.mxu0 0
          %326 = vmatpush1.bf16.msra.mxu0 0
          %327 = vmatprep.subr.bf16.mxu0 0
          %328 = vmatpush1.bf16.msra.mxu0 0
          %329 = vmatprep.mubr.bf16.mxu0 0
          %330 = vmatmul.mubr.bf16.gmra.mrb[0].mxu0 %v295
          %v331 = vpop.f32.mrb[0].mxu0
          %v332 = vadd.f32 0.0, %v331
          %v333 = vpop.f32.mrb[0].mxu0
          %v334 = vpop.f32.mrb[0].mxu0
          %v335 = vpop.f32.mrb[0].mxu0
          %336 = vdwg.mxu0
          %v337 = vadd.f32 %v280, %v332
          %v338 = vxor.u32 %v337, 2147483648
          %v339 = vmul.f32 %v338, 1.442695
          %v340 = vpow.pop %v339
          %v341 = vadd.f32 %v340, 1.0
          %v342 = vrcp.pop %v341
          %v343 = vmul.f32 1.0, %v342
          %v344 = vtanh.pop %v337
          %v345 = vmul.f32 %v343, 0.0
          %347 = vrot.lane.b32.xlu0 %v344, 64
          %v348 = vpop.permute.xlu0 %347
          %v350 = vmul.f32 %v343, %v348
          %352 = vrot.lane.b32.xlu0 %v350, 32
          %v353 = vpop.permute.xlu0 %352
          %v355 = vadd.f32 %v345, %v353
          %v356 = vtanh.pop %v355
          %358 = vrot.lane.b32.xlu0 %v356, 64
          %v359 = vpop.permute.xlu0 %358
          %v361 = vmul.f32 %v343, %v359
          %v364 = vunpack.c.l.s4 1983009808
          %v365 = vunpack.c.0.s8 %v364
          %v366 = vlaneseq
          %v367 = vshrl.u32 %v366, 7
          %v368 = vsub.s32 %v365, %v367
          %v369 = vrot.slane %v361, %v368
          %370 = vrot.lane.b32.xlu0 %v369, 32
          %v371 = vpop.permute.xlu0 %370
          %vm373 = vcmask 254976
          %374 = vst.msk [vmem:[%s265] sm:$0x3] %vm373, %v371
          %s375 = scalar_lea.vmem %s226, 1 [#allocation2]
          %v376 = vld [vmem:[%s375] sm:$0x1]
          %v377 = vunpack.c.l.bf16 %v376
          %v378 = vpack.c.bf16 %v361, %v361
          %380 = vrot.lane.b32.xlu0 %v378, 32
          %v381 = vpop.permute.xlu0 %380
          %v383 = vsel %vm293, %v381, 0
          %385 = vmatprep.subr.bf16.mxu0 0
          %386 = vmatpush1.bf16.msra.mxu0 %v289
          %387 = vmatprep.subr.bf16.mxu0 0
          %388 = vmatpush1.bf16.msra.mxu0 %v290
          %389 = vmatprep.subr.bf16.mxu0 0
          %390 = vmatpush1.bf16.msra.mxu0 0
          %391 = vmatprep.subr.bf16.mxu0 0
          %392 = vmatpush1.bf16.msra.mxu0 0
          %393 = vmatprep.subr.bf16.mxu0 0
          %394 = vmatpush1.bf16.msra.mxu0 0
          %395 = vmatprep.subr.bf16.mxu0 0
          %396 = vmatpush1.bf16.msra.mxu0 0
          %397 = vmatprep.subr.bf16.mxu0 0
          %398 = vmatpush1.bf16.msra.mxu0 0
          %399 = vmatprep.subr.bf16.mxu0 0
          %400 = vmatpush1.bf16.msra.mxu0 0
          %401 = vmatprep.subr.bf16.mxu0 0
          %402 = vmatpush1.bf16.msra.mxu0 0
          %403 = vmatprep.subr.bf16.mxu0 0
          %404 = vmatpush1.bf16.msra.mxu0 0
          %405 = vmatprep.subr.bf16.mxu0 0
          %406 = vmatpush1.bf16.msra.mxu0 0
          %407 = vmatprep.subr.bf16.mxu0 0
          %408 = vmatpush1.bf16.msra.mxu0 0
          %409 = vmatprep.subr.bf16.mxu0 0
          %410 = vmatpush1.bf16.msra.mxu0 0
          %411 = vmatprep.subr.bf16.mxu0 0
          %412 = vmatpush1.bf16.msra.mxu0 0
          %413 = vmatprep.subr.bf16.mxu0 0
          %414 = vmatpush1.bf16.msra.mxu0 0
          %415 = vmatprep.subr.bf16.mxu0 0
          %416 = vmatpush1.bf16.msra.mxu0 0
          %417 = vmatprep.mubr.bf16.mxu0 0
          %418 = vmatmul.mubr.bf16.gmra.mrb[0].mxu0 %v383
          %v419 = vpop.f32.mrb[0].mxu0
          %v420 = vadd.f32 0.0, %v419
          %v421 = vpop.f32.mrb[0].mxu0
          %v422 = vpop.f32.mrb[0].mxu0
          %v423 = vpop.f32.mrb[0].mxu0
          %424 = vdwg.mxu0
          %v425 = vadd.f32 %v377, %v420
          %v426 = vxor.u32 %v425, 2147483648
          %v427 = vmul.f32 %v426, 1.442695
          %v428 = vpow.pop %v427
          %v429 = vadd.f32 %v428, 1.0
          %v430 = vrcp.pop %v429
          %v431 = vmul.f32 1.0, %v430
          %v432 = vtanh.pop %v425
          %v433 = vmul.f32 %v431, %v355
          %435 = vrot.lane.b32.xlu0 %v432, 64
          %v436 = vpop.permute.xlu0 %435
          %v438 = vmul.f32 %v431, %v436
          %440 = vrot.lane.b32.xlu0 %v438, 32
          %v441 = vpop.permute.xlu0 %440
          %v443 = vadd.f32 %v433, %v441
          %v444 = vtanh.pop %v443
          %446 = vrot.lane.b32.xlu0 %v444, 64
          %v447 = vpop.permute.xlu0 %446
          %v449 = vmul.f32 %v431, %v447
          %v452 = vunpack.c.l.s4 1983009808
          %v453 = vunpack.c.0.s8 %v452
          %v454 = vlaneseq
          %v455 = vshrl.u32 %v454, 7
          %v456 = vsub.s32 %v453, %v455
          %v457 = vrot.slane %v449, %v456
          %458 = vrot.lane.b32.xlu0 %v457, 32
          %v459 = vpop.permute.xlu0 %458
          %s461 = scalar_lea.vmem %s265, 2
          %462 = vst.msk [vmem:[%s461] sm:$0x3] %vm373, %v459
          %s463 = scalar_lea.vmem %s226, 2 [#allocation2]
          %v464 = vld [vmem:[%s463] sm:$0x1]
          %v465 = vunpack.c.l.bf16 %v464
          %v466 = vpack.c.bf16 %v449, %v449
          %468 = vrot.lane.b32.xlu0 %v466, 32
          %v469 = vpop.permute.xlu0 %468
          %v471 = vsel %vm293, %v469, 0
          %473 = vmatprep.subr.bf16.mxu0 0
          %474 = vmatpush1.bf16.msra.mxu0 %v289
          %475 = vmatprep.subr.bf16.mxu0 0
          %476 = vmatpush1.bf16.msra.mxu0 %v290
          %477 = vmatprep.subr.bf16.mxu0 0
          %478 = vmatpush1.bf16.msra.mxu0 0
          %479 = vmatprep.subr.bf16.mxu0 0
          %480 = vmatpush1.bf16.msra.mxu0 0
          %481 = vmatprep.subr.bf16.mxu0 0
          %482 = vmatpush1.bf16.msra.mxu0 0
          %483 = vmatprep.subr.bf16.mxu0 0
          %484 = vmatpush1.bf16.msra.mxu0 0
          %485 = vmatprep.subr.bf16.mxu0 0
          %486 = vmatpush1.bf16.msra.mxu0 0
          %487 = vmatprep.subr.bf16.mxu0 0
          %488 = vmatpush1.bf16.msra.mxu0 0
          %489 = vmatprep.subr.bf16.mxu0 0
          %490 = vmatpush1.bf16.msra.mxu0 0
          %491 = vmatprep.subr.bf16.mxu0 0
          %492 = vmatpush1.bf16.msra.mxu0 0
          %493 = vmatprep.subr.bf16.mxu0 0
          %494 = vmatpush1.bf16.msra.mxu0 0
          %495 = vmatprep.subr.bf16.mxu0 0
          %496 = vmatpush1.bf16.msra.mxu0 0
          %497 = vmatprep.subr.bf16.mxu0 0
          %498 = vmatpush1.bf16.msra.mxu0 0
          %499 = vmatprep.subr.bf16.mxu0 0
          %500 = vmatpush1.bf16.msra.mxu0 0
          %501 = vmatprep.subr.bf16.mxu0 0
          %502 = vmatpush1.bf16.msra.mxu0 0
          %503 = vmatprep.subr.bf16.mxu0 0
          %504 = vmatpush1.bf16.msra.mxu0 0
          %505 = vmatprep.mubr.bf16.mxu0 0
          %506 = vmatmul.mubr.bf16.gmra.mrb[0].mxu0 %v471
          %v507 = vpop.f32.mrb[0].mxu0
          %v508 = vadd.f32 0.0, %v507
          %v509 = vpop.f32.mrb[0].mxu0
          %v510 = vpop.f32.mrb[0].mxu0
          %v511 = vpop.f32.mrb[0].mxu0
          %512 = vdwg.mxu0
          %v513 = vadd.f32 %v465, %v508
          %v514 = vxor.u32 %v513, 2147483648
          %v515 = vmul.f32 %v514, 1.442695
          %v516 = vpow.pop %v515
          %v517 = vadd.f32 %v516, 1.0
          %v518 = vrcp.pop %v517
          %v519 = vmul.f32 1.0, %v518
          %v520 = vtanh.pop %v513
          %v521 = vmul.f32 %v519, %v443
          %523 = vrot.lane.b32.xlu0 %v520, 64
          %v524 = vpop.permute.xlu0 %523
          %v526 = vmul.f32 %v519, %v524
          %528 = vrot.lane.b32.xlu0 %v526, 32
          %v529 = vpop.permute.xlu0 %528
          %v531 = vadd.f32 %v521, %v529
          %v532 = vtanh.pop %v531
          %534 = vrot.lane.b32.xlu0 %v532, 64
          %v535 = vpop.permute.xlu0 %534
          %v537 = vmul.f32 %v519, %v535
          %v540 = vunpack.c.l.s4 1983009808
          %v541 = vunpack.c.0.s8 %v540
          %v542 = vlaneseq
          %v543 = vshrl.u32 %v542, 7
          %v544 = vsub.s32 %v541, %v543
          %v545 = vrot.slane %v537, %v544
          %546 = vrot.lane.b32.xlu0 %v545, 32
          %v547 = vpop.permute.xlu0 %546
          %s549 = scalar_lea.vmem %s265, 4
          %550 = vst.msk [vmem:[%s549] sm:$0x3] %vm373, %v547
          %s551 = scalar_lea.vmem %s226, 3 [#allocation2]
          %v552 = vld [vmem:[%s551] sm:$0x1]
          %v553 = vunpack.c.l.bf16 %v552
          %v554 = vpack.c.bf16 %v537, %v537
          %556 = vrot.lane.b32.xlu0 %v554, 32
          %v557 = vpop.permute.xlu0 %556
          %v559 = vsel %vm293, %v557, 0
          %561 = vmatprep.subr.bf16.mxu0 0
          %562 = vmatpush1.bf16.msra.mxu0 %v289
          %563 = vmatprep.subr.bf16.mxu0 0
          %564 = vmatpush1.bf16.msra.mxu0 %v290
          %565 = vmatprep.subr.bf16.mxu0 0
          %566 = vmatpush1.bf16.msra.mxu0 0
          %567 = vmatprep.subr.bf16.mxu0 0
          %568 = vmatpush1.bf16.msra.mxu0 0
          %569 = vmatprep.subr.bf16.mxu0 0
          %570 = vmatpush1.bf16.msra.mxu0 0
          %571 = vmatprep.subr.bf16.mxu0 0
          %572 = vmatpush1.bf16.msra.mxu0 0
          %573 = vmatprep.subr.bf16.mxu0 0
          %574 = vmatpush1.bf16.msra.mxu0 0
          %575 = vmatprep.subr.bf16.mxu0 0
          %576 = vmatpush1.bf16.msra.mxu0 0
          %577 = vmatprep.subr.bf16.mxu0 0
          %578 = vmatpush1.bf16.msra.mxu0 0
          %579 = vmatprep.subr.bf16.mxu0 0
          %580 = vmatpush1.bf16.msra.mxu0 0
          %581 = vmatprep.subr.bf16.mxu0 0
          %582 = vmatpush1.bf16.msra.mxu0 0
          %583 = vmatprep.subr.bf16.mxu0 0
          %584 = vmatpush1.bf16.msra.mxu0 0
          %585 = vmatprep.subr.bf16.mxu0 0
          %586 = vmatpush1.bf16.msra.mxu0 0
          %587 = vmatprep.subr.bf16.mxu0 0
          %588 = vmatpush1.bf16.msra.mxu0 0
          %589 = vmatprep.subr.bf16.mxu0 0
          %590 = vmatpush1.bf16.msra.mxu0 0
          %591 = vmatprep.subr.bf16.mxu0 0
          %592 = vmatpush1.bf16.msra.mxu0 0
          %593 = vmatprep.mubr.bf16.mxu0 0
          %594 = vmatmul.mubr.bf16.gmra.mrb[0].mxu0 %v559
          %v595 = vpop.f32.mrb[0].mxu0
          %v596 = vadd.f32 0.0, %v595
          %v597 = vpop.f32.mrb[0].mxu0
          %v598 = vpop.f32.mrb[0].mxu0
          %v599 = vpop.f32.mrb[0].mxu0
          %600 = vdwg.mxu0
          %v601 = vadd.f32 %v553, %v596
          %v602 = vxor.u32 %v601, 2147483648
          %v603 = vmul.f32 %v602, 1.442695
          %v604 = vpow.pop %v603
          %v605 = vadd.f32 %v604, 1.0
          %v606 = vrcp.pop %v605
          %v607 = vmul.f32 1.0, %v606
          %v608 = vtanh.pop %v601
          %v609 = vmul.f32 %v607, %v531
          %611 = vrot.lane.b32.xlu0 %v608, 64
          %v612 = vpop.permute.xlu0 %611
          %v614 = vmul.f32 %v607, %v612
          %616 = vrot.lane.b32.xlu0 %v614, 32
          %v617 = vpop.permute.xlu0 %616
          %v619 = vadd.f32 %v609, %v617
          %v620 = vtanh.pop %v619
          %622 = vrot.lane.b32.xlu0 %v620, 64
          %v623 = vpop.permute.xlu0 %622
          %v625 = vmul.f32 %v607, %v623
          %v628 = vunpack.c.l.s4 1983009808
          %v629 = vunpack.c.0.s8 %v628
          %v630 = vlaneseq
          %v631 = vshrl.u32 %v630, 7
          %v632 = vsub.s32 %v629, %v631
          %v633 = vrot.slane %v625, %v632
          %634 = vrot.lane.b32.xlu0 %v633, 32
          %v635 = vpop.permute.xlu0 %634
          %s637 = scalar_lea.vmem %s265, 6
          %638 = vst.msk [vmem:[%s637] sm:$0x3] %vm373, %v635
          %s639 = scalar_lea.vmem %s226, 4 [#allocation2]
          %v640 = vld [vmem:[%s639] sm:$0x1]
          %v641 = vunpack.c.l.bf16 %v640
          %v642 = vpack.c.bf16 %v625, %v625
          %644 = vrot.lane.b32.xlu0 %v642, 32
          %v645 = vpop.permute.xlu0 %644
          %v647 = vsel %vm293, %v645, 0
          %649 = vmatprep.subr.bf16.mxu0 0
          %650 = vmatpush1.bf16.msra.mxu0 %v289
          %651 = vmatprep.subr.bf16.mxu0 0
          %652 = vmatpush1.bf16.msra.mxu0 %v290
          %653 = vmatprep.subr.bf16.mxu0 0
          %654 = vmatpush1.bf16.msra.mxu0 0
          %655 = vmatprep.subr.bf16.mxu0 0
          %656 = vmatpush1.bf16.msra.mxu0 0
          %657 = vmatprep.subr.bf16.mxu0 0
          %658 = vmatpush1.bf16.msra.mxu0 0
          %659 = vmatprep.subr.bf16.mxu0 0
          %660 = vmatpush1.bf16.msra.mxu0 0
          %661 = vmatprep.subr.bf16.mxu0 0
          %662 = vmatpush1.bf16.msra.mxu0 0
          %663 = vmatprep.subr.bf16.mxu0 0
          %664 = vmatpush1.bf16.msra.mxu0 0
          %665 = vmatprep.subr.bf16.mxu0 0
          %666 = vmatpush1.bf16.msra.mxu0 0
          %667 = vmatprep.subr.bf16.mxu0 0
          %668 = vmatpush1.bf16.msra.mxu0 0
          %669 = vmatprep.subr.bf16.mxu0 0
          %670 = vmatpush1.bf16.msra.mxu0 0
          %671 = vmatprep.subr.bf16.mxu0 0
          %672 = vmatpush1.bf16.msra.mxu0 0
          %673 = vmatprep.subr.bf16.mxu0 0
          %674 = vmatpush1.bf16.msra.mxu0 0
          %675 = vmatprep.subr.bf16.mxu0 0
          %676 = vmatpush1.bf16.msra.mxu0 0
          %677 = vmatprep.subr.bf16.mxu0 0
          %678 = vmatpush1.bf16.msra.mxu0 0
          %679 = vmatprep.subr.bf16.mxu0 0
          %680 = vmatpush1.bf16.msra.mxu0 0
          %681 = vmatprep.mubr.bf16.mxu0 0
          %682 = vmatmul.mubr.bf16.gmra.mrb[0].mxu0 %v647
          %v683 = vpop.f32.mrb[0].mxu0
          %v684 = vadd.f32 0.0, %v683
          %v685 = vpop.f32.mrb[0].mxu0
          %v686 = vpop.f32.mrb[0].mxu0
          %v687 = vpop.f32.mrb[0].mxu0
          %688 = vdwg.mxu0
          %v689 = vadd.f32 %v641, %v684
          %v690 = vxor.u32 %v689, 2147483648
          %v691 = vmul.f32 %v690, 1.442695
          %v692 = vpow.pop %v691
          %v693 = vadd.f32 %v692, 1.0
          %v694 = vrcp.pop %v693
          %v695 = vmul.f32 1.0, %v694
          %v696 = vtanh.pop %v689
          %v697 = vmul.f32 %v695, %v619
          %699 = vrot.lane.b32.xlu0 %v696, 64
          %v700 = vpop.permute.xlu0 %699
          %v702 = vmul.f32 %v695, %v700
          %704 = vrot.lane.b32.xlu0 %v702, 32
          %v705 = vpop.permute.xlu0 %704
          %v707 = vadd.f32 %v697, %v705
          %v708 = vtanh.pop %v707
          %710 = vrot.lane.b32.xlu0 %v708, 64
          %v711 = vpop.permute.xlu0 %710
          %v713 = vmul.f32 %v695, %v711
          %v716 = vunpack.c.l.s4 1983009808
          %v717 = vunpack.c.0.s8 %v716
          %v718 = vlaneseq
          %v719 = vshrl.u32 %v718, 7
          %v720 = vsub.s32 %v717, %v719
          %v721 = vrot.slane %v713, %v720
          %722 = vrot.lane.b32.xlu0 %v721, 32
          %v723 = vpop.permute.xlu0 %722
          %s725 = scalar_lea.vmem %s265, 8
          %726 = vst.msk [vmem:[%s725] sm:$0x3] %vm373, %v723
          %s727 = scalar_lea.vmem %s226, 5 [#allocation2]
          %v728 = vld [vmem:[%s727] sm:$0x1]
          %v729 = vunpack.c.l.bf16 %v728
          %v730 = vpack.c.bf16 %v713, %v713
          %732 = vrot.lane.b32.xlu0 %v730, 32
          %v733 = vpop.permute.xlu0 %732
          %v735 = vsel %vm293, %v733, 0
          %737 = vmatprep.subr.bf16.mxu0 0
          %738 = vmatpush1.bf16.msra.mxu0 %v289
          %739 = vmatprep.subr.bf16.mxu0 0
          %740 = vmatpush1.bf16.msra.mxu0 %v290
          %741 = vmatprep.subr.bf16.mxu0 0
          %742 = vmatpush1.bf16.msra.mxu0 0
          %743 = vmatprep.subr.bf16.mxu0 0
          %744 = vmatpush1.bf16.msra.mxu0 0
          %745 = vmatprep.subr.bf16.mxu0 0
          %746 = vmatpush1.bf16.msra.mxu0 0
          %747 = vmatprep.subr.bf16.mxu0 0
          %748 = vmatpush1.bf16.msra.mxu0 0
          %749 = vmatprep.subr.bf16.mxu0 0
          %750 = vmatpush1.bf16.msra.mxu0 0
          %751 = vmatprep.subr.bf16.mxu0 0
          %752 = vmatpush1.bf16.msra.mxu0 0
          %753 = vmatprep.subr.bf16.mxu0 0
          %754 = vmatpush1.bf16.msra.mxu0 0
          %755 = vmatprep.subr.bf16.mxu0 0
          %756 = vmatpush1.bf16.msra.mxu0 0
          %757 = vmatprep.subr.bf16.mxu0 0
          %758 = vmatpush1.bf16.msra.mxu0 0
          %759 = vmatprep.subr.bf16.mxu0 0
          %760 = vmatpush1.bf16.msra.mxu0 0
          %761 = vmatprep.subr.bf16.mxu0 0
          %762 = vmatpush1.bf16.msra.mxu0 0
          %763 = vmatprep.subr.bf16.mxu0 0
          %764 = vmatpush1.bf16.msra.mxu0 0
          %765 = vmatprep.subr.bf16.mxu0 0
          %766 = vmatpush1.bf16.msra.mxu0 0
          %767 = vmatprep.subr.bf16.mxu0 0
          %768 = vmatpush1.bf16.msra.mxu0 0
          %769 = vmatprep.mubr.bf16.mxu0 0
          %770 = vmatmul.mubr.bf16.gmra.mrb[0].mxu0 %v735
          %v771 = vpop.f32.mrb[0].mxu0
          %v772 = vadd.f32 0.0, %v771
          %v773 = vpop.f32.mrb[0].mxu0
          %v774 = vpop.f32.mrb[0].mxu0
          %v775 = vpop.f32.mrb[0].mxu0
          %776 = vdwg.mxu0
          %v777 = vadd.f32 %v729, %v772
          %v778 = vxor.u32 %v777, 2147483648
          %v779 = vmul.f32 %v778, 1.442695
          %v780 = vpow.pop %v779
          %v781 = vadd.f32 %v780, 1.0
          %v782 = vrcp.pop %v781
          %v783 = vmul.f32 1.0, %v782
          %v784 = vtanh.pop %v777
          %v785 = vmul.f32 %v783, %v707
          %787 = vrot.lane.b32.xlu0 %v784, 64
          %v788 = vpop.permute.xlu0 %787
          %v790 = vmul.f32 %v783, %v788
          %792 = vrot.lane.b32.xlu0 %v790, 32
          %v793 = vpop.permute.xlu0 %792
          %v795 = vadd.f32 %v785, %v793
          %v796 = vtanh.pop %v795
          %798 = vrot.lane.b32.xlu0 %v796, 64
          %v799 = vpop.permute.xlu0 %798
          %v801 = vmul.f32 %v783, %v799
          %v804 = vunpack.c.l.s4 1983009808
          %v805 = vunpack.c.0.s8 %v804
          %v806 = vlaneseq
          %v807 = vshrl.u32 %v806, 7
          %v808 = vsub.s32 %v805, %v807
          %v809 = vrot.slane %v801, %v808
          %810 = vrot.lane.b32.xlu0 %v809, 32
          %v811 = vpop.permute.xlu0 %810
          %s813 = scalar_lea.vmem %s265, 10
          %814 = vst.msk [vmem:[%s813] sm:$0x3] %vm373, %v811
          %s815 = scalar_lea.vmem %s226, 6 [#allocation2]
          %v816 = vld [vmem:[%s815] sm:$0x1]
          %v817 = vunpack.c.l.bf16 %v816
          %v818 = vpack.c.bf16 %v801, %v801
          %820 = vrot.lane.b32.xlu0 %v818, 32
          %v821 = vpop.permute.xlu0 %820
          %v823 = vsel %vm293, %v821, 0
          %825 = vmatprep.subr.bf16.mxu0 0
          %826 = vmatpush1.bf16.msra.mxu0 %v289
          %827 = vmatprep.subr.bf16.mxu0 0
          %828 = vmatpush1.bf16.msra.mxu0 %v290
          %829 = vmatprep.subr.bf16.mxu0 0
          %830 = vmatpush1.bf16.msra.mxu0 0
          %831 = vmatprep.subr.bf16.mxu0 0
          %832 = vmatpush1.bf16.msra.mxu0 0
          %833 = vmatprep.subr.bf16.mxu0 0
          %834 = vmatpush1.bf16.msra.mxu0 0
          %835 = vmatprep.subr.bf16.mxu0 0
          %836 = vmatpush1.bf16.msra.mxu0 0
          %837 = vmatprep.subr.bf16.mxu0 0
          %838 = vmatpush1.bf16.msra.mxu0 0
          %839 = vmatprep.subr.bf16.mxu0 0
          %840 = vmatpush1.bf16.msra.mxu0 0
          %841 = vmatprep.subr.bf16.mxu0 0
          %842 = vmatpush1.bf16.msra.mxu0 0
          %843 = vmatprep.subr.bf16.mxu0 0
          %844 = vmatpush1.bf16.msra.mxu0 0
          %845 = vmatprep.subr.bf16.mxu0 0
          %846 = vmatpush1.bf16.msra.mxu0 0
          %847 = vmatprep.subr.bf16.mxu0 0
          %848 = vmatpush1.bf16.msra.mxu0 0
          %849 = vmatprep.subr.bf16.mxu0 0
          %850 = vmatpush1.bf16.msra.mxu0 0
          %851 = vmatprep.subr.bf16.mxu0 0
          %852 = vmatpush1.bf16.msra.mxu0 0
          %853 = vmatprep.subr.bf16.mxu0 0
          %854 = vmatpush1.bf16.msra.mxu0 0
          %855 = vmatprep.subr.bf16.mxu0 0
          %856 = vmatpush1.bf16.msra.mxu0 0
          %857 = vmatprep.mubr.bf16.mxu0 0
          %858 = vmatmul.mubr.bf16.gmra.mrb[0].mxu0 %v823
          %v859 = vpop.f32.mrb[0].mxu0
          %v860 = vadd.f32 0.0, %v859
          %v861 = vpop.f32.mrb[0].mxu0
          %v862 = vpop.f32.mrb[0].mxu0
          %v863 = vpop.f32.mrb[0].mxu0
          %864 = vdwg.mxu0
          %v865 = vadd.f32 %v817, %v860
          %v866 = vxor.u32 %v865, 2147483648
          %v867 = vmul.f32 %v866, 1.442695
          %v868 = vpow.pop %v867
          %v869 = vadd.f32 %v868, 1.0
          %v870 = vrcp.pop %v869
          %v871 = vmul.f32 1.0, %v870
          %v872 = vtanh.pop %v865
          %v873 = vmul.f32 %v871, %v795
          %875 = vrot.lane.b32.xlu0 %v872, 64
          %v876 = vpop.permute.xlu0 %875
          %v878 = vmul.f32 %v871, %v876
          %880 = vrot.lane.b32.xlu0 %v878, 32
          %v881 = vpop.permute.xlu0 %880
          %v883 = vadd.f32 %v873, %v881
          %v884 = vtanh.pop %v883
          %886 = vrot.lane.b32.xlu0 %v884, 64
          %v887 = vpop.permute.xlu0 %886
          %v889 = vmul.f32 %v871, %v887
          %v892 = vunpack.c.l.s4 1983009808
          %v893 = vunpack.c.0.s8 %v892
          %v894 = vlaneseq
          %v895 = vshrl.u32 %v894, 7
          %v896 = vsub.s32 %v893, %v895
          %v897 = vrot.slane %v889, %v896
          %898 = vrot.lane.b32.xlu0 %v897, 32
          %v899 = vpop.permute.xlu0 %898
          %s901 = scalar_lea.vmem %s265, 12
          %902 = vst.msk [vmem:[%s901] sm:$0x3] %vm373, %v899
          %s903 = scalar_lea.vmem %s226, 7 [#allocation2]
          %v904 = vld [vmem:[%s903] sm:$0x1]
          %v905 = vunpack.c.l.bf16 %v904
          %v906 = vpack.c.bf16 %v889, %v889
          %908 = vrot.lane.b32.xlu0 %v906, 32
          %v909 = vpop.permute.xlu0 %908
          %v911 = vsel %vm293, %v909, 0
          %913 = vmatprep.subr.bf16.mxu0 0
          %914 = vmatpush1.bf16.msra.mxu0 %v289
          %915 = vmatprep.subr.bf16.mxu0 0
          %916 = vmatpush1.bf16.msra.mxu0 %v290
          %917 = vmatprep.subr.bf16.mxu0 0
          %918 = vmatpush1.bf16.msra.mxu0 0
          %919 = vmatprep.subr.bf16.mxu0 0
          %920 = vmatpush1.bf16.msra.mxu0 0
          %921 = vmatprep.subr.bf16.mxu0 0
          %922 = vmatpush1.bf16.msra.mxu0 0
          %923 = vmatprep.subr.bf16.mxu0 0
          %924 = vmatpush1.bf16.msra.mxu0 0
          %925 = vmatprep.subr.bf16.mxu0 0
          %926 = vmatpush1.bf16.msra.mxu0 0
          %927 = vmatprep.subr.bf16.mxu0 0
          %928 = vmatpush1.bf16.msra.mxu0 0
          %929 = vmatprep.subr.bf16.mxu0 0
          %930 = vmatpush1.bf16.msra.mxu0 0
          %931 = vmatprep.subr.bf16.mxu0 0
          %932 = vmatpush1.bf16.msra.mxu0 0
          %933 = vmatprep.subr.bf16.mxu0 0
          %934 = vmatpush1.bf16.msra.mxu0 0
          %935 = vmatprep.subr.bf16.mxu0 0
          %936 = vmatpush1.bf16.msra.mxu0 0
          %937 = vmatprep.subr.bf16.mxu0 0
          %938 = vmatpush1.bf16.msra.mxu0 0
          %939 = vmatprep.subr.bf16.mxu0 0
          %940 = vmatpush1.bf16.msra.mxu0 0
          %941 = vmatprep.subr.bf16.mxu0 0
          %942 = vmatpush1.bf16.msra.mxu0 0
          %943 = vmatprep.subr.bf16.mxu0 0
          %944 = vmatpush1.bf16.msra.mxu0 0
          %945 = vmatprep.mubr.bf16.mxu0 0
          %946 = vmatmul.mubr.bf16.gmra.mrb[0].mxu0 %v911
          %v947 = vpop.f32.mrb[0].mxu0
          %v948 = vadd.f32 0.0, %v947
          %v949 = vpop.f32.mrb[0].mxu0
          %v950 = vpop.f32.mrb[0].mxu0
          %v951 = vpop.f32.mrb[0].mxu0
          %952 = vdwg.mxu0
          %v953 = vadd.f32 %v905, %v948
          %v954 = vxor.u32 %v953, 2147483648
          %v955 = vmul.f32 %v954, 1.442695
          %v956 = vpow.pop %v955
          %v957 = vadd.f32 %v956, 1.0
          %v958 = vrcp.pop %v957
          %v959 = vmul.f32 1.0, %v958
          %v960 = vtanh.pop %v953
          %v961 = vmul.f32 %v959, %v883
          %963 = vrot.lane.b32.xlu0 %v960, 64
          %v964 = vpop.permute.xlu0 %963
          %v966 = vmul.f32 %v959, %v964
          %968 = vrot.lane.b32.xlu0 %v966, 32
          %v969 = vpop.permute.xlu0 %968
          %v971 = vadd.f32 %v961, %v969
          %v972 = vtanh.pop %v971
          %974 = vrot.lane.b32.xlu0 %v972, 64
          %v975 = vpop.permute.xlu0 %974
          %v977 = vmul.f32 %v959, %v975
          %v980 = vunpack.c.l.s4 1983009808
          %v981 = vunpack.c.0.s8 %v980
          %v982 = vlaneseq
          %v983 = vshrl.u32 %v982, 7
          %v984 = vsub.s32 %v981, %v983
          %v985 = vrot.slane %v977, %v984
          %986 = vrot.lane.b32.xlu0 %v985, 32
          %v987 = vpop.permute.xlu0 %986
          %s989 = scalar_lea.vmem %s265, 14
          %990 = vst.msk [vmem:[%s989] sm:$0x3] %vm373, %v987
          %991 = vst.msk [vmem:[%s269] sm:$0x3] %vm373, %v987
        $region73: #{encoder_forward.7} parent=64 // pred_fallthru
          _
        %p992 = scmp.eq.s32.totalorder %s15, 1
        // Predicated region
        $region74: #{encoder_forward.7} parent=64 // pred_check
          %p993 = pneg %p992
        $region75: #{encoder_forward.7} parent=64 // pred_check_branch
          %995 = sbr.rel (%p993) target = $region77
        $region76: #{encoder_forward.7} parent=64 // pred_region
          %s996 = scalar_lea.vmem %s226, 7 [#allocation2]
          %v997 = vld [vmem:[%s996] sm:$0x1]
          %v998 = vunpack.c.l.bf16 %v997
          %v1003 = vunpack.c.l.b16 %v271
          %v1004 = vunpack.c.l.b16 %v272
          %v1005 = vunpack.c.l.b16 %v273
          %v1006 = vunpack.c.l.b16 %v274
          %v1007 = vpack.c.b16 %v1004, %v1003
          %v1008 = vpack.c.b16 %v1006, %v1005
          %vm1011 = vcmask 261120
          %v1013 = vsel %vm1011, 0, 0
          %1015 = vmatprep.subr.bf16.mxu0 0
          %1016 = vmatpush1.bf16.msra.mxu0 %v1007
          %1017 = vmatprep.subr.bf16.mxu0 0
          %1018 = vmatpush1.bf16.msra.mxu0 %v1008
          %1019 = vmatprep.subr.bf16.mxu0 0
          %1020 = vmatpush1.bf16.msra.mxu0 0
          %1021 = vmatprep.subr.bf16.mxu0 0
          %1022 = vmatpush1.bf16.msra.mxu0 0
          %1023 = vmatprep.subr.bf16.mxu0 0
          %1024 = vmatpush1.bf16.msra.mxu0 0
          %1025 = vmatprep.subr.bf16.mxu0 0
          %1026 = vmatpush1.bf16.msra.mxu0 0
          %1027 = vmatprep.subr.bf16.mxu0 0
          %1028 = vmatpush1.bf16.msra.mxu0 0
          %1029 = vmatprep.subr.bf16.mxu0 0
          %1030 = vmatpush1.bf16.msra.mxu0 0
          %1031 = vmatprep.subr.bf16.mxu0 0
          %1032 = vmatpush1.bf16.msra.mxu0 0
          %1033 = vmatprep.subr.bf16.mxu0 0
          %1034 = vmatpush1.bf16.msra.mxu0 0
          %1035 = vmatprep.subr.bf16.mxu0 0
          %1036 = vmatpush1.bf16.msra.mxu0 0
          %1037 = vmatprep.subr.bf16.mxu0 0
          %1038 = vmatpush1.bf16.msra.mxu0 0
          %1039 = vmatprep.subr.bf16.mxu0 0
          %1040 = vmatpush1.bf16.msra.mxu0 0
          %1041 = vmatprep.subr.bf16.mxu0 0
          %1042 = vmatpush1.bf16.msra.mxu0 0
          %1043 = vmatprep.subr.bf16.mxu0 0
          %1044 = vmatpush1.bf16.msra.mxu0 0
          %1045 = vmatprep.subr.bf16.mxu0 0
          %1046 = vmatpush1.bf16.msra.mxu0 0
          %1047 = vmatprep.mubr.bf16.mxu0 0
          %1048 = vmatmul.mubr.bf16.gmra.mrb[0].mxu0 %v1013
          %v1049 = vpop.f32.mrb[0].mxu0
          %v1050 = vadd.f32 0.0, %v1049
          %v1051 = vpop.f32.mrb[0].mxu0
          %v1052 = vpop.f32.mrb[0].mxu0
          %v1053 = vpop.f32.mrb[0].mxu0
          %1054 = vdwg.mxu0
          %v1055 = vadd.f32 %v998, %v1050
          %v1056 = vxor.u32 %v1055, 2147483648
          %v1057 = vmul.f32 %v1056, 1.442695
          %v1058 = vpow.pop %v1057
          %v1059 = vadd.f32 %v1058, 1.0
          %v1060 = vrcp.pop %v1059
          %v1061 = vmul.f32 1.0, %v1060
          %v1062 = vtanh.pop %v1055
          %v1063 = vmul.f32 %v1061, 0.0
          %1065 = vrot.lane.b32.xlu0 %v1062, 64
          %v1066 = vpop.permute.xlu0 %1065
          %v1068 = vmul.f32 %v1061, %v1066
          %1070 = vrot.lane.b32.xlu0 %v1068, 32
          %v1071 = vpop.permute.xlu0 %1070
          %v1073 = vadd.f32 %v1063, %v1071
          %v1074 = vtanh.pop %v1073
          %1076 = vrot.lane.b32.xlu0 %v1074, 64
          %v1077 = vpop.permute.xlu0 %1076
          %v1079 = vmul.f32 %v1061, %v1077
          %v1082 = vunpack.c.l.s4 1983009808
          %v1083 = vunpack.c.0.s8 %v1082
          %v1084 = vlaneseq
          %v1085 = vshrl.u32 %v1084, 7
          %v1086 = vsub.s32 %v1083, %v1085
          %v1087 = vrot.slane %v1079, %v1086
          %1088 = vrot.lane.b32.xlu0 %v1087, 32
          %v1089 = vpop.permute.xlu0 %1088
          %s1091 = scalar_lea.vmem %s265, 14
          %vm1092 = vcmask 254976
          %1093 = vst.msk [vmem:[%s1091] sm:$0x3] %vm1092, %v1089
          %s1094 = scalar_lea.vmem %s226, 6 [#allocation2]
          %v1095 = vld [vmem:[%s1094] sm:$0x1]
          %v1096 = vunpack.c.l.bf16 %v1095
          %v1097 = vpack.c.bf16 %v1079, %v1079
          %1099 = vrot.lane.b32.xlu0 %v1097, 32
          %v1100 = vpop.permute.xlu0 %1099
          %v1102 = vsel %vm1011, %v1100, 0
          %1104 = vmatprep.subr.bf16.mxu0 0
          %1105 = vmatpush1.bf16.msra.mxu0 %v1007
          %1106 = vmatprep.subr.bf16.mxu0 0
          %1107 = vmatpush1.bf16.msra.mxu0 %v1008
          %1108 = vmatprep.subr.bf16.mxu0 0
          %1109 = vmatpush1.bf16.msra.mxu0 0
          %1110 = vmatprep.subr.bf16.mxu0 0
          %1111 = vmatpush1.bf16.msra.mxu0 0
          %1112 = vmatprep.subr.bf16.mxu0 0
          %1113 = vmatpush1.bf16.msra.mxu0 0
          %1114 = vmatprep.subr.bf16.mxu0 0
          %1115 = vmatpush1.bf16.msra.mxu0 0
          %1116 = vmatprep.subr.bf16.mxu0 0
          %1117 = vmatpush1.bf16.msra.mxu0 0
          %1118 = vmatprep.subr.bf16.mxu0 0
          %1119 = vmatpush1.bf16.msra.mxu0 0
          %1120 = vmatprep.subr.bf16.mxu0 0
          %1121 = vmatpush1.bf16.msra.mxu0 0
          %1122 = vmatprep.subr.bf16.mxu0 0
          %1123 = vmatpush1.bf16.msra.mxu0 0
          %1124 = vmatprep.subr.bf16.mxu0 0
          %1125 = vmatpush1.bf16.msra.mxu0 0
          %1126 = vmatprep.subr.bf16.mxu0 0
          %1127 = vmatpush1.bf16.msra.mxu0 0
          %1128 = vmatprep.subr.bf16.mxu0 0
          %1129 = vmatpush1.bf16.msra.mxu0 0
          %1130 = vmatprep.subr.bf16.mxu0 0
          %1131 = vmatpush1.bf16.msra.mxu0 0
          %1132 = vmatprep.subr.bf16.mxu0 0
          %1133 = vmatpush1.bf16.msra.mxu0 0
          %1134 = vmatprep.subr.bf16.mxu0 0
          %1135 = vmatpush1.bf16.msra.mxu0 0
          %1136 = vmatprep.mubr.bf16.mxu0 0
          %1137 = vmatmul.mubr.bf16.gmra.mrb[0].mxu0 %v1102
          %v1138 = vpop.f32.mrb[0].mxu0
          %v1139 = vadd.f32 0.0, %v1138
          %v1140 = vpop.f32.mrb[0].mxu0
          %v1141 = vpop.f32.mrb[0].mxu0
          %v1142 = vpop.f32.mrb[0].mxu0
          %1143 = vdwg.mxu0
          %v1144 = vadd.f32 %v1096, %v1139
          %v1145 = vxor.u32 %v1144, 2147483648
          %v1146 = vmul.f32 %v1145, 1.442695
          %v1147 = vpow.pop %v1146
          %v1148 = vadd.f32 %v1147, 1.0
          %v1149 = vrcp.pop %v1148
          %v1150 = vmul.f32 1.0, %v1149
          %v1151 = vtanh.pop %v1144
          %v1152 = vmul.f32 %v1150, %v1073
          %1154 = vrot.lane.b32.xlu0 %v1151, 64
          %v1155 = vpop.permute.xlu0 %1154
          %v1157 = vmul.f32 %v1150, %v1155
          %1159 = vrot.lane.b32.xlu0 %v1157, 32
          %v1160 = vpop.permute.xlu0 %1159
          %v1162 = vadd.f32 %v1152, %v1160
          %v1163 = vtanh.pop %v1162
          %1165 = vrot.lane.b32.xlu0 %v1163, 64
          %v1166 = vpop.permute.xlu0 %1165
          %v1168 = vmul.f32 %v1150, %v1166
          %v1171 = vunpack.c.l.s4 1983009808
          %v1172 = vunpack.c.0.s8 %v1171
          %v1173 = vlaneseq
          %v1174 = vshrl.u32 %v1173, 7
          %v1175 = vsub.s32 %v1172, %v1174
          %v1176 = vrot.slane %v1168, %v1175
          %1177 = vrot.lane.b32.xlu0 %v1176, 32
          %v1178 = vpop.permute.xlu0 %1177
          %s1180 = scalar_lea.vmem %s265, 12
          %1181 = vst.msk [vmem:[%s1180] sm:$0x3] %vm1092, %v1178
          %s1182 = scalar_lea.vmem %s226, 5 [#allocation2]
          %v1183 = vld [vmem:[%s1182] sm:$0x1]
          %v1184 = vunpack.c.l.bf16 %v1183
          %v1185 = vpack.c.bf16 %v1168, %v1168
          %1187 = vrot.lane.b32.xlu0 %v1185, 32
          %v1188 = vpop.permute.xlu0 %1187
          %v1190 = vsel %vm1011, %v1188, 0
          %1192 = vmatprep.subr.bf16.mxu0 0
          %1193 = vmatpush1.bf16.msra.mxu0 %v1007
          %1194 = vmatprep.subr.bf16.mxu0 0
          %1195 = vmatpush1.bf16.msra.mxu0 %v1008
          %1196 = vmatprep.subr.bf16.mxu0 0
          %1197 = vmatpush1.bf16.msra.mxu0 0
          %1198 = vmatprep.subr.bf16.mxu0 0
          %1199 = vmatpush1.bf16.msra.mxu0 0
          %1200 = vmatprep.subr.bf16.mxu0 0
          %1201 = vmatpush1.bf16.msra.mxu0 0
          %1202 = vmatprep.subr.bf16.mxu0 0
          %1203 = vmatpush1.bf16.msra.mxu0 0
          %1204 = vmatprep.subr.bf16.mxu0 0
          %1205 = vmatpush1.bf16.msra.mxu0 0
          %1206 = vmatprep.subr.bf16.mxu0 0
          %1207 = vmatpush1.bf16.msra.mxu0 0
          %1208 = vmatprep.subr.bf16.mxu0 0
          %1209 = vmatpush1.bf16.msra.mxu0 0
          %1210 = vmatprep.subr.bf16.mxu0 0
          %1211 = vmatpush1.bf16.msra.mxu0 0
          %1212 = vmatprep.subr.bf16.mxu0 0
          %1213 = vmatpush1.bf16.msra.mxu0 0
          %1214 = vmatprep.subr.bf16.mxu0 0
          %1215 = vmatpush1.bf16.msra.mxu0 0
          %1216 = vmatprep.subr.bf16.mxu0 0
          %1217 = vmatpush1.bf16.msra.mxu0 0
          %1218 = vmatprep.subr.bf16.mxu0 0
          %1219 = vmatpush1.bf16.msra.mxu0 0
          %1220 = vmatprep.subr.bf16.mxu0 0
          %1221 = vmatpush1.bf16.msra.mxu0 0
          %1222 = vmatprep.subr.bf16.mxu0 0
          %1223 = vmatpush1.bf16.msra.mxu0 0
          %1224 = vmatprep.mubr.bf16.mxu0 0
          %1225 = vmatmul.mubr.bf16.gmra.mrb[0].mxu0 %v1190
          %v1226 = vpop.f32.mrb[0].mxu0
          %v1227 = vadd.f32 0.0, %v1226
          %v1228 = vpop.f32.mrb[0].mxu0
          %v1229 = vpop.f32.mrb[0].mxu0
          %v1230 = vpop.f32.mrb[0].mxu0
          %1231 = vdwg.mxu0
          %v1232 = vadd.f32 %v1184, %v1227
          %v1233 = vxor.u32 %v1232, 2147483648
          %v1234 = vmul.f32 %v1233, 1.442695
          %v1235 = vpow.pop %v1234
          %v1236 = vadd.f32 %v1235, 1.0
          %v1237 = vrcp.pop %v1236
          %v1238 = vmul.f32 1.0, %v1237
          %v1239 = vtanh.pop %v1232
          %v1240 = vmul.f32 %v1238, %v1162
          %1242 = vrot.lane.b32.xlu0 %v1239, 64
          %v1243 = vpop.permute.xlu0 %1242
          %v1245 = vmul.f32 %v1238, %v1243
          %1247 = vrot.lane.b32.xlu0 %v1245, 32
          %v1248 = vpop.permute.xlu0 %1247
          %v1250 = vadd.f32 %v1240, %v1248
          %v1251 = vtanh.pop %v1250
          %1253 = vrot.lane.b32.xlu0 %v1251, 64
          %v1254 = vpop.permute.xlu0 %1253
          %v1256 = vmul.f32 %v1238, %v1254
          %v1259 = vunpack.c.l.s4 1983009808
          %v1260 = vunpack.c.0.s8 %v1259
          %v1261 = vlaneseq
          %v1262 = vshrl.u32 %v1261, 7
          %v1263 = vsub.s32 %v1260, %v1262
          %v1264 = vrot.slane %v1256, %v1263
          %1265 = vrot.lane.b32.xlu0 %v1264, 32
          %v1266 = vpop.permute.xlu0 %1265
          %s1268 = scalar_lea.vmem %s265, 10
          %1269 = vst.msk [vmem:[%s1268] sm:$0x3] %vm1092, %v1266
          %s1270 = scalar_lea.vmem %s226, 4 [#allocation2]
          %v1271 = vld [vmem:[%s1270] sm:$0x1]
          %v1272 = vunpack.c.l.bf16 %v1271
          %v1273 = vpack.c.bf16 %v1256, %v1256
          %1275 = vrot.lane.b32.xlu0 %v1273, 32
          %v1276 = vpop.permute.xlu0 %1275
          %v1278 = vsel %vm1011, %v1276, 0
          %1280 = vmatprep.subr.bf16.mxu0 0
          %1281 = vmatpush1.bf16.msra.mxu0 %v1007
          %1282 = vmatprep.subr.bf16.mxu0 0
          %1283 = vmatpush1.bf16.msra.mxu0 %v1008
          %1284 = vmatprep.subr.bf16.mxu0 0
          %1285 = vmatpush1.bf16.msra.mxu0 0
          %1286 = vmatprep.subr.bf16.mxu0 0
          %1287 = vmatpush1.bf16.msra.mxu0 0
          %1288 = vmatprep.subr.bf16.mxu0 0
          %1289 = vmatpush1.bf16.msra.mxu0 0
          %1290 = vmatprep.subr.bf16.mxu0 0
          %1291 = vmatpush1.bf16.msra.mxu0 0
          %1292 = vmatprep.subr.bf16.mxu0 0
          %1293 = vmatpush1.bf16.msra.mxu0 0
          %1294 = vmatprep.subr.bf16.mxu0 0
          %1295 = vmatpush1.bf16.msra.mxu0 0
          %1296 = vmatprep.subr.bf16.mxu0 0
          %1297 = vmatpush1.bf16.msra.mxu0 0
          %1298 = vmatprep.subr.bf16.mxu0 0
          %1299 = vmatpush1.bf16.msra.mxu0 0
          %1300 = vmatprep.subr.bf16.mxu0 0
          %1301 = vmatpush1.bf16.msra.mxu0 0
          %1302 = vmatprep.subr.bf16.mxu0 0
          %1303 = vmatpush1.bf16.msra.mxu0 0
          %1304 = vmatprep.subr.bf16.mxu0 0
          %1305 = vmatpush1.bf16.msra.mxu0 0
          %1306 = vmatprep.subr.bf16.mxu0 0
          %1307 = vmatpush1.bf16.msra.mxu0 0
          %1308 = vmatprep.subr.bf16.mxu0 0
          %1309 = vmatpush1.bf16.msra.mxu0 0
          %1310 = vmatprep.subr.bf16.mxu0 0
          %1311 = vmatpush1.bf16.msra.mxu0 0
          %1312 = vmatprep.mubr.bf16.mxu0 0
          %1313 = vmatmul.mubr.bf16.gmra.mrb[0].mxu0 %v1278
          %v1314 = vpop.f32.mrb[0].mxu0
          %v1315 = vadd.f32 0.0, %v1314
          %v1316 = vpop.f32.mrb[0].mxu0
          %v1317 = vpop.f32.mrb[0].mxu0
          %v1318 = vpop.f32.mrb[0].mxu0
          %1319 = vdwg.mxu0
          %v1320 = vadd.f32 %v1272, %v1315
          %v1321 = vxor.u32 %v1320, 2147483648
          %v1322 = vmul.f32 %v1321, 1.442695
          %v1323 = vpow.pop %v1322
          %v1324 = vadd.f32 %v1323, 1.0
          %v1325 = vrcp.pop %v1324
          %v1326 = vmul.f32 1.0, %v1325
          %v1327 = vtanh.pop %v1320
          %v1328 = vmul.f32 %v1326, %v1250
          %1330 = vrot.lane.b32.xlu0 %v1327, 64
          %v1331 = vpop.permute.xlu0 %1330
          %v1333 = vmul.f32 %v1326, %v1331
          %1335 = vrot.lane.b32.xlu0 %v1333, 32
          %v1336 = vpop.permute.xlu0 %1335
          %v1338 = vadd.f32 %v1328, %v1336
          %v1339 = vtanh.pop %v1338
          %1341 = vrot.lane.b32.xlu0 %v1339, 64
          %v1342 = vpop.permute.xlu0 %1341
          %v1344 = vmul.f32 %v1326, %v1342
          %v1347 = vunpack.c.l.s4 1983009808
          %v1348 = vunpack.c.0.s8 %v1347
          %v1349 = vlaneseq
          %v1350 = vshrl.u32 %v1349, 7
          %v1351 = vsub.s32 %v1348, %v1350
          %v1352 = vrot.slane %v1344, %v1351
          %1353 = vrot.lane.b32.xlu0 %v1352, 32
          %v1354 = vpop.permute.xlu0 %1353
          %s1356 = scalar_lea.vmem %s265, 8
          %1357 = vst.msk [vmem:[%s1356] sm:$0x3] %vm1092, %v1354
          %s1358 = scalar_lea.vmem %s226, 3 [#allocation2]
          %v1359 = vld [vmem:[%s1358] sm:$0x1]
          %v1360 = vunpack.c.l.bf16 %v1359
          %v1361 = vpack.c.bf16 %v1344, %v1344
          %1363 = vrot.lane.b32.xlu0 %v1361, 32
          %v1364 = vpop.permute.xlu0 %1363
          %v1366 = vsel %vm1011, %v1364, 0
          %1368 = vmatprep.subr.bf16.mxu0 0
          %1369 = vmatpush1.bf16.msra.mxu0 %v1007
          %1370 = vmatprep.subr.bf16.mxu0 0
          %1371 = vmatpush1.bf16.msra.mxu0 %v1008
          %1372 = vmatprep.subr.bf16.mxu0 0
          %1373 = vmatpush1.bf16.msra.mxu0 0
          %1374 = vmatprep.subr.bf16.mxu0 0
          %1375 = vmatpush1.bf16.msra.mxu0 0
          %1376 = vmatprep.subr.bf16.mxu0 0
          %1377 = vmatpush1.bf16.msra.mxu0 0
          %1378 = vmatprep.subr.bf16.mxu0 0
          %1379 = vmatpush1.bf16.msra.mxu0 0
          %1380 = vmatprep.subr.bf16.mxu0 0
          %1381 = vmatpush1.bf16.msra.mxu0 0
          %1382 = vmatprep.subr.bf16.mxu0 0
          %1383 = vmatpush1.bf16.msra.mxu0 0
          %1384 = vmatprep.subr.bf16.mxu0 0
          %1385 = vmatpush1.bf16.msra.mxu0 0
          %1386 = vmatprep.subr.bf16.mxu0 0
          %1387 = vmatpush1.bf16.msra.mxu0 0
          %1388 = vmatprep.subr.bf16.mxu0 0
          %1389 = vmatpush1.bf16.msra.mxu0 0
          %1390 = vmatprep.subr.bf16.mxu0 0
          %1391 = vmatpush1.bf16.msra.mxu0 0
          %1392 = vmatprep.subr.bf16.mxu0 0
          %1393 = vmatpush1.bf16.msra.mxu0 0
          %1394 = vmatprep.subr.bf16.mxu0 0
          %1395 = vmatpush1.bf16.msra.mxu0 0
          %1396 = vmatprep.subr.bf16.mxu0 0
          %1397 = vmatpush1.bf16.msra.mxu0 0
          %1398 = vmatprep.subr.bf16.mxu0 0
          %1399 = vmatpush1.bf16.msra.mxu0 0
          %1400 = vmatprep.mubr.bf16.mxu0 0
          %1401 = vmatmul.mubr.bf16.gmra.mrb[0].mxu0 %v1366
          %v1402 = vpop.f32.mrb[0].mxu0
          %v1403 = vadd.f32 0.0, %v1402
          %v1404 = vpop.f32.mrb[0].mxu0
          %v1405 = vpop.f32.mrb[0].mxu0
          %v1406 = vpop.f32.mrb[0].mxu0
          %1407 = vdwg.mxu0
          %v1408 = vadd.f32 %v1360, %v1403
          %v1409 = vxor.u32 %v1408, 2147483648
          %v1410 = vmul.f32 %v1409, 1.442695
          %v1411 = vpow.pop %v1410
          %v1412 = vadd.f32 %v1411, 1.0
          %v1413 = vrcp.pop %v1412
          %v1414 = vmul.f32 1.0, %v1413
          %v1415 = vtanh.pop %v1408
          %v1416 = vmul.f32 %v1414, %v1338
          %1418 = vrot.lane.b32.xlu0 %v1415, 64
          %v1419 = vpop.permute.xlu0 %1418
          %v1421 = vmul.f32 %v1414, %v1419
          %1423 = vrot.lane.b32.xlu0 %v1421, 32
          %v1424 = vpop.permute.xlu0 %1423
          %v1426 = vadd.f32 %v1416, %v1424
          %v1427 = vtanh.pop %v1426
          %1429 = vrot.lane.b32.xlu0 %v1427, 64
          %v1430 = vpop.permute.xlu0 %1429
          %v1432 = vmul.f32 %v1414, %v1430
          %v1435 = vunpack.c.l.s4 1983009808
          %v1436 = vunpack.c.0.s8 %v1435
          %v1437 = vlaneseq
          %v1438 = vshrl.u32 %v1437, 7
          %v1439 = vsub.s32 %v1436, %v1438
          %v1440 = vrot.slane %v1432, %v1439
          %1441 = vrot.lane.b32.xlu0 %v1440, 32
          %v1442 = vpop.permute.xlu0 %1441
          %s1444 = scalar_lea.vmem %s265, 6
          %1445 = vst.msk [vmem:[%s1444] sm:$0x3] %vm1092, %v1442
          %s1446 = scalar_lea.vmem %s226, 2 [#allocation2]
          %v1447 = vld [vmem:[%s1446] sm:$0x1]
          %v1448 = vunpack.c.l.bf16 %v1447
          %v1449 = vpack.c.bf16 %v1432, %v1432
          %1451 = vrot.lane.b32.xlu0 %v1449, 32
          %v1452 = vpop.permute.xlu0 %1451
          %v1454 = vsel %vm1011, %v1452, 0
          %1456 = vmatprep.subr.bf16.mxu0 0
          %1457 = vmatpush1.bf16.msra.mxu0 %v1007
          %1458 = vmatprep.subr.bf16.mxu0 0
          %1459 = vmatpush1.bf16.msra.mxu0 %v1008
          %1460 = vmatprep.subr.bf16.mxu0 0
          %1461 = vmatpush1.bf16.msra.mxu0 0
          %1462 = vmatprep.subr.bf16.mxu0 0
          %1463 = vmatpush1.bf16.msra.mxu0 0
          %1464 = vmatprep.subr.bf16.mxu0 0
          %1465 = vmatpush1.bf16.msra.mxu0 0
          %1466 = vmatprep.subr.bf16.mxu0 0
          %1467 = vmatpush1.bf16.msra.mxu0 0
          %1468 = vmatprep.subr.bf16.mxu0 0
          %1469 = vmatpush1.bf16.msra.mxu0 0
          %1470 = vmatprep.subr.bf16.mxu0 0
          %1471 = vmatpush1.bf16.msra.mxu0 0
          %1472 = vmatprep.subr.bf16.mxu0 0
          %1473 = vmatpush1.bf16.msra.mxu0 0
          %1474 = vmatprep.subr.bf16.mxu0 0
          %1475 = vmatpush1.bf16.msra.mxu0 0
          %1476 = vmatprep.subr.bf16.mxu0 0
          %1477 = vmatpush1.bf16.msra.mxu0 0
          %1478 = vmatprep.subr.bf16.mxu0 0
          %1479 = vmatpush1.bf16.msra.mxu0 0
          %1480 = vmatprep.subr.bf16.mxu0 0
          %1481 = vmatpush1.bf16.msra.mxu0 0
          %1482 = vmatprep.subr.bf16.mxu0 0
          %1483 = vmatpush1.bf16.msra.mxu0 0
          %1484 = vmatprep.subr.bf16.mxu0 0
          %1485 = vmatpush1.bf16.msra.mxu0 0
          %1486 = vmatprep.subr.bf16.mxu0 0
          %1487 = vmatpush1.bf16.msra.mxu0 0
          %1488 = vmatprep.mubr.bf16.mxu0 0
          %1489 = vmatmul.mubr.bf16.gmra.mrb[0].mxu0 %v1454
          %v1490 = vpop.f32.mrb[0].mxu0
          %v1491 = vadd.f32 0.0, %v1490
          %v1492 = vpop.f32.mrb[0].mxu0
          %v1493 = vpop.f32.mrb[0].mxu0
          %v1494 = vpop.f32.mrb[0].mxu0
          %1495 = vdwg.mxu0
          %v1496 = vadd.f32 %v1448, %v1491
          %v1497 = vxor.u32 %v1496, 2147483648
          %v1498 = vmul.f32 %v1497, 1.442695
          %v1499 = vpow.pop %v1498
          %v1500 = vadd.f32 %v1499, 1.0
          %v1501 = vrcp.pop %v1500
          %v1502 = vmul.f32 1.0, %v1501
          %v1503 = vtanh.pop %v1496
          %v1504 = vmul.f32 %v1502, %v1426
          %1506 = vrot.lane.b32.xlu0 %v1503, 64
          %v1507 = vpop.permute.xlu0 %1506
          %v1509 = vmul.f32 %v1502, %v1507
          %1511 = vrot.lane.b32.xlu0 %v1509, 32
          %v1512 = vpop.permute.xlu0 %1511
          %v1514 = vadd.f32 %v1504, %v1512
          %v1515 = vtanh.pop %v1514
          %1517 = vrot.lane.b32.xlu0 %v1515, 64
          %v1518 = vpop.permute.xlu0 %1517
          %v1520 = vmul.f32 %v1502, %v1518
          %v1523 = vunpack.c.l.s4 1983009808
          %v1524 = vunpack.c.0.s8 %v1523
          %v1525 = vlaneseq
          %v1526 = vshrl.u32 %v1525, 7
          %v1527 = vsub.s32 %v1524, %v1526
          %v1528 = vrot.slane %v1520, %v1527
          %1529 = vrot.lane.b32.xlu0 %v1528, 32
          %v1530 = vpop.permute.xlu0 %1529
          %s1532 = scalar_lea.vmem %s265, 4
          %1533 = vst.msk [vmem:[%s1532] sm:$0x3] %vm1092, %v1530
          %s1534 = scalar_lea.vmem %s226, 1 [#allocation2]
          %v1535 = vld [vmem:[%s1534] sm:$0x1]
          %v1536 = vunpack.c.l.bf16 %v1535
          %v1537 = vpack.c.bf16 %v1520, %v1520
          %1539 = vrot.lane.b32.xlu0 %v1537, 32
          %v1540 = vpop.permute.xlu0 %1539
          %v1542 = vsel %vm1011, %v1540, 0
          %1544 = vmatprep.subr.bf16.mxu0 0
          %1545 = vmatpush1.bf16.msra.mxu0 %v1007
          %1546 = vmatprep.subr.bf16.mxu0 0
          %1547 = vmatpush1.bf16.msra.mxu0 %v1008
          %1548 = vmatprep.subr.bf16.mxu0 0
          %1549 = vmatpush1.bf16.msra.mxu0 0
          %1550 = vmatprep.subr.bf16.mxu0 0
          %1551 = vmatpush1.bf16.msra.mxu0 0
          %1552 = vmatprep.subr.bf16.mxu0 0
          %1553 = vmatpush1.bf16.msra.mxu0 0
          %1554 = vmatprep.subr.bf16.mxu0 0
          %1555 = vmatpush1.bf16.msra.mxu0 0
          %1556 = vmatprep.subr.bf16.mxu0 0
          %1557 = vmatpush1.bf16.msra.mxu0 0
          %1558 = vmatprep.subr.bf16.mxu0 0
          %1559 = vmatpush1.bf16.msra.mxu0 0
          %1560 = vmatprep.subr.bf16.mxu0 0
          %1561 = vmatpush1.bf16.msra.mxu0 0
          %1562 = vmatprep.subr.bf16.mxu0 0
          %1563 = vmatpush1.bf16.msra.mxu0 0
          %1564 = vmatprep.subr.bf16.mxu0 0
          %1565 = vmatpush1.bf16.msra.mxu0 0
          %1566 = vmatprep.subr.bf16.mxu0 0
          %1567 = vmatpush1.bf16.msra.mxu0 0
          %1568 = vmatprep.subr.bf16.mxu0 0
          %1569 = vmatpush1.bf16.msra.mxu0 0
          %1570 = vmatprep.subr.bf16.mxu0 0
          %1571 = vmatpush1.bf16.msra.mxu0 0
          %1572 = vmatprep.subr.bf16.mxu0 0
          %1573 = vmatpush1.bf16.msra.mxu0 0
          %1574 = vmatprep.subr.bf16.mxu0 0
          %1575 = vmatpush1.bf16.msra.mxu0 0
          %1576 = vmatprep.mubr.bf16.mxu0 0
          %1577 = vmatmul.mubr.bf16.gmra.mrb[0].mxu0 %v1542
          %v1578 = vpop.f32.mrb[0].mxu0
          %v1579 = vadd.f32 0.0, %v1578
          %v1580 = vpop.f32.mrb[0].mxu0
          %v1581 = vpop.f32.mrb[0].mxu0
          %v1582 = vpop.f32.mrb[0].mxu0
          %1583 = vdwg.mxu0
          %v1584 = vadd.f32 %v1536, %v1579
          %v1585 = vxor.u32 %v1584, 2147483648
          %v1586 = vmul.f32 %v1585, 1.442695
          %v1587 = vpow.pop %v1586
          %v1588 = vadd.f32 %v1587, 1.0
          %v1589 = vrcp.pop %v1588
          %v1590 = vmul.f32 1.0, %v1589
          %v1591 = vtanh.pop %v1584
          %v1592 = vmul.f32 %v1590, %v1514
          %1594 = vrot.lane.b32.xlu0 %v1591, 64
          %v1595 = vpop.permute.xlu0 %1594
          %v1597 = vmul.f32 %v1590, %v1595
          %1599 = vrot.lane.b32.xlu0 %v1597, 32
          %v1600 = vpop.permute.xlu0 %1599
          %v1602 = vadd.f32 %v1592, %v1600
          %v1603 = vtanh.pop %v1602
          %1605 = vrot.lane.b32.xlu0 %v1603, 64
          %v1606 = vpop.permute.xlu0 %1605
          %v1608 = vmul.f32 %v1590, %v1606
          %v1611 = vunpack.c.l.s4 1983009808
          %v1612 = vunpack.c.0.s8 %v1611
          %v1613 = vlaneseq
          %v1614 = vshrl.u32 %v1613, 7
          %v1615 = vsub.s32 %v1612, %v1614
          %v1616 = vrot.slane %v1608, %v1615
          %1617 = vrot.lane.b32.xlu0 %v1616, 32
          %v1618 = vpop.permute.xlu0 %1617
          %s1620 = scalar_lea.vmem %s265, 2
          %1621 = vst.msk [vmem:[%s1620] sm:$0x3] %vm1092, %v1618
          %v1622 = vld [vmem:[%s226] sm:$0x1]
          %v1623 = vunpack.c.l.bf16 %v1622
          %v1624 = vpack.c.bf16 %v1608, %v1608
          %1626 = vrot.lane.b32.xlu0 %v1624, 32
          %v1627 = vpop.permute.xlu0 %1626
          %v1629 = vsel %vm1011, %v1627, 0
          %1631 = vmatprep.subr.bf16.mxu0 0
          %1632 = vmatpush1.bf16.msra.mxu0 %v1007
          %1633 = vmatprep.subr.bf16.mxu0 0
          %1634 = vmatpush1.bf16.msra.mxu0 %v1008
          %1635 = vmatprep.subr.bf16.mxu0 0
          %1636 = vmatpush1.bf16.msra.mxu0 0
          %1637 = vmatprep.subr.bf16.mxu0 0
          %1638 = vmatpush1.bf16.msra.mxu0 0
          %1639 = vmatprep.subr.bf16.mxu0 0
          %1640 = vmatpush1.bf16.msra.mxu0 0
          %1641 = vmatprep.subr.bf16.mxu0 0
          %1642 = vmatpush1.bf16.msra.mxu0 0
          %1643 = vmatprep.subr.bf16.mxu0 0
          %1644 = vmatpush1.bf16.msra.mxu0 0
          %1645 = vmatprep.subr.bf16.mxu0 0
          %1646 = vmatpush1.bf16.msra.mxu0 0
          %1647 = vmatprep.subr.bf16.mxu0 0
          %1648 = vmatpush1.bf16.msra.mxu0 0
          %1649 = vmatprep.subr.bf16.mxu0 0
          %1650 = vmatpush1.bf16.msra.mxu0 0
          %1651 = vmatprep.subr.bf16.mxu0 0
          %1652 = vmatpush1.bf16.msra.mxu0 0
          %1653 = vmatprep.subr.bf16.mxu0 0
          %1654 = vmatpush1.bf16.msra.mxu0 0
          %1655 = vmatprep.subr.bf16.mxu0 0
          %1656 = vmatpush1.bf16.msra.mxu0 0
          %1657 = vmatprep.subr.bf16.mxu0 0
          %1658 = vmatpush1.bf16.msra.mxu0 0
          %1659 = vmatprep.subr.bf16.mxu0 0
          %1660 = vmatpush1.bf16.msra.mxu0 0
          %1661 = vmatprep.subr.bf16.mxu0 0
          %1662 = vmatpush1.bf16.msra.mxu0 0
          %1663 = vmatprep.mubr.bf16.mxu0 0
          %1664 = vmatmul.mubr.bf16.gmra.mrb[0].mxu0 %v1629
          %v1665 = vpop.f32.mrb[0].mxu0
          %v1666 = vadd.f32 0.0, %v1665
          %v1667 = vpop.f32.mrb[0].mxu0
          %v1668 = vpop.f32.mrb[0].mxu0
          %v1669 = vpop.f32.mrb[0].mxu0
          %1670 = vdwg.mxu0
          %v1671 = vadd.f32 %v1623, %v1666
          %v1672 = vxor.u32 %v1671, 2147483648
          %v1673 = vmul.f32 %v1672, 1.442695
          %v1674 = vpow.pop %v1673
          %v1675 = vadd.f32 %v1674, 1.0
          %v1676 = vrcp.pop %v1675
          %v1677 = vmul.f32 1.0, %v1676
          %v1678 = vtanh.pop %v1671
          %v1679 = vmul.f32 %v1677, %v1602
          %1681 = vrot.lane.b32.xlu0 %v1678, 64
          %v1682 = vpop.permute.xlu0 %1681
          %v1684 = vmul.f32 %v1677, %v1682
          %1686 = vrot.lane.b32.xlu0 %v1684, 32
          %v1687 = vpop.permute.xlu0 %1686
          %v1689 = vadd.f32 %v1679, %v1687
          %v1690 = vtanh.pop %v1689
          %1692 = vrot.lane.b32.xlu0 %v1690, 64
          %v1693 = vpop.permute.xlu0 %1692
          %v1695 = vmul.f32 %v1677, %v1693
          %v1698 = vunpack.c.l.s4 1983009808
          %v1699 = vunpack.c.0.s8 %v1698
          %v1700 = vlaneseq
          %v1701 = vshrl.u32 %v1700, 7
          %v1702 = vsub.s32 %v1699, %v1701
          %v1703 = vrot.slane %v1695, %v1702
          %1704 = vrot.lane.b32.xlu0 %v1703, 32
          %v1705 = vpop.permute.xlu0 %1704
          %1707 = vst.msk [vmem:[%s265] sm:$0x3] %vm1092, %v1705
          %1708 = vst.msk [vmem:[%s269] sm:$0x3] %vm1092, %v1705
        $region77: #{encoder_forward.7} parent=64 // pred_fallthru
          _
        %p1709 = scmp.lt.s32.totalorder %s15, 1
        %s1710 = scalar_select %p1709, %s15, 1
        %s1711 = smul.addr %s1710, 8
        %s1712 = smul.addr %s1711, 2
        %s1713 = scalar_lea.vmem %s2, %s1712
        %p1714 = scmp.lt.s32.totalorder %s15, 1
        %s1715 = scalar_select %p1714, %s15, 1
        %s1716 = smul.addr %s1715, 2
        %s1717 = scalar_lea.vmem %s3, %s1716
        // Predicated region
        $region78: #{encoder_forward.7} parent=64 // pred_check
          %p1718 = pneg %p85
        $region79: #{encoder_forward.7} parent=64 // pred_check_branch
          %1720 = sbr.rel (%p1718) target = $region81
        $region80: #{encoder_forward.7} parent=64 // pred_region
          _
        $region81: #{encoder_forward.7} parent=64 // pred_fallthru
          _
        // Predicated region
        $region82: #{encoder_forward.7} parent=64 // pred_check
          %p1721 = pneg %p111
        $region83: #{encoder_forward.7} parent=64 // pred_check_branch
          %1723 = sbr.rel (%p1721) target = $region85
        $region84: #{encoder_forward.7} parent=64 // pred_region
          _
        $region85: #{encoder_forward.7} parent=64 // pred_fallthru
          _
      $region65: #{encoder_forward.7} parent=5 // pred_fallthru
        _
      %p1724 = scmp.le.s32.totalorder 2, %s10
      // Predicated region
      $region86: #{encoder_forward.7} parent=5 // pred_check
        %p1725 = pneg %p1724
      $region87: #{encoder_forward.7} parent=5 // pred_check_branch
        %1727 = sbr.rel (%p1725) target = $region89
      $region88: #{encoder_forward.7} parent=5 // pred_region
        %s1728 = ssub.s32 %s10, 2
        // Predicated region
        $region90: #{encoder_forward.7} parent=88 // pred_check
          %p1729 = pneg %p91
        $region91: #{encoder_forward.7} parent=88 // pred_check_branch
          %1731 = sbr.rel (%p1729) target = $region93
        $region92: #{encoder_forward.7} parent=88 // pred_region
          %p1732 = scmp.lt.s32.totalorder %s16, 1
          %s1733 = scalar_select %p1732, %s16, 1
          %s1734 = smul.addr %s1733, 8
          %s1735 = smul.addr %s1734, 2
          %s1736 = scalar_lea.vmem %s2, %s1735
        $region93: #{encoder_forward.7} parent=88 // pred_fallthru
          _
        // Predicated region
        $region94: #{encoder_forward.7} parent=88 // pred_check
          %p1737 = pneg %p117
        $region95: #{encoder_forward.7} parent=88 // pred_check_branch
          %1739 = sbr.rel (%p1737) target = $region97
        $region96: #{encoder_forward.7} parent=88 // pred_region
          %p1740 = scmp.lt.s32.totalorder %s16, 1
          %s1741 = scalar_select %p1740, %s16, 1
          %s1742 = smul.addr %s1741, 2
          %s1743 = scalar_lea.vmem %s3, %s1742
        $region97: #{encoder_forward.7} parent=88 // pred_fallthru
          _
      $region89: #{encoder_forward.7} parent=5 // pred_fallthru
        _
    $region6: #{encoder_forward.7} parent=1 // loop_footer
      %s14 = sadd.s32 1, %s10
    $region7: #{encoder_forward.7} parent=1 // loop_footer_branch
      %9 = sbr.rel target = $region3
    $region8: #{encoder_forward.7} parent=1 // loop_exit
      _

// kernel: encoder_forward.5
$region0: #{encoder_forward.5}
  #allocation0 [shape = 'u32[]', space=smem, size = 0x4, offset = 0x4, fixed_abs, tag = 'smem constant byte address 0x4 - core index']
  #allocation1 [shape = 'u32[144,128]{1,0:T(1,128)}', space=vmem, size = 0x12000, scoped, tag = 'internal scratch']
  %s0 = inlined_call_operand.vmem [shape: bf16[8,2,256], index: 0, kind: input, shape index: {}]
  %s1 = inlined_call_operand.vmem [shape: bf16[2,32,128], index: 1, kind: input, shape index: {}]
  %s2 = inlined_call_operand.vmem [shape: bf16[2,8,2,32], index: 2, kind: output, shape index: {0}]
  %s3 = inlined_call_operand.vmem [shape: f32[2,2,32], index: 3, kind: output, shape index: {1}]
  %4 = xla_tuple %s2, %s3
  %s5 = sld [smem:[#allocation0]]
  $region98: #{encoder_forward.5} parent=0
    _
  %s7 = ssub.s32 1, %s5
  %s8 = scalar_select 0, %s7, %s5
  $region1: #{encoder_forward.5} parent=0
    #allocation2 [shape = 'u8[8192]{0}', space=vmem, size = 0x2000, scoped, tag = 'input window, operand 0']
    loop: start=0, step=1, limit=4
    $region2: #{encoder_forward.5} parent=1 // loop_pre_header
      _
    $region3: #{encoder_forward.5} parent=1 // loop_header
      %s10 = sphi 0, %s14
      %p11 = scmp.ge.s32.totalorder %s10, 4
      %s20 = sphi 0, %s22
      %s23 = sphi 0, %s20
      %s24 = sphi 0, %s23
      %s40 = sphi 0, %s24
      %s46 = sphi 0, %s48
      %s49 = sphi 0, %s46
      %s50 = sphi 0, %s49
      %s66 = sphi 0, %s50
      %s72 = sphi 0, %s74
      %s75 = sphi 0, %s72
      %s76 = sphi 0, %s75
      %s92 = sphi 0, %s76
      %s98 = sphi 0, %s100
      %s101 = sphi 0, %s98
      %s102 = sphi 0, %s101
      %s118 = sphi 0, %s102
    $region4: #{encoder_forward.5} parent=1 // loop_header_branch
      %13 = sbr.rel (%p11) target = $region8
    $region5: #{encoder_forward.5} parent=1 // loop_body
      %s15 = ssub.s32 %s10, 1
      %s16 = ssub.s32 %s10, 2
      %s17 = sadd.s32 %s10, 1
      %s18 = ssub.s32 %s10, %s17
      %p19 = scmp.eq.s32.totalorder %s18, 0
      %s21 = sadd.s32 %s20, 1
      %s22 = scalar_select %p19, %s20, %s21
      %p25 = pneg %p19
      %p26 = scmp.eq.s32.totalorder %s10, 1
      %p27 = por %p25, %p26
      %p28 = scmp.ne.s32.totalorder %s20, %s23
      %p29 = scmp.eq.s32.totalorder %s10, 0
      %p30 = por %p28, %p29
      %p31 = scmp.ne.s32.totalorder %s20, %s23
      %p32 = scmp.eq.s32.totalorder %s15, 1
      %p33 = por %p31, %p32
      %p34 = scmp.ne.s32.totalorder %s23, %s24
      %p35 = scmp.eq.s32.totalorder %s15, 0
      %p36 = por %p34, %p35
      %p37 = scmp.ne.s32.totalorder %s23, %s24
      %p38 = scmp.eq.s32.totalorder %s16, 1
      %p39 = por %p37, %p38
      %p41 = scmp.ne.s32.totalorder %s24, %s40
      %p42 = scmp.eq.s32.totalorder %s16, 0
      %p43 = por %p41, %p42
      %s44 = ssub.s32 %s10, %s17
      %p45 = scmp.eq.s32.totalorder %s44, 0
      %s47 = sadd.s32 %s46, 1
      %s48 = scalar_select %p45, %s46, %s47
      %p51 = pneg %p45
      %p52 = scmp.eq.s32.totalorder %s10, 1
      %p53 = por %p51, %p52
      %p54 = scmp.ne.s32.totalorder %s46, %s49
      %p55 = scmp.eq.s32.totalorder %s10, 0
      %p56 = por %p54, %p55
      %p57 = scmp.ne.s32.totalorder %s46, %s49
      %p58 = scmp.eq.s32.totalorder %s15, 1
      %p59 = por %p57, %p58
      %p60 = scmp.ne.s32.totalorder %s49, %s50
      %p61 = scmp.eq.s32.totalorder %s15, 0
      %p62 = por %p60, %p61
      %p63 = scmp.ne.s32.totalorder %s49, %s50
      %p64 = scmp.eq.s32.totalorder %s16, 1
      %p65 = por %p63, %p64
      %p67 = scmp.ne.s32.totalorder %s50, %s66
      %p68 = scmp.eq.s32.totalorder %s16, 0
      %p69 = por %p67, %p68
      %s70 = ssub.s32 %s10, %s17
      %p71 = scmp.eq.s32.totalorder %s70, 0
      %s73 = sadd.s32 %s72, 1
      %s74 = scalar_select %p71, %s72, %s73
      %p77 = pneg %p71
      %p78 = scmp.eq.s32.totalorder %s10, 1
      %p79 = por %p77, %p78
      %p80 = scmp.ne.s32.totalorder %s72, %s75
      %p81 = scmp.eq.s32.totalorder %s10, 0
      %p82 = por %p80, %p81
      %p83 = scmp.ne.s32.totalorder %s72, %s75
      %p84 = scmp.eq.s32.totalorder %s15, 1
      %p85 = por %p83, %p84
      %p86 = scmp.ne.s32.totalorder %s75, %s76
      %p87 = scmp.eq.s32.totalorder %s15, 0
      %p88 = por %p86, %p87
      %p89 = scmp.ne.s32.totalorder %s75, %s76
      %p90 = scmp.eq.s32.totalorder %s16, 1
      %p91 = por %p89, %p90
      %p93 = scmp.ne.s32.totalorder %s76, %s92
      %p94 = scmp.eq.s32.totalorder %s16, 0
      %p95 = por %p93, %p94
      %s96 = ssub.s32 %s10, %s17
      %p97 = scmp.eq.s32.totalorder %s96, 0
      %s99 = sadd.s32 %s98, 1
      %s100 = scalar_select %p97, %s98, %s99
      %p103 = pneg %p97
      %p104 = scmp.eq.s32.totalorder %s10, 1
      %p105 = por %p103, %p104
      %p106 = scmp.ne.s32.totalorder %s98, %s101
      %p107 = scmp.eq.s32.totalorder %s10, 0
      %p108 = por %p106, %p107
      %p109 = scmp.ne.s32.totalorder %s98, %s101
      %p110 = scmp.eq.s32.totalorder %s15, 1
      %p111 = por %p109, %p110
      %p112 = scmp.ne.s32.totalorder %s101, %s102
      %p113 = scmp.eq.s32.totalorder %s15, 0
      %p114 = por %p112, %p113
      %p115 = scmp.ne.s32.totalorder %s101, %s102
      %p116 = scmp.eq.s32.totalorder %s16, 1
      %p117 = por %p115, %p116
      %p119 = scmp.ne.s32.totalorder %s102, %s118
      %p120 = scmp.eq.s32.totalorder %s16, 0
      %p121 = por %p119, %p120
      %p122 = scmp.le.s32.totalorder 1, %s10
      %p123 = scmp.lt.s32.totalorder %s10, 3
      %p124 = pnand %p122, %p123
      %p125 = pneg %p124
      // Predicated region
      $region9: #{encoder_forward.5} parent=5 // pred_check
        _
      $region10: #{encoder_forward.5} parent=5 // pred_check_branch
        %127 = sbr.rel (%p124) target = $region12
      $region11: #{encoder_forward.5} parent=5 // pred_region
        %s128 = ssub.s32 %s10, 1
      $region12: #{encoder_forward.5} parent=5 // pred_fallthru
        _
      %p129 = scmp.lt.s32.totalorder %s10, 2
      // Predicated region
      $region13: #{encoder_forward.5} parent=5 // pred_check
        %p130 = pneg %p129
      $region14: #{encoder_forward.5} parent=5 // pred_check_branch
        %132 = sbr.rel (%p130) target = $region16
      $region15: #{encoder_forward.5} parent=5 // pred_region
        // Predicated region
        $region17: #{encoder_forward.5} parent=15 // pred_check
          %p133 = pneg %p30
        $region18: #{encoder_forward.5} parent=15 // pred_check_branch
          %135 = sbr.rel (%p133) target = $region20
        $region19: #{encoder_forward.5} parent=15 // pred_region
          %s136 = sand.u32 %s20, 1
          %s137 = sand.u32 %s20, 1
          %s138 = smul.addr %s137, 8
          %s139 = scalar_lea.vmem [#allocation2], %s138
          %s140 = scalar_lea.vmem %s0, %s10
          // Predicated region
          $region21: #{encoder_forward.5} parent=19 // pred_check
            _
          $region22: #{encoder_forward.5} parent=19 // pred_check_branch
            %142 = sbr.rel (0) target = $region24
          $region23: #{encoder_forward.5} parent=19 // pred_region
            // Predicated region
            $region25: #{encoder_forward.5} parent=23 // pred_check
              _
            $region26: #{encoder_forward.5} parent=23 // pred_check_branch
              %144 = sbr.rel target = $region28
            $region27: #{encoder_forward.5} parent=23 // pred_region
              // Predicated region
              $region40: #{encoder_forward.5} parent=27 // pred_check
                _
              $region41: #{encoder_forward.5} parent=27 // pred_check_branch
                %173 = sbr.rel (0) target = $region43
              $region42: #{encoder_forward.5} parent=27 // pred_region
                loop: start=0, step=1, limit=1
                $region44: #{encoder_forward.5} parent=42 // loop_pre_header
                  _
                $region45: #{encoder_forward.5} parent=42 // loop_header
                  %s175 = sphi 0, %s179
                  %p176 = scmp.ge.s32.totalorder %s175, 1
                  %s180 = sphi %s140, %s140
                  %s181 = sphi %s139, %s139
                $region46: #{encoder_forward.5} parent=42 // loop_header_branch
                  %178 = sbr.rel (%p176) target = $region50
                $region47: #{encoder_forward.5} parent=42 // loop_body
                  _
                $region48: #{encoder_forward.5} parent=42 // loop_footer
                  %s179 = sadd.s32 1, %s175
                $region49: #{encoder_forward.5} parent=42 // loop_footer_branch
                  %174 = sbr.rel target = $region45
                $region50: #{encoder_forward.5} parent=42 // loop_exit
                  _
                loop: start=0, step=1, limit=1
                $region51: #{encoder_forward.5} parent=42 // loop_pre_header
                  _
                $region52: #{encoder_forward.5} parent=42 // loop_header
                  %s184 = sphi 0, %s188
                  %p185 = scmp.ge.s32.totalorder %s184, 1
                  %s189 = sphi %s140, %s140
                  %s190 = sphi %s139, %s139
                $region53: #{encoder_forward.5} parent=42 // loop_header_branch
                  %187 = sbr.rel (%p185) target = $region57
                $region54: #{encoder_forward.5} parent=42 // loop_body
                  %v191 = vld [vmem:[%s189] sm:$0x1]
                  %192 = vst [vmem:[%s190] sm:$0x1] %v191
                  %v193 = vld [vmem:[%s189 + $0x2] sm:$0x1]
                  %194 = vst [vmem:[%s190 + $0x1] sm:$0x1] %v193
                  %v195 = vld [vmem:[%s189 + $0x4] sm:$0x1]
                  %196 = vst [vmem:[%s190 + $0x2] sm:$0x1] %v195
                  %v197 = vld [vmem:[%s189 + $0x6] sm:$0x1]
                  %198 = vst [vmem:[%s190 + $0x3] sm:$0x1] %v197
                  %v199 = vld [vmem:[%s189 + $0x8] sm:$0x1]
                  %200 = vst [vmem:[%s190 + $0x4] sm:$0x1] %v199
                  %v201 = vld [vmem:[%s189 + $0xa] sm:$0x1]
                  %202 = vst [vmem:[%s190 + $0x5] sm:$0x1] %v201
                  %v203 = vld [vmem:[%s189 + $0xc] sm:$0x1]
                  %204 = vst [vmem:[%s190 + $0x6] sm:$0x1] %v203
                  %v205 = vld [vmem:[%s189 + $0xe] sm:$0x1]
                  %206 = vst [vmem:[%s190 + $0x7] sm:$0x1] %v205
                $region55: #{encoder_forward.5} parent=42 // loop_footer
                  %s188 = sadd.s32 1, %s184
                $region56: #{encoder_forward.5} parent=42 // loop_footer_branch
                  %183 = sbr.rel target = $region52
                $region57: #{encoder_forward.5} parent=42 // loop_exit
                  _
              $region43: #{encoder_forward.5} parent=27 // pred_fallthru
                _
            $region28: #{encoder_forward.5} parent=23 // pred_fallthru
              _
            // Predicated region
            $region29: #{encoder_forward.5} parent=23 // pred_check
              _
            $region30: #{encoder_forward.5} parent=23 // pred_check_branch
              %146 = sbr.rel (0) target = $region32
            $region31: #{encoder_forward.5} parent=23 // pred_region
              loop: start=0, step=1, limit=1
              $region33: #{encoder_forward.5} parent=31 // loop_pre_header
                _
              $region34: #{encoder_forward.5} parent=31 // loop_header
                %s149 = sphi 0, %s153
                %p150 = scmp.ge.s32.totalorder %s149, 1
                %s154 = sphi %s140, %s140
                %s155 = sphi %s139, %s139
              $region35: #{encoder_forward.5} parent=31 // loop_header_branch
                %152 = sbr.rel (%p150) target = $region39
              $region36: #{encoder_forward.5} parent=31 // loop_body
                %v156 = vld [vmem:[%s154] sm:$0x1]
                %157 = vst [vmem:[%s155] sm:$0x1] %v156
                %v158 = vld [vmem:[%s154 + $0x2] sm:$0x1]
                %159 = vst [vmem:[%s155 + $0x1] sm:$0x1] %v158
                %v160 = vld [vmem:[%s154 + $0x4] sm:$0x1]
                %161 = vst [vmem:[%s155 + $0x2] sm:$0x1] %v160
                %v162 = vld [vmem:[%s154 + $0x6] sm:$0x1]
                %163 = vst [vmem:[%s155 + $0x3] sm:$0x1] %v162
                %v164 = vld [vmem:[%s154 + $0x8] sm:$0x1]
                %165 = vst [vmem:[%s155 + $0x4] sm:$0x1] %v164
                %v166 = vld [vmem:[%s154 + $0xa] sm:$0x1]
                %167 = vst [vmem:[%s155 + $0x5] sm:$0x1] %v166
                %v168 = vld [vmem:[%s154 + $0xc] sm:$0x1]
                %169 = vst [vmem:[%s155 + $0x6] sm:$0x1] %v168
                %v170 = vld [vmem:[%s154 + $0xe] sm:$0x1]
                %171 = vst [vmem:[%s155 + $0x7] sm:$0x1] %v170
              $region37: #{encoder_forward.5} parent=31 // loop_footer
                %s153 = sadd.s32 1, %s149
              $region38: #{encoder_forward.5} parent=31 // loop_footer_branch
                %148 = sbr.rel target = $region34
              $region39: #{encoder_forward.5} parent=31 // loop_exit
                _
            $region32: #{encoder_forward.5} parent=23 // pred_fallthru
              _
          $region24: #{encoder_forward.5} parent=19 // pred_fallthru
            _
          %207 = vnop
        $region20: #{encoder_forward.5} parent=15 // pred_fallthru
          _
        // Predicated region
        $region58: #{encoder_forward.5} parent=15 // pred_check
          %p208 = pneg %p56
        $region59: #{encoder_forward.5} parent=15 // pred_check_branch
          %210 = sbr.rel (%p208) target = $region61
        $region60: #{encoder_forward.5} parent=15 // pred_region
          %p211 = scmp.lt.s32.totalorder %s10, 1
          %s212 = scalar_select %p211, %s10, 1
          %s213 = smul.addr %s212, 4
          %s214 = smul.addr %s213, 4
          %s215 = scalar_lea.vmem %s1, %s214
        $region61: #{encoder_forward.5} parent=15 // pred_fallthru
          _
      $region16: #{encoder_forward.5} parent=5 // pred_fallthru
        _
      %p216 = scmp.le.s32.totalorder 1, %s10
      %p217 = scmp.lt.s32.totalorder %s10, 3
      %p218 = pnand %p216, %p217
      %p219 = pneg %p218
      // Predicated region
      $region62: #{encoder_forward.5} parent=5 // pred_check
        _
      $region63: #{encoder_forward.5} parent=5 // pred_check_branch
        %221 = sbr.rel (%p218) target = $region65
      $region64: #{encoder_forward.5} parent=5 // pred_region
        %s222 = ssub.s32 %s10, 1
        %s223 = sand.u32 %s23, 1
        %s224 = sand.u32 %s23, 1
        %s225 = smul.addr %s224, 8
        %s226 = scalar_lea.vmem [#allocation2], %s225
        // Predicated region
        $region66: #{encoder_forward.5} parent=64 // pred_check
          %p227 = pneg %p36
        $region67: #{encoder_forward.5} parent=64 // pred_check_branch
          %229 = sbr.rel (%p227) target = $region69
        $region68: #{encoder_forward.5} parent=64 // pred_region
          _
        $region69: #{encoder_forward.5} parent=64 // pred_fallthru
          _
        %s230 = sand.u32 %s23, 1
        %s231 = sand.u32 %s23, 1
        %s232 = smul.addr %s231, 8
        %s233 = scalar_lea.vmem [#allocation2], %s232
        %p234 = pneg %p36
        %p235 = pneg %p33
        %p236 = scmp.lt.s32.totalorder %s15, 1
        %s237 = scalar_select %p236, %s15, 1
        %s238 = smul.addr %s237, 4
        %s239 = smul.addr %s238, 4
        %s240 = scalar_lea.vmem %s1, %s239
        %p241 = pneg %p62
        %p242 = pneg %p59
        %p243 = pneg %p88
        %p244 = pneg %p85
        %p245 = scmp.lt.s32.totalorder %s15, 1
        %s246 = scalar_select %p245, %s15, 1
        %s247 = smul.addr %s246, 8
        %s248 = scalar_lea.vmem %s2, %s247
        %p249 = pneg %p114
        %p250 = pneg %p111
        %p251 = scmp.lt.s32.totalorder %s15, 1
        %s252 = scalar_select %p251, %s15, 1
        %s253 = smul.addr %s252, 2
        %s254 = scalar_lea.vmem %s3, %s253
        %p255 = scmp.lt.s32.totalorder %s15, 1
        %s256 = scalar_select %p255, %s15, 1
        %s257 = smul.addr %s256, 4
        %s258 = smul.addr %s257, 4
        %s259 = scalar_lea.vmem %s1, %s258
        %p260 = scmp.lt.s32.totalorder %s15, 1
        %s261 = scalar_select %p260, %s15, 1
        %s262 = smul.addr %s261, 8
        %s263 = scalar_lea.vmem %s2, %s262
        %p264 = scmp.lt.s32.totalorder %s15, 1
        %s265 = scalar_select %p264, %s15, 1
        %s266 = smul.addr %s265, 2
        %s267 = scalar_lea.vmem %s3, %s266
        %v269 = vld [vmem:[%s259] sm:$0xf]
        %v270 = vld [vmem:[%s259 + $0x4] sm:$0xf]
        %v271 = vld [vmem:[%s259 + $0x8] sm:$0xf]
        %v272 = vld [vmem:[%s259 + $0xc] sm:$0xf]
        %p273 = scmp.eq.s32.totalorder %s15, 0
        // Predicated region
        $region70: #{encoder_forward.5} parent=64 // pred_check
          %p274 = pneg %p273
        $region71: #{encoder_forward.5} parent=64 // pred_check_branch
          %276 = sbr.rel (%p274) target = $region73
        $region72: #{encoder_forward.5} parent=64 // pred_region
          %v277 = vld [vmem:[%s226] sm:$0x1]
          %v278 = vunpack.c.l.bf16 %v277
          %v283 = vunpack.c.l.b16 %v269
          %v284 = vunpack.c.l.b16 %v270
          %v285 = vunpack.c.l.b16 %v271
          %v286 = vunpack.c.l.b16 %v272
          %v287 = vpack.c.b16 %v284, %v283
          %v288 = vpack.c.b16 %v286, %v285
          %vm291 = vcmask 261120
          %v293 = vsel %vm291, 0, 0
          %295 = vmatprep.subr.bf16.mxu0 0
          %296 = vmatpush1.bf16.msra.mxu0 %v287
          %297 = vmatprep.subr.bf16.mxu0 0
          %298 = vmatpush1.bf16.msra.mxu0 %v288
          %299 = vmatprep.subr.bf16.mxu0 0
          %300 = vmatpush1.bf16.msra.mxu0 0
          %301 = vmatprep.subr.bf16.mxu0 0
          %302 = vmatpush1.bf16.msra.mxu0 0
          %303 = vmatprep.subr.bf16.mxu0 0
          %304 = vmatpush1.bf16.msra.mxu0 0
          %305 = vmatprep.subr.bf16.mxu0 0
          %306 = vmatpush1.bf16.msra.mxu0 0
          %307 = vmatprep.subr.bf16.mxu0 0
          %308 = vmatpush1.bf16.msra.mxu0 0
          %309 = vmatprep.subr.bf16.mxu0 0
          %310 = vmatpush1.bf16.msra.mxu0 0
          %311 = vmatprep.subr.bf16.mxu0 0
          %312 = vmatpush1.bf16.msra.mxu0 0
          %313 = vmatprep.subr.bf16.mxu0 0
          %314 = vmatpush1.bf16.msra.mxu0 0
          %315 = vmatprep.subr.bf16.mxu0 0
          %316 = vmatpush1.bf16.msra.mxu0 0
          %317 = vmatprep.subr.bf16.mxu0 0
          %318 = vmatpush1.bf16.msra.mxu0 0
          %319 = vmatprep.subr.bf16.mxu0 0
          %320 = vmatpush1.bf16.msra.mxu0 0
          %321 = vmatprep.subr.bf16.mxu0 0
          %322 = vmatpush1.bf16.msra.mxu0 0
          %323 = vmatprep.subr.bf16.mxu0 0
          %324 = vmatpush1.bf16.msra.mxu0 0
          %325 = vmatprep.subr.bf16.mxu0 0
          %326 = vmatpush1.bf16.msra.mxu0 0
          %327 = vmatprep.mubr.bf16.mxu0 0
          %328 = vmatmul.mubr.bf16.gmra.mrb[0].mxu0 %v293
          %v329 = vpop.f32.mrb[0].mxu0
          %v330 = vadd.f32 0.0, %v329
          %v331 = vpop.f32.mrb[0].mxu0
          %v332 = vpop.f32.mrb[0].mxu0
          %v333 = vpop.f32.mrb[0].mxu0
          %334 = vdwg.mxu0
          %v335 = vadd.f32 %v278, %v330
          %v336 = vxor.u32 %v335, 2147483648
          %v337 = vmul.f32 %v336, 1.442695
          %v338 = vpow.pop %v337
          %v339 = vadd.f32 %v338, 1.0
          %v340 = vrcp.pop %v339
          %v341 = vmul.f32 1.0, %v340
          %v342 = vtanh.pop %v335
          %v343 = vmul.f32 %v341, 0.0
          %345 = vrot.lane.b32.xlu0 %v342, 64
          %v346 = vpop.permute.xlu0 %345
          %v348 = vmul.f32 %v341, %v346
          %350 = vrot.lane.b32.xlu0 %v348, 32
          %v351 = vpop.permute.xlu0 %350
          %v353 = vadd.f32 %v343, %v351
          %v354 = vtanh.pop %v353
          %356 = vrot.lane.b32.xlu0 %v354, 64
          %v357 = vpop.permute.xlu0 %356
          %v359 = vmul.f32 %v341, %v357
          %v360 = vpack.c.bf16 %v359, %v359
          %v363 = vunpack.c.l.s4 1966171168
          %v364 = vunpack.c.0.s8 %v363
          %v365 = vlaneseq
          %v366 = vshrl.u32 %v365, 7
          %v367 = vsub.s32 %v364, %v366
          %v368 = vrot.slane %v360, %v367
          %v370 = vunpack.c.l.s4 1966171168
          %v371 = vunpack.c.0.s8 %v370
          %v372 = vlaneseq
          %v373 = vshrl.u32 %v372, 7
          %v374 = vsub.s32 %v371, %v373
          %v375 = vrot.slane %v368, %v374
          %376 = vrot.lane.b32.xlu0 %v375, 32
          %v377 = vpop.permute.xlu0 %376
          %vm379 = vcmask 253952
          %380 = vst.msk [vmem:[%s263] sm:$0x1] %vm379, %v377
          %s381 = scalar_lea.vmem %s226, 1 [#allocation2]
          %v382 = vld [vmem:[%s381] sm:$0x1]
          %v383 = vunpack.c.l.bf16 %v382
          %384 = vrot.lane.b32.xlu0 %v360, 32
          %v385 = vpop.permute.xlu0 %384
          %v387 = vsel %vm291, %v385, 0
          %389 = vmatprep.subr.bf16.mxu0 0
          %390 = vmatpush1.bf16.msra.mxu0 %v287
          %391 = vmatprep.subr.bf16.mxu0 0
          %392 = vmatpush1.bf16.msra.mxu0 %v288
          %393 = vmatprep.subr.bf16.mxu0 0
          %394 = vmatpush1.bf16.msra.mxu0 0
          %395 = vmatprep.subr.bf16.mxu0 0
          %396 = vmatpush1.bf16.msra.mxu0 0
          %397 = vmatprep.subr.bf16.mxu0 0
          %398 = vmatpush1.bf16.msra.mxu0 0
          %399 = vmatprep.subr.bf16.mxu0 0
          %400 = vmatpush1.bf16.msra.mxu0 0
          %401 = vmatprep.subr.bf16.mxu0 0
          %402 = vmatpush1.bf16.msra.mxu0 0
          %403 = vmatprep.subr.bf16.mxu0 0
          %404 = vmatpush1.bf16.msra.mxu0 0
          %405 = vmatprep.subr.bf16.mxu0 0
          %406 = vmatpush1.bf16.msra.mxu0 0
          %407 = vmatprep.subr.bf16.mxu0 0
          %408 = vmatpush1.bf16.msra.mxu0 0
          %409 = vmatprep.subr.bf16.mxu0 0
          %410 = vmatpush1.bf16.msra.mxu0 0
          %411 = vmatprep.subr.bf16.mxu0 0
          %412 = vmatpush1.bf16.msra.mxu0 0
          %413 = vmatprep.subr.bf16.mxu0 0
          %414 = vmatpush1.bf16.msra.mxu0 0
          %415 = vmatprep.subr.bf16.mxu0 0
          %416 = vmatpush1.bf16.msra.mxu0 0
          %417 = vmatprep.subr.bf16.mxu0 0
          %418 = vmatpush1.bf16.msra.mxu0 0
          %419 = vmatprep.subr.bf16.mxu0 0
          %420 = vmatpush1.bf16.msra.mxu0 0
          %421 = vmatprep.mubr.bf16.mxu0 0
          %422 = vmatmul.mubr.bf16.gmra.mrb[0].mxu0 %v387
          %v423 = vpop.f32.mrb[0].mxu0
          %v424 = vadd.f32 0.0, %v423
          %v425 = vpop.f32.mrb[0].mxu0
          %v426 = vpop.f32.mrb[0].mxu0
          %v427 = vpop.f32.mrb[0].mxu0
          %428 = vdwg.mxu0
          %v429 = vadd.f32 %v383, %v424
          %v430 = vxor.u32 %v429, 2147483648
          %v431 = vmul.f32 %v430, 1.442695
          %v432 = vpow.pop %v431
          %v433 = vadd.f32 %v432, 1.0
          %v434 = vrcp.pop %v433
          %v435 = vmul.f32 1.0, %v434
          %v436 = vtanh.pop %v429
          %v437 = vmul.f32 %v435, %v353
          %439 = vrot.lane.b32.xlu0 %v436, 64
          %v440 = vpop.permute.xlu0 %439
          %v442 = vmul.f32 %v435, %v440
          %444 = vrot.lane.b32.xlu0 %v442, 32
          %v445 = vpop.permute.xlu0 %444
          %v447 = vadd.f32 %v437, %v445
          %v448 = vtanh.pop %v447
          %450 = vrot.lane.b32.xlu0 %v448, 64
          %v451 = vpop.permute.xlu0 %450
          %v453 = vmul.f32 %v435, %v451
          %v454 = vpack.c.bf16 %v453, %v453
          %v457 = vunpack.c.l.s4 1966171168
          %v458 = vunpack.c.0.s8 %v457
          %v459 = vlaneseq
          %v460 = vshrl.u32 %v459, 7
          %v461 = vsub.s32 %v458, %v460
          %v462 = vrot.slane %v454, %v461
          %v464 = vunpack.c.l.s4 1966171168
          %v465 = vunpack.c.0.s8 %v464
          %v466 = vlaneseq
          %v467 = vshrl.u32 %v466, 7
          %v468 = vsub.s32 %v465, %v467
          %v469 = vrot.slane %v462, %v468
          %470 = vrot.lane.b32.xlu0 %v469, 32
          %v471 = vpop.permute.xlu0 %470
          %s473 = scalar_lea.vmem %s263, 1
          %474 = vst.msk [vmem:[%s473] sm:$0x1] %vm379, %v471
          %s475 = scalar_lea.vmem %s226, 2 [#allocation2]
          %v476 = vld [vmem:[%s475] sm:$0x1]
          %v477 = vunpack.c.l.bf16 %v476
          %478 = vrot.lane.b32.xlu0 %v454, 32
          %v479 = vpop.permute.xlu0 %478
          %v481 = vsel %vm291, %v479, 0
          %483 = vmatprep.subr.bf16.mxu0 0
          %484 = vmatpush1.bf16.msra.mxu0 %v287
          %485 = vmatprep.subr.bf16.mxu0 0
          %486 = vmatpush1.bf16.msra.mxu0 %v288
          %487 = vmatprep.subr.bf16.mxu0 0
          %488 = vmatpush1.bf16.msra.mxu0 0
          %489 = vmatprep.subr.bf16.mxu0 0
          %490 = vmatpush1.bf16.msra.mxu0 0
          %491 = vmatprep.subr.bf16.mxu0 0
          %492 = vmatpush1.bf16.msra.mxu0 0
          %493 = vmatprep.subr.bf16.mxu0 0
          %494 = vmatpush1.bf16.msra.mxu0 0
          %495 = vmatprep.subr.bf16.mxu0 0
          %496 = vmatpush1.bf16.msra.mxu0 0
          %497 = vmatprep.subr.bf16.mxu0 0
          %498 = vmatpush1.bf16.msra.mxu0 0
          %499 = vmatprep.subr.bf16.mxu0 0
          %500 = vmatpush1.bf16.msra.mxu0 0
          %501 = vmatprep.subr.bf16.mxu0 0
          %502 = vmatpush1.bf16.msra.mxu0 0
          %503 = vmatprep.subr.bf16.mxu0 0
          %504 = vmatpush1.bf16.msra.mxu0 0
          %505 = vmatprep.subr.bf16.mxu0 0
          %506 = vmatpush1.bf16.msra.mxu0 0
          %507 = vmatprep.subr.bf16.mxu0 0
          %508 = vmatpush1.bf16.msra.mxu0 0
          %509 = vmatprep.subr.bf16.mxu0 0
          %510 = vmatpush1.bf16.msra.mxu0 0
          %511 = vmatprep.subr.bf16.mxu0 0
          %512 = vmatpush1.bf16.msra.mxu0 0
          %513 = vmatprep.subr.bf16.mxu0 0
          %514 = vmatpush1.bf16.msra.mxu0 0
          %515 = vmatprep.mubr.bf16.mxu0 0
          %516 = vmatmul.mubr.bf16.gmra.mrb[0].mxu0 %v481
          %v517 = vpop.f32.mrb[0].mxu0
          %v518 = vadd.f32 0.0, %v517
          %v519 = vpop.f32.mrb[0].mxu0
          %v520 = vpop.f32.mrb[0].mxu0
          %v521 = vpop.f32.mrb[0].mxu0
          %522 = vdwg.mxu0
          %v523 = vadd.f32 %v477, %v518
          %v524 = vxor.u32 %v523, 2147483648
          %v525 = vmul.f32 %v524, 1.442695
          %v526 = vpow.pop %v525
          %v527 = vadd.f32 %v526, 1.0
          %v528 = vrcp.pop %v527
          %v529 = vmul.f32 1.0, %v528
          %v530 = vtanh.pop %v523
          %v531 = vmul.f32 %v529, %v447
          %533 = vrot.lane.b32.xlu0 %v530, 64
          %v534 = vpop.permute.xlu0 %533
          %v536 = vmul.f32 %v529, %v534
          %538 = vrot.lane.b32.xlu0 %v536, 32
          %v539 = vpop.permute.xlu0 %538
          %v541 = vadd.f32 %v531, %v539
          %v542 = vtanh.pop %v541
          %544 = vrot.lane.b32.xlu0 %v542, 64
          %v545 = vpop.permute.xlu0 %544
          %v547 = vmul.f32 %v529, %v545
          %v548 = vpack.c.bf16 %v547, %v547
          %v551 = vunpack.c.l.s4 1966171168
          %v552 = vunpack.c.0.s8 %v551
          %v553 = vlaneseq
          %v554 = vshrl.u32 %v553, 7
          %v555 = vsub.s32 %v552, %v554
          %v556 = vrot.slane %v548, %v555
          %v558 = vunpack.c.l.s4 1966171168
          %v559 = vunpack.c.0.s8 %v558
          %v560 = vlaneseq
          %v561 = vshrl.u32 %v560, 7
          %v562 = vsub.s32 %v559, %v561
          %v563 = vrot.slane %v556, %v562
          %564 = vrot.lane.b32.xlu0 %v563, 32
          %v565 = vpop.permute.xlu0 %564
          %s567 = scalar_lea.vmem %s263, 2
          %568 = vst.msk [vmem:[%s567] sm:$0x1] %vm379, %v565
          %s569 = scalar_lea.vmem %s226, 3 [#allocation2]
          %v570 = vld [vmem:[%s569] sm:$0x1]
          %v571 = vunpack.c.l.bf16 %v570
          %572 = vrot.lane.b32.xlu0 %v548, 32
          %v573 = vpop.permute.xlu0 %572
          %v575 = vsel %vm291, %v573, 0
          %577 = vmatprep.subr.bf16.mxu0 0
          %578 = vmatpush1.bf16.msra.mxu0 %v287
          %579 = vmatprep.subr.bf16.mxu0 0
          %580 = vmatpush1.bf16.msra.mxu0 %v288
          %581 = vmatprep.subr.bf16.mxu0 0
          %582 = vmatpush1.bf16.msra.mxu0 0
          %583 = vmatprep.subr.bf16.mxu0 0
          %584 = vmatpush1.bf16.msra.mxu0 0
          %585 = vmatprep.subr.bf16.mxu0 0
          %586 = vmatpush1.bf16.msra.mxu0 0
          %587 = vmatprep.subr.bf16.mxu0 0
          %588 = vmatpush1.bf16.msra.mxu0 0
          %589 = vmatprep.subr.bf16.mxu0 0
          %590 = vmatpush1.bf16.msra.mxu0 0
          %591 = vmatprep.subr.bf16.mxu0 0
          %592 = vmatpush1.bf16.msra.mxu0 0
          %593 = vmatprep.subr.bf16.mxu0 0
          %594 = vmatpush1.bf16.msra.mxu0 0
          %595 = vmatprep.subr.bf16.mxu0 0
          %596 = vmatpush1.bf16.msra.mxu0 0
          %597 = vmatprep.subr.bf16.mxu0 0
          %598 = vmatpush1.bf16.msra.mxu0 0
          %599 = vmatprep.subr.bf16.mxu0 0
          %600 = vmatpush1.bf16.msra.mxu0 0
          %601 = vmatprep.subr.bf16.mxu0 0
          %602 = vmatpush1.bf16.msra.mxu0 0
          %603 = vmatprep.subr.bf16.mxu0 0
          %604 = vmatpush1.bf16.msra.mxu0 0
          %605 = vmatprep.subr.bf16.mxu0 0
          %606 = vmatpush1.bf16.msra.mxu0 0
          %607 = vmatprep.subr.bf16.mxu0 0
          %608 = vmatpush1.bf16.msra.mxu0 0
          %609 = vmatprep.mubr.bf16.mxu0 0
          %610 = vmatmul.mubr.bf16.gmra.mrb[0].mxu0 %v575
          %v611 = vpop.f32.mrb[0].mxu0
          %v612 = vadd.f32 0.0, %v611
          %v613 = vpop.f32.mrb[0].mxu0
          %v614 = vpop.f32.mrb[0].mxu0
          %v615 = vpop.f32.mrb[0].mxu0
          %616 = vdwg.mxu0
          %v617 = vadd.f32 %v571, %v612
          %v618 = vxor.u32 %v617, 2147483648
          %v619 = vmul.f32 %v618, 1.442695
          %v620 = vpow.pop %v619
          %v621 = vadd.f32 %v620, 1.0
          %v622 = vrcp.pop %v621
          %v623 = vmul.f32 1.0, %v622
          %v624 = vtanh.pop %v617
          %v625 = vmul.f32 %v623, %v541
          %627 = vrot.lane.b32.xlu0 %v624, 64
          %v628 = vpop.permute.xlu0 %627
          %v630 = vmul.f32 %v623, %v628
          %632 = vrot.lane.b32.xlu0 %v630, 32
          %v633 = vpop.permute.xlu0 %632
          %v635 = vadd.f32 %v625, %v633
          %v636 = vtanh.pop %v635
          %638 = vrot.lane.b32.xlu0 %v636, 64
          %v639 = vpop.permute.xlu0 %638
          %v641 = vmul.f32 %v623, %v639
          %v642 = vpack.c.bf16 %v641, %v641
          %v645 = vunpack.c.l.s4 1966171168
          %v646 = vunpack.c.0.s8 %v645
          %v647 = vlaneseq
          %v648 = vshrl.u32 %v647, 7
          %v649 = vsub.s32 %v646, %v648
          %v650 = vrot.slane %v642, %v649
          %v652 = vunpack.c.l.s4 1966171168
          %v653 = vunpack.c.0.s8 %v652
          %v654 = vlaneseq
          %v655 = vshrl.u32 %v654, 7
          %v656 = vsub.s32 %v653, %v655
          %v657 = vrot.slane %v650, %v656
          %658 = vrot.lane.b32.xlu0 %v657, 32
          %v659 = vpop.permute.xlu0 %658
          %s661 = scalar_lea.vmem %s263, 3
          %662 = vst.msk [vmem:[%s661] sm:$0x1] %vm379, %v659
          %s663 = scalar_lea.vmem %s226, 4 [#allocation2]
          %v664 = vld [vmem:[%s663] sm:$0x1]
          %v665 = vunpack.c.l.bf16 %v664
          %666 = vrot.lane.b32.xlu0 %v642, 32
          %v667 = vpop.permute.xlu0 %666
          %v669 = vsel %vm291, %v667, 0
          %671 = vmatprep.subr.bf16.mxu0 0
          %672 = vmatpush1.bf16.msra.mxu0 %v287
          %673 = vmatprep.subr.bf16.mxu0 0
          %674 = vmatpush1.bf16.msra.mxu0 %v288
          %675 = vmatprep.subr.bf16.mxu0 0
          %676 = vmatpush1.bf16.msra.mxu0 0
          %677 = vmatprep.subr.bf16.mxu0 0
          %678 = vmatpush1.bf16.msra.mxu0 0
          %679 = vmatprep.subr.bf16.mxu0 0
          %680 = vmatpush1.bf16.msra.mxu0 0
          %681 = vmatprep.subr.bf16.mxu0 0
          %682 = vmatpush1.bf16.msra.mxu0 0
          %683 = vmatprep.subr.bf16.mxu0 0
          %684 = vmatpush1.bf16.msra.mxu0 0
          %685 = vmatprep.subr.bf16.mxu0 0
          %686 = vmatpush1.bf16.msra.mxu0 0
          %687 = vmatprep.subr.bf16.mxu0 0
          %688 = vmatpush1.bf16.msra.mxu0 0
          %689 = vmatprep.subr.bf16.mxu0 0
          %690 = vmatpush1.bf16.msra.mxu0 0
          %691 = vmatprep.subr.bf16.mxu0 0
          %692 = vmatpush1.bf16.msra.mxu0 0
          %693 = vmatprep.subr.bf16.mxu0 0
          %694 = vmatpush1.bf16.msra.mxu0 0
          %695 = vmatprep.subr.bf16.mxu0 0
          %696 = vmatpush1.bf16.msra.mxu0 0
          %697 = vmatprep.subr.bf16.mxu0 0
          %698 = vmatpush1.bf16.msra.mxu0 0
          %699 = vmatprep.subr.bf16.mxu0 0
          %700 = vmatpush1.bf16.msra.mxu0 0
          %701 = vmatprep.subr.bf16.mxu0 0
          %702 = vmatpush1.bf16.msra.mxu0 0
          %703 = vmatprep.mubr.bf16.mxu0 0
          %704 = vmatmul.mubr.bf16.gmra.mrb[0].mxu0 %v669
          %v705 = vpop.f32.mrb[0].mxu0
          %v706 = vadd.f32 0.0, %v705
          %v707 = vpop.f32.mrb[0].mxu0
          %v708 = vpop.f32.mrb[0].mxu0
          %v709 = vpop.f32.mrb[0].mxu0
          %710 = vdwg.mxu0
          %v711 = vadd.f32 %v665, %v706
          %v712 = vxor.u32 %v711, 2147483648
          %v713 = vmul.f32 %v712, 1.442695
          %v714 = vpow.pop %v713
          %v715 = vadd.f32 %v714, 1.0
          %v716 = vrcp.pop %v715
          %v717 = vmul.f32 1.0, %v716
          %v718 = vtanh.pop %v711
          %v719 = vmul.f32 %v717, %v635
          %721 = vrot.lane.b32.xlu0 %v718, 64
          %v722 = vpop.permute.xlu0 %721
          %v724 = vmul.f32 %v717, %v722
          %726 = vrot.lane.b32.xlu0 %v724, 32
          %v727 = vpop.permute.xlu0 %726
          %v729 = vadd.f32 %v719, %v727
          %v730 = vtanh.pop %v729
          %732 = vrot.lane.b32.xlu0 %v730, 64
          %v733 = vpop.permute.xlu0 %732
          %v735 = vmul.f32 %v717, %v733
          %v736 = vpack.c.bf16 %v735, %v735
          %v739 = vunpack.c.l.s4 1966171168
          %v740 = vunpack.c.0.s8 %v739
          %v741 = vlaneseq
          %v742 = vshrl.u32 %v741, 7
          %v743 = vsub.s32 %v740, %v742
          %v744 = vrot.slane %v736, %v743
          %v746 = vunpack.c.l.s4 1966171168
          %v747 = vunpack.c.0.s8 %v746
          %v748 = vlaneseq
          %v749 = vshrl.u32 %v748, 7
          %v750 = vsub.s32 %v747, %v749
          %v751 = vrot.slane %v744, %v750
          %752 = vrot.lane.b32.xlu0 %v751, 32
          %v753 = vpop.permute.xlu0 %752
          %s755 = scalar_lea.vmem %s263, 4
          %756 = vst.msk [vmem:[%s755] sm:$0x1] %vm379, %v753
          %s757 = scalar_lea.vmem %s226, 5 [#allocation2]
          %v758 = vld [vmem:[%s757] sm:$0x1]
          %v759 = vunpack.c.l.bf16 %v758
          %760 = vrot.lane.b32.xlu0 %v736, 32
          %v761 = vpop.permute.xlu0 %760
          %v763 = vsel %vm291, %v761, 0
          %765 = vmatprep.subr.bf16.mxu0 0
          %766 = vmatpush1.bf16.msra.mxu0 %v287
          %767 = vmatprep.subr.bf16.mxu0 0
          %768 = vmatpush1.bf16.msra.mxu0 %v288
          %769 = vmatprep.subr.bf16.mxu0 0
          %770 = vmatpush1.bf16.msra.mxu0 0
          %771 = vmatprep.subr.bf16.mxu0 0
          %772 = vmatpush1.bf16.msra.mxu0 0
          %773 = vmatprep.subr.bf16.mxu0 0
          %774 = vmatpush1.bf16.msra.mxu0 0
          %775 = vmatprep.subr.bf16.mxu0 0
          %776 = vmatpush1.bf16.msra.mxu0 0
          %777 = vmatprep.subr.bf16.mxu0 0
          %778 = vmatpush1.bf16.msra.mxu0 0
          %779 = vmatprep.subr.bf16.mxu0 0
          %780 = vmatpush1.bf16.msra.mxu0 0
          %781 = vmatprep.subr.bf16.mxu0 0
          %782 = vmatpush1.bf16.msra.mxu0 0
          %783 = vmatprep.subr.bf16.mxu0 0
          %784 = vmatpush1.bf16.msra.mxu0 0
          %785 = vmatprep.subr.bf16.mxu0 0
          %786 = vmatpush1.bf16.msra.mxu0 0
          %787 = vmatprep.subr.bf16.mxu0 0
          %788 = vmatpush1.bf16.msra.mxu0 0
          %789 = vmatprep.subr.bf16.mxu0 0
          %790 = vmatpush1.bf16.msra.mxu0 0
          %791 = vmatprep.subr.bf16.mxu0 0
          %792 = vmatpush1.bf16.msra.mxu0 0
          %793 = vmatprep.subr.bf16.mxu0 0
          %794 = vmatpush1.bf16.msra.mxu0 0
          %795 = vmatprep.subr.bf16.mxu0 0
          %796 = vmatpush1.bf16.msra.mxu0 0
          %797 = vmatprep.mubr.bf16.mxu0 0
          %798 = vmatmul.mubr.bf16.gmra.mrb[0].mxu0 %v763
          %v799 = vpop.f32.mrb[0].mxu0
          %v800 = vadd.f32 0.0, %v799
          %v801 = vpop.f32.mrb[0].mxu0
          %v802 = vpop.f32.mrb[0].mxu0
          %v803 = vpop.f32.mrb[0].mxu0
          %804 = vdwg.mxu0
          %v805 = vadd.f32 %v759, %v800
          %v806 = vxor.u32 %v805, 2147483648
          %v807 = vmul.f32 %v806, 1.442695
          %v808 = vpow.pop %v807
          %v809 = vadd.f32 %v808, 1.0
          %v810 = vrcp.pop %v809
          %v811 = vmul.f32 1.0, %v810
          %v812 = vtanh.pop %v805
          %v813 = vmul.f32 %v811, %v729
          %815 = vrot.lane.b32.xlu0 %v812, 64
          %v816 = vpop.permute.xlu0 %815
          %v818 = vmul.f32 %v811, %v816
          %820 = vrot.lane.b32.xlu0 %v818, 32
          %v821 = vpop.permute.xlu0 %820
          %v823 = vadd.f32 %v813, %v821
          %v824 = vtanh.pop %v823
          %826 = vrot.lane.b32.xlu0 %v824, 64
          %v827 = vpop.permute.xlu0 %826
          %v829 = vmul.f32 %v811, %v827
          %v830 = vpack.c.bf16 %v829, %v829
          %v833 = vunpack.c.l.s4 1966171168
          %v834 = vunpack.c.0.s8 %v833
          %v835 = vlaneseq
          %v836 = vshrl.u32 %v835, 7
          %v837 = vsub.s32 %v834, %v836
          %v838 = vrot.slane %v830, %v837
          %v840 = vunpack.c.l.s4 1966171168
          %v841 = vunpack.c.0.s8 %v840
          %v842 = vlaneseq
          %v843 = vshrl.u32 %v842, 7
          %v844 = vsub.s32 %v841, %v843
          %v845 = vrot.slane %v838, %v844
          %846 = vrot.lane.b32.xlu0 %v845, 32
          %v847 = vpop.permute.xlu0 %846
          %s849 = scalar_lea.vmem %s263, 5
          %850 = vst.msk [vmem:[%s849] sm:$0x1] %vm379, %v847
          %s851 = scalar_lea.vmem %s226, 6 [#allocation2]
          %v852 = vld [vmem:[%s851] sm:$0x1]
          %v853 = vunpack.c.l.bf16 %v852
          %854 = vrot.lane.b32.xlu0 %v830, 32
          %v855 = vpop.permute.xlu0 %854
          %v857 = vsel %vm291, %v855, 0
          %859 = vmatprep.subr.bf16.mxu0 0
          %860 = vmatpush1.bf16.msra.mxu0 %v287
          %861 = vmatprep.subr.bf16.mxu0 0
          %862 = vmatpush1.bf16.msra.mxu0 %v288
          %863 = vmatprep.subr.bf16.mxu0 0
          %864 = vmatpush1.bf16.msra.mxu0 0
          %865 = vmatprep.subr.bf16.mxu0 0
          %866 = vmatpush1.bf16.msra.mxu0 0
          %867 = vmatprep.subr.bf16.mxu0 0
          %868 = vmatpush1.bf16.msra.mxu0 0
          %869 = vmatprep.subr.bf16.mxu0 0
          %870 = vmatpush1.bf16.msra.mxu0 0
          %871 = vmatprep.subr.bf16.mxu0 0
          %872 = vmatpush1.bf16.msra.mxu0 0
          %873 = vmatprep.subr.bf16.mxu0 0
          %874 = vmatpush1.bf16.msra.mxu0 0
          %875 = vmatprep.subr.bf16.mxu0 0
          %876 = vmatpush1.bf16.msra.mxu0 0
          %877 = vmatprep.subr.bf16.mxu0 0
          %878 = vmatpush1.bf16.msra.mxu0 0
          %879 = vmatprep.subr.bf16.mxu0 0
          %880 = vmatpush1.bf16.msra.mxu0 0
          %881 = vmatprep.subr.bf16.mxu0 0
          %882 = vmatpush1.bf16.msra.mxu0 0
          %883 = vmatprep.subr.bf16.mxu0 0
          %884 = vmatpush1.bf16.msra.mxu0 0
          %885 = vmatprep.subr.bf16.mxu0 0
          %886 = vmatpush1.bf16.msra.mxu0 0
          %887 = vmatprep.subr.bf16.mxu0 0
          %888 = vmatpush1.bf16.msra.mxu0 0
          %889 = vmatprep.subr.bf16.mxu0 0
          %890 = vmatpush1.bf16.msra.mxu0 0
          %891 = vmatprep.mubr.bf16.mxu0 0
          %892 = vmatmul.mubr.bf16.gmra.mrb[0].mxu0 %v857
          %v893 = vpop.f32.mrb[0].mxu0
          %v894 = vadd.f32 0.0, %v893
          %v895 = vpop.f32.mrb[0].mxu0
          %v896 = vpop.f32.mrb[0].mxu0
          %v897 = vpop.f32.mrb[0].mxu0
          %898 = vdwg.mxu0
          %v899 = vadd.f32 %v853, %v894
          %v900 = vxor.u32 %v899, 2147483648
          %v901 = vmul.f32 %v900, 1.442695
          %v902 = vpow.pop %v901
          %v903 = vadd.f32 %v902, 1.0
          %v904 = vrcp.pop %v903
          %v905 = vmul.f32 1.0, %v904
          %v906 = vtanh.pop %v899
          %v907 = vmul.f32 %v905, %v823
          %909 = vrot.lane.b32.xlu0 %v906, 64
          %v910 = vpop.permute.xlu0 %909
          %v912 = vmul.f32 %v905, %v910
          %914 = vrot.lane.b32.xlu0 %v912, 32
          %v915 = vpop.permute.xlu0 %914
          %v917 = vadd.f32 %v907, %v915
          %v918 = vtanh.pop %v917
          %920 = vrot.lane.b32.xlu0 %v918, 64
          %v921 = vpop.permute.xlu0 %920
          %v923 = vmul.f32 %v905, %v921
          %v924 = vpack.c.bf16 %v923, %v923
          %v927 = vunpack.c.l.s4 1966171168
          %v928 = vunpack.c.0.s8 %v927
          %v929 = vlaneseq
          %v930 = vshrl.u32 %v929, 7
          %v931 = vsub.s32 %v928, %v930
          %v932 = vrot.slane %v924, %v931
          %v934 = vunpack.c.l.s4 1966171168
          %v935 = vunpack.c.0.s8 %v934
          %v936 = vlaneseq
          %v937 = vshrl.u32 %v936, 7
          %v938 = vsub.s32 %v935, %v937
          %v939 = vrot.slane %v932, %v938
          %940 = vrot.lane.b32.xlu0 %v939, 32
          %v941 = vpop.permute.xlu0 %940
          %s943 = scalar_lea.vmem %s263, 6
          %944 = vst.msk [vmem:[%s943] sm:$0x1] %vm379, %v941
          %s945 = scalar_lea.vmem %s226, 7 [#allocation2]
          %v946 = vld [vmem:[%s945] sm:$0x1]
          %v947 = vunpack.c.l.bf16 %v946
          %948 = vrot.lane.b32.xlu0 %v924, 32
          %v949 = vpop.permute.xlu0 %948
          %v951 = vsel %vm291, %v949, 0
          %953 = vmatprep.subr.bf16.mxu0 0
          %954 = vmatpush1.bf16.msra.mxu0 %v287
          %955 = vmatprep.subr.bf16.mxu0 0
          %956 = vmatpush1.bf16.msra.mxu0 %v288
          %957 = vmatprep.subr.bf16.mxu0 0
          %958 = vmatpush1.bf16.msra.mxu0 0
          %959 = vmatprep.subr.bf16.mxu0 0
          %960 = vmatpush1.bf16.msra.mxu0 0
          %961 = vmatprep.subr.bf16.mxu0 0
          %962 = vmatpush1.bf16.msra.mxu0 0
          %963 = vmatprep.subr.bf16.mxu0 0
          %964 = vmatpush1.bf16.msra.mxu0 0
          %965 = vmatprep.subr.bf16.mxu0 0
          %966 = vmatpush1.bf16.msra.mxu0 0
          %967 = vmatprep.subr.bf16.mxu0 0
          %968 = vmatpush1.bf16.msra.mxu0 0
          %969 = vmatprep.subr.bf16.mxu0 0
          %970 = vmatpush1.bf16.msra.mxu0 0
          %971 = vmatprep.subr.bf16.mxu0 0
          %972 = vmatpush1.bf16.msra.mxu0 0
          %973 = vmatprep.subr.bf16.mxu0 0
          %974 = vmatpush1.bf16.msra.mxu0 0
          %975 = vmatprep.subr.bf16.mxu0 0
          %976 = vmatpush1.bf16.msra.mxu0 0
          %977 = vmatprep.subr.bf16.mxu0 0
          %978 = vmatpush1.bf16.msra.mxu0 0
          %979 = vmatprep.subr.bf16.mxu0 0
          %980 = vmatpush1.bf16.msra.mxu0 0
          %981 = vmatprep.subr.bf16.mxu0 0
          %982 = vmatpush1.bf16.msra.mxu0 0
          %983 = vmatprep.subr.bf16.mxu0 0
          %984 = vmatpush1.bf16.msra.mxu0 0
          %985 = vmatprep.mubr.bf16.mxu0 0
          %986 = vmatmul.mubr.bf16.gmra.mrb[0].mxu0 %v951
          %v987 = vpop.f32.mrb[0].mxu0
          %v988 = vadd.f32 0.0, %v987
          %v989 = vpop.f32.mrb[0].mxu0
          %v990 = vpop.f32.mrb[0].mxu0
          %v991 = vpop.f32.mrb[0].mxu0
          %992 = vdwg.mxu0
          %v993 = vadd.f32 %v947, %v988
          %v994 = vxor.u32 %v993, 2147483648
          %v995 = vmul.f32 %v994, 1.442695
          %v996 = vpow.pop %v995
          %v997 = vadd.f32 %v996, 1.0
          %v998 = vrcp.pop %v997
          %v999 = vmul.f32 1.0, %v998
          %v1000 = vtanh.pop %v993
          %v1001 = vmul.f32 %v999, %v917
          %1003 = vrot.lane.b32.xlu0 %v1000, 64
          %v1004 = vpop.permute.xlu0 %1003
          %v1006 = vmul.f32 %v999, %v1004
          %1008 = vrot.lane.b32.xlu0 %v1006, 32
          %v1009 = vpop.permute.xlu0 %1008
          %v1011 = vadd.f32 %v1001, %v1009
          %v1012 = vtanh.pop %v1011
          %1014 = vrot.lane.b32.xlu0 %v1012, 64
          %v1015 = vpop.permute.xlu0 %1014
          %v1017 = vmul.f32 %v999, %v1015
          %v1018 = vpack.c.bf16 %v1017, %v1017
          %v1021 = vunpack.c.l.s4 1966171168
          %v1022 = vunpack.c.0.s8 %v1021
          %v1023 = vlaneseq
          %v1024 = vshrl.u32 %v1023, 7
          %v1025 = vsub.s32 %v1022, %v1024
          %v1026 = vrot.slane %v1018, %v1025
          %v1028 = vunpack.c.l.s4 1966171168
          %v1029 = vunpack.c.0.s8 %v1028
          %v1030 = vlaneseq
          %v1031 = vshrl.u32 %v1030, 7
          %v1032 = vsub.s32 %v1029, %v1031
          %v1033 = vrot.slane %v1026, %v1032
          %1034 = vrot.lane.b32.xlu0 %v1033, 32
          %v1035 = vpop.permute.xlu0 %1034
          %s1037 = scalar_lea.vmem %s263, 7
          %1038 = vst.msk [vmem:[%s1037] sm:$0x1] %vm379, %v1035
          %v1041 = vunpack.c.l.s4 1983009808
          %v1042 = vunpack.c.0.s8 %v1041
          %v1043 = vlaneseq
          %v1044 = vshrl.u32 %v1043, 7
          %v1045 = vsub.s32 %v1042, %v1044
          %v1046 = vrot.slane %v1017, %v1045
          %1047 = vrot.lane.b32.xlu0 %v1046, 32
          %v1048 = vpop.permute.xlu0 %1047
          %vm1050 = vcmask 254976
          %1051 = vst.msk [vmem:[%s267] sm:$0x3] %vm1050, %v1048
        $region73: #{encoder_forward.5} parent=64 // pred_fallthru
          _
        %p1052 = scmp.eq.s32.totalorder %s15, 1
        // Predicated region
        $region74: #{encoder_forward.5} parent=64 // pred_check
          %p1053 = pneg %p1052
        $region75: #{encoder_forward.5} parent=64 // pred_check_branch
          %1055 = sbr.rel (%p1053) target = $region77
        $region76: #{encoder_forward.5} parent=64 // pred_region
          %s1056 = scalar_lea.vmem %s226, 7 [#allocation2]
          %v1057 = vld [vmem:[%s1056] sm:$0x1]
          %v1058 = vunpack.c.l.bf16 %v1057
          %v1063 = vunpack.c.l.b16 %v269
          %v1064 = vunpack.c.l.b16 %v270
          %v1065 = vunpack.c.l.b16 %v271
          %v1066 = vunpack.c.l.b16 %v272
          %v1067 = vpack.c.b16 %v1064, %v1063
          %v1068 = vpack.c.b16 %v1066, %v1065
          %vm1071 = vcmask 261120
          %v1073 = vsel %vm1071, 0, 0
          %1075 = vmatprep.subr.bf16.mxu0 0
          %1076 = vmatpush1.bf16.msra.mxu0 %v1067
          %1077 = vmatprep.subr.bf16.mxu0 0
          %1078 = vmatpush1.bf16.msra.mxu0 %v1068
          %1079 = vmatprep.subr.bf16.mxu0 0
          %1080 = vmatpush1.bf16.msra.mxu0 0
          %1081 = vmatprep.subr.bf16.mxu0 0
          %1082 = vmatpush1.bf16.msra.mxu0 0
          %1083 = vmatprep.subr.bf16.mxu0 0
          %1084 = vmatpush1.bf16.msra.mxu0 0
          %1085 = vmatprep.subr.bf16.mxu0 0
          %1086 = vmatpush1.bf16.msra.mxu0 0
          %1087 = vmatprep.subr.bf16.mxu0 0
          %1088 = vmatpush1.bf16.msra.mxu0 0
          %1089 = vmatprep.subr.bf16.mxu0 0
          %1090 = vmatpush1.bf16.msra.mxu0 0
          %1091 = vmatprep.subr.bf16.mxu0 0
          %1092 = vmatpush1.bf16.msra.mxu0 0
          %1093 = vmatprep.subr.bf16.mxu0 0
          %1094 = vmatpush1.bf16.msra.mxu0 0
          %1095 = vmatprep.subr.bf16.mxu0 0
          %1096 = vmatpush1.bf16.msra.mxu0 0
          %1097 = vmatprep.subr.bf16.mxu0 0
          %1098 = vmatpush1.bf16.msra.mxu0 0
          %1099 = vmatprep.subr.bf16.mxu0 0
          %1100 = vmatpush1.bf16.msra.mxu0 0
          %1101 = vmatprep.subr.bf16.mxu0 0
          %1102 = vmatpush1.bf16.msra.mxu0 0
          %1103 = vmatprep.subr.bf16.mxu0 0
          %1104 = vmatpush1.bf16.msra.mxu0 0
          %1105 = vmatprep.subr.bf16.mxu0 0
          %1106 = vmatpush1.bf16.msra.mxu0 0
          %1107 = vmatprep.mubr.bf16.mxu0 0
          %1108 = vmatmul.mubr.bf16.gmra.mrb[0].mxu0 %v1073
          %v1109 = vpop.f32.mrb[0].mxu0
          %v1110 = vadd.f32 0.0, %v1109
          %v1111 = vpop.f32.mrb[0].mxu0
          %v1112 = vpop.f32.mrb[0].mxu0
          %v1113 = vpop.f32.mrb[0].mxu0
          %1114 = vdwg.mxu0
          %v1115 = vadd.f32 %v1058, %v1110
          %v1116 = vxor.u32 %v1115, 2147483648
          %v1117 = vmul.f32 %v1116, 1.442695
          %v1118 = vpow.pop %v1117
          %v1119 = vadd.f32 %v1118, 1.0
          %v1120 = vrcp.pop %v1119
          %v1121 = vmul.f32 1.0, %v1120
          %v1122 = vtanh.pop %v1115
          %v1123 = vmul.f32 %v1121, 0.0
          %1125 = vrot.lane.b32.xlu0 %v1122, 64
          %v1126 = vpop.permute.xlu0 %1125
          %v1128 = vmul.f32 %v1121, %v1126
          %1130 = vrot.lane.b32.xlu0 %v1128, 32
          %v1131 = vpop.permute.xlu0 %1130
          %v1133 = vadd.f32 %v1123, %v1131
          %v1134 = vtanh.pop %v1133
          %1136 = vrot.lane.b32.xlu0 %v1134, 64
          %v1137 = vpop.permute.xlu0 %1136
          %v1139 = vmul.f32 %v1121, %v1137
          %v1140 = vpack.c.bf16 %v1139, %v1139
          %v1143 = vunpack.c.l.s4 1966171168
          %v1144 = vunpack.c.0.s8 %v1143
          %v1145 = vlaneseq
          %v1146 = vshrl.u32 %v1145, 7
          %v1147 = vsub.s32 %v1144, %v1146
          %v1148 = vrot.slane %v1140, %v1147
          %v1150 = vunpack.c.l.s4 1966171168
          %v1151 = vunpack.c.0.s8 %v1150
          %v1152 = vlaneseq
          %v1153 = vshrl.u32 %v1152, 7
          %v1154 = vsub.s32 %v1151, %v1153
          %v1155 = vrot.slane %v1148, %v1154
          %1156 = vrot.lane.b32.xlu0 %v1155, 32
          %v1157 = vpop.permute.xlu0 %1156
          %s1159 = scalar_lea.vmem %s263, 7
          %vm1160 = vcmask 253952
          %1161 = vst.msk [vmem:[%s1159] sm:$0x1] %vm1160, %v1157
          %s1162 = scalar_lea.vmem %s226, 6 [#allocation2]
          %v1163 = vld [vmem:[%s1162] sm:$0x1]
          %v1164 = vunpack.c.l.bf16 %v1163
          %1165 = vrot.lane.b32.xlu0 %v1140, 32
          %v1166 = vpop.permute.xlu0 %1165
          %v1168 = vsel %vm1071, %v1166, 0
          %1170 = vmatprep.subr.bf16.mxu0 0
          %1171 = vmatpush1.bf16.msra.mxu0 %v1067
          %1172 = vmatprep.subr.bf16.mxu0 0
          %1173 = vmatpush1.bf16.msra.mxu0 %v1068
          %1174 = vmatprep.subr.bf16.mxu0 0
          %1175 = vmatpush1.bf16.msra.mxu0 0
          %1176 = vmatprep.subr.bf16.mxu0 0
          %1177 = vmatpush1.bf16.msra.mxu0 0
          %1178 = vmatprep.subr.bf16.mxu0 0
          %1179 = vmatpush1.bf16.msra.mxu0 0
          %1180 = vmatprep.subr.bf16.mxu0 0
          %1181 = vmatpush1.bf16.msra.mxu0 0
          %1182 = vmatprep.subr.bf16.mxu0 0
          %1183 = vmatpush1.bf16.msra.mxu0 0
          %1184 = vmatprep.subr.bf16.mxu0 0
          %1185 = vmatpush1.bf16.msra.mxu0 0
          %1186 = vmatprep.subr.bf16.mxu0 0
          %1187 = vmatpush1.bf16.msra.mxu0 0
          %1188 = vmatprep.subr.bf16.mxu0 0
          %1189 = vmatpush1.bf16.msra.mxu0 0
          %1190 = vmatprep.subr.bf16.mxu0 0
          %1191 = vmatpush1.bf16.msra.mxu0 0
          %1192 = vmatprep.subr.bf16.mxu0 0
          %1193 = vmatpush1.bf16.msra.mxu0 0
          %1194 = vmatprep.subr.bf16.mxu0 0
          %1195 = vmatpush1.bf16.msra.mxu0 0
          %1196 = vmatprep.subr.bf16.mxu0 0
          %1197 = vmatpush1.bf16.msra.mxu0 0
          %1198 = vmatprep.subr.bf16.mxu0 0
          %1199 = vmatpush1.bf16.msra.mxu0 0
          %1200 = vmatprep.subr.bf16.mxu0 0
          %1201 = vmatpush1.bf16.msra.mxu0 0
          %1202 = vmatprep.mubr.bf16.mxu0 0
          %1203 = vmatmul.mubr.bf16.gmra.mrb[0].mxu0 %v1168
          %v1204 = vpop.f32.mrb[0].mxu0
          %v1205 = vadd.f32 0.0, %v1204
          %v1206 = vpop.f32.mrb[0].mxu0
          %v1207 = vpop.f32.mrb[0].mxu0
          %v1208 = vpop.f32.mrb[0].mxu0
          %1209 = vdwg.mxu0
          %v1210 = vadd.f32 %v1164, %v1205
          %v1211 = vxor.u32 %v1210, 2147483648
          %v1212 = vmul.f32 %v1211, 1.442695
          %v1213 = vpow.pop %v1212
          %v1214 = vadd.f32 %v1213, 1.0
          %v1215 = vrcp.pop %v1214
          %v1216 = vmul.f32 1.0, %v1215
          %v1217 = vtanh.pop %v1210
          %v1218 = vmul.f32 %v1216, %v1133
          %1220 = vrot.lane.b32.xlu0 %v1217, 64
          %v1221 = vpop.permute.xlu0 %1220
          %v1223 = vmul.f32 %v1216, %v1221
          %1225 = vrot.lane.b32.xlu0 %v1223, 32
          %v1226 = vpop.permute.xlu0 %1225
          %v1228 = vadd.f32 %v1218, %v1226
          %v1229 = vtanh.pop %v1228
          %1231 = vrot.lane.b32.xlu0 %v1229, 64
          %v1232 = vpop.permute.xlu0 %1231
          %v1234 = vmul.f32 %v1216, %v1232
          %v1235 = vpack.c.bf16 %v1234, %v1234
          %v1238 = vunpack.c.l.s4 1966171168
          %v1239 = vunpack.c.0.s8 %v1238
          %v1240 = vlaneseq
          %v1241 = vshrl.u32 %v1240, 7
          %v1242 = vsub.s32 %v1239, %v1241
          %v1243 = vrot.slane %v1235, %v1242
          %v1245 = vunpack.c.l.s4 1966171168
          %v1246 = vunpack.c.0.s8 %v1245
          %v1247 = vlaneseq
          %v1248 = vshrl.u32 %v1247, 7
          %v1249 = vsub.s32 %v1246, %v1248
          %v1250 = vrot.slane %v1243, %v1249
          %1251 = vrot.lane.b32.xlu0 %v1250, 32
          %v1252 = vpop.permute.xlu0 %1251
          %s1254 = scalar_lea.vmem %s263, 6
          %1255 = vst.msk [vmem:[%s1254] sm:$0x1] %vm1160, %v1252
          %s1256 = scalar_lea.vmem %s226, 5 [#allocation2]
          %v1257 = vld [vmem:[%s1256] sm:$0x1]
          %v1258 = vunpack.c.l.bf16 %v1257
          %1259 = vrot.lane.b32.xlu0 %v1235, 32
          %v1260 = vpop.permute.xlu0 %1259
          %v1262 = vsel %vm1071, %v1260, 0
          %1264 = vmatprep.subr.bf16.mxu0 0
          %1265 = vmatpush1.bf16.msra.mxu0 %v1067
          %1266 = vmatprep.subr.bf16.mxu0 0
          %1267 = vmatpush1.bf16.msra.mxu0 %v1068
          %1268 = vmatprep.subr.bf16.mxu0 0
          %1269 = vmatpush1.bf16.msra.mxu0 0
          %1270 = vmatprep.subr.bf16.mxu0 0
          %1271 = vmatpush1.bf16.msra.mxu0 0
          %1272 = vmatprep.subr.bf16.mxu0 0
          %1273 = vmatpush1.bf16.msra.mxu0 0
          %1274 = vmatprep.subr.bf16.mxu0 0
          %1275 = vmatpush1.bf16.msra.mxu0 0
          %1276 = vmatprep.subr.bf16.mxu0 0
          %1277 = vmatpush1.bf16.msra.mxu0 0
          %1278 = vmatprep.subr.bf16.mxu0 0
          %1279 = vmatpush1.bf16.msra.mxu0 0
          %1280 = vmatprep.subr.bf16.mxu0 0
          %1281 = vmatpush1.bf16.msra.mxu0 0
          %1282 = vmatprep.subr.bf16.mxu0 0
          %1283 = vmatpush1.bf16.msra.mxu0 0
          %1284 = vmatprep.subr.bf16.mxu0 0
          %1285 = vmatpush1.bf16.msra.mxu0 0
          %1286 = vmatprep.subr.bf16.mxu0 0
          %1287 = vmatpush1.bf16.msra.mxu0 0
          %1288 = vmatprep.subr.bf16.mxu0 0
          %1289 = vmatpush1.bf16.msra.mxu0 0
          %1290 = vmatprep.subr.bf16.mxu0 0
          %1291 = vmatpush1.bf16.msra.mxu0 0
          %1292 = vmatprep.subr.bf16.mxu0 0
          %1293 = vmatpush1.bf16.msra.mxu0 0
          %1294 = vmatprep.subr.bf16.mxu0 0
          %1295 = vmatpush1.bf16.msra.mxu0 0
          %1296 = vmatprep.mubr.bf16.mxu0 0
          %1297 = vmatmul.mubr.bf16.gmra.mrb[0].mxu0 %v1262
          %v1298 = vpop.f32.mrb[0].mxu0
          %v1299 = vadd.f32 0.0, %v1298
          %v1300 = vpop.f32.mrb[0].mxu0
          %v1301 = vpop.f32.mrb[0].mxu0
          %v1302 = vpop.f32.mrb[0].mxu0
          %1303 = vdwg.mxu0
          %v1304 = vadd.f32 %v1258, %v1299
          %v1305 = vxor.u32 %v1304, 2147483648
          %v1306 = vmul.f32 %v1305, 1.442695
          %v1307 = vpow.pop %v1306
          %v1308 = vadd.f32 %v1307, 1.0
          %v1309 = vrcp.pop %v1308
          %v1310 = vmul.f32 1.0, %v1309
          %v1311 = vtanh.pop %v1304
          %v1312 = vmul.f32 %v1310, %v1228
          %1314 = vrot.lane.b32.xlu0 %v1311, 64
          %v1315 = vpop.permute.xlu0 %1314
          %v1317 = vmul.f32 %v1310, %v1315
          %1319 = vrot.lane.b32.xlu0 %v1317, 32
          %v1320 = vpop.permute.xlu0 %1319
          %v1322 = vadd.f32 %v1312, %v1320
          %v1323 = vtanh.pop %v1322
          %1325 = vrot.lane.b32.xlu0 %v1323, 64
          %v1326 = vpop.permute.xlu0 %1325
          %v1328 = vmul.f32 %v1310, %v1326
          %v1329 = vpack.c.bf16 %v1328, %v1328
          %v1332 = vunpack.c.l.s4 1966171168
          %v1333 = vunpack.c.0.s8 %v1332
          %v1334 = vlaneseq
          %v1335 = vshrl.u32 %v1334, 7
          %v1336 = vsub.s32 %v1333, %v1335
          %v1337 = vrot.slane %v1329, %v1336
          %v1339 = vunpack.c.l.s4 1966171168
          %v1340 = vunpack.c.0.s8 %v1339
          %v1341 = vlaneseq
          %v1342 = vshrl.u32 %v1341, 7
          %v1343 = vsub.s32 %v1340, %v1342
          %v1344 = vrot.slane %v1337, %v1343
          %1345 = vrot.lane.b32.xlu0 %v1344, 32
          %v1346 = vpop.permute.xlu0 %1345
          %s1348 = scalar_lea.vmem %s263, 5
          %1349 = vst.msk [vmem:[%s1348] sm:$0x1] %vm1160, %v1346
          %s1350 = scalar_lea.vmem %s226, 4 [#allocation2]
          %v1351 = vld [vmem:[%s1350] sm:$0x1]
          %v1352 = vunpack.c.l.bf16 %v1351
          %1353 = vrot.lane.b32.xlu0 %v1329, 32
          %v1354 = vpop.permute.xlu0 %1353
          %v1356 = vsel %vm1071, %v1354, 0
          %1358 = vmatprep.subr.bf16.mxu0 0
          %1359 = vmatpush1.bf16.msra.mxu0 %v1067
          %1360 = vmatprep.subr.bf16.mxu0 0
          %1361 = vmatpush1.bf16.msra.mxu0 %v1068
          %1362 = vmatprep.subr.bf16.mxu0 0
          %1363 = vmatpush1.bf16.msra.mxu0 0
          %1364 = vmatprep.subr.bf16.mxu0 0
          %1365 = vmatpush1.bf16.msra.mxu0 0
          %1366 = vmatprep.subr.bf16.mxu0 0
          %1367 = vmatpush1.bf16.msra.mxu0 0
          %1368 = vmatprep.subr.bf16.mxu0 0
          %1369 = vmatpush1.bf16.msra.mxu0 0
          %1370 = vmatprep.subr.bf16.mxu0 0
          %1371 = vmatpush1.bf16.msra.mxu0 0
          %1372 = vmatprep.subr.bf16.mxu0 0
          %1373 = vmatpush1.bf16.msra.mxu0 0
          %1374 = vmatprep.subr.bf16.mxu0 0
          %1375 = vmatpush1.bf16.msra.mxu0 0
          %1376 = vmatprep.subr.bf16.mxu0 0
          %1377 = vmatpush1.bf16.msra.mxu0 0
          %1378 = vmatprep.subr.bf16.mxu0 0
          %1379 = vmatpush1.bf16.msra.mxu0 0
          %1380 = vmatprep.subr.bf16.mxu0 0
          %1381 = vmatpush1.bf16.msra.mxu0 0
          %1382 = vmatprep.subr.bf16.mxu0 0
          %1383 = vmatpush1.bf16.msra.mxu0 0
          %1384 = vmatprep.subr.bf16.mxu0 0
          %1385 = vmatpush1.bf16.msra.mxu0 0
          %1386 = vmatprep.subr.bf16.mxu0 0
          %1387 = vmatpush1.bf16.msra.mxu0 0
          %1388 = vmatprep.subr.bf16.mxu0 0
          %1389 = vmatpush1.bf16.msra.mxu0 0
          %1390 = vmatprep.mubr.bf16.mxu0 0
          %1391 = vmatmul.mubr.bf16.gmra.mrb[0].mxu0 %v1356
          %v1392 = vpop.f32.mrb[0].mxu0
          %v1393 = vadd.f32 0.0, %v1392
          %v1394 = vpop.f32.mrb[0].mxu0
          %v1395 = vpop.f32.mrb[0].mxu0
          %v1396 = vpop.f32.mrb[0].mxu0
          %1397 = vdwg.mxu0
          %v1398 = vadd.f32 %v1352, %v1393
          %v1399 = vxor.u32 %v1398, 2147483648
          %v1400 = vmul.f32 %v1399, 1.442695
          %v1401 = vpow.pop %v1400
          %v1402 = vadd.f32 %v1401, 1.0
          %v1403 = vrcp.pop %v1402
          %v1404 = vmul.f32 1.0, %v1403
          %v1405 = vtanh.pop %v1398
          %v1406 = vmul.f32 %v1404, %v1322
          %1408 = vrot.lane.b32.xlu0 %v1405, 64
          %v1409 = vpop.permute.xlu0 %1408
          %v1411 = vmul.f32 %v1404, %v1409
          %1413 = vrot.lane.b32.xlu0 %v1411, 32
          %v1414 = vpop.permute.xlu0 %1413
          %v1416 = vadd.f32 %v1406, %v1414
          %v1417 = vtanh.pop %v1416
          %1419 = vrot.lane.b32.xlu0 %v1417, 64
          %v1420 = vpop.permute.xlu0 %1419
          %v1422 = vmul.f32 %v1404, %v1420
          %v1423 = vpack.c.bf16 %v1422, %v1422
          %v1426 = vunpack.c.l.s4 1966171168
          %v1427 = vunpack.c.0.s8 %v1426
          %v1428 = vlaneseq
          %v1429 = vshrl.u32 %v1428, 7
          %v1430 = vsub.s32 %v1427, %v1429
          %v1431 = vrot.slane %v1423, %v1430
          %v1433 = vunpack.c.l.s4 1966171168
          %v1434 = vunpack.c.0.s8 %v1433
          %v1435 = vlaneseq
          %v1436 = vshrl.u32 %v1435, 7
          %v1437 = vsub.s32 %v1434, %v1436
          %v1438 = vrot.slane %v1431, %v1437
          %1439 = vrot.lane.b32.xlu0 %v1438, 32
          %v1440 = vpop.permute.xlu0 %1439
          %s1442 = scalar_lea.vmem %s263, 4
          %1443 = vst.msk [vmem:[%s1442] sm:$0x1] %vm1160, %v1440
          %s1444 = scalar_lea.vmem %s226, 3 [#allocation2]
          %v1445 = vld [vmem:[%s1444] sm:$0x1]
          %v1446 = vunpack.c.l.bf16 %v1445
          %1447 = vrot.lane.b32.xlu0 %v1423, 32
          %v1448 = vpop.permute.xlu0 %1447
          %v1450 = vsel %vm1071, %v1448, 0
          %1452 = vmatprep.subr.bf16.mxu0 0
          %1453 = vmatpush1.bf16.msra.mxu0 %v1067
          %1454 = vmatprep.subr.bf16.mxu0 0
          %1455 = vmatpush1.bf16.msra.mxu0 %v1068
          %1456 = vmatprep.subr.bf16.mxu0 0
          %1457 = vmatpush1.bf16.msra.mxu0 0
          %1458 = vmatprep.subr.bf16.mxu0 0
          %1459 = vmatpush1.bf16.msra.mxu0 0
          %1460 = vmatprep.subr.bf16.mxu0 0
          %1461 = vmatpush1.bf16.msra.mxu0 0
          %1462 = vmatprep.subr.bf16.mxu0 0
          %1463 = vmatpush1.bf16.msra.mxu0 0
          %1464 = vmatprep.subr.bf16.mxu0 0
          %1465 = vmatpush1.bf16.msra.mxu0 0
          %1466 = vmatprep.subr.bf16.mxu0 0
          %1467 = vmatpush1.bf16.msra.mxu0 0
          %1468 = vmatprep.subr.bf16.mxu0 0
          %1469 = vmatpush1.bf16.msra.mxu0 0
          %1470 = vmatprep.subr.bf16.mxu0 0
          %1471 = vmatpush1.bf16.msra.mxu0 0
          %1472 = vmatprep.subr.bf16.mxu0 0
          %1473 = vmatpush1.bf16.msra.mxu0 0
          %1474 = vmatprep.subr.bf16.mxu0 0
          %1475 = vmatpush1.bf16.msra.mxu0 0
          %1476 = vmatprep.subr.bf16.mxu0 0
          %1477 = vmatpush1.bf16.msra.mxu0 0
          %1478 = vmatprep.subr.bf16.mxu0 0
          %1479 = vmatpush1.bf16.msra.mxu0 0
          %1480 = vmatprep.subr.bf16.mxu0 0
          %1481 = vmatpush1.bf16.msra.mxu0 0
          %1482 = vmatprep.subr.bf16.mxu0 0
          %1483 = vmatpush1.bf16.msra.mxu0 0
          %1484 = vmatprep.mubr.bf16.mxu0 0
          %1485 = vmatmul.mubr.bf16.gmra.mrb[0].mxu0 %v1450
          %v1486 = vpop.f32.mrb[0].mxu0
          %v1487 = vadd.f32 0.0, %v1486
          %v1488 = vpop.f32.mrb[0].mxu0
          %v1489 = vpop.f32.mrb[0].mxu0
          %v1490 = vpop.f32.mrb[0].mxu0
          %1491 = vdwg.mxu0
          %v1492 = vadd.f32 %v1446, %v1487
          %v1493 = vxor.u32 %v1492, 2147483648
          %v1494 = vmul.f32 %v1493, 1.442695
          %v1495 = vpow.pop %v1494
          %v1496 = vadd.f32 %v1495, 1.0
          %v1497 = vrcp.pop %v1496
          %v1498 = vmul.f32 1.0, %v1497
          %v1499 = vtanh.pop %v1492
          %v1500 = vmul.f32 %v1498, %v1416
          %1502 = vrot.lane.b32.xlu0 %v1499, 64
          %v1503 = vpop.permute.xlu0 %1502
          %v1505 = vmul.f32 %v1498, %v1503
          %1507 = vrot.lane.b32.xlu0 %v1505, 32
          %v1508 = vpop.permute.xlu0 %1507
          %v1510 = vadd.f32 %v1500, %v1508
          %v1511 = vtanh.pop %v1510
          %1513 = vrot.lane.b32.xlu0 %v1511, 64
          %v1514 = vpop.permute.xlu0 %1513
          %v1516 = vmul.f32 %v1498, %v1514
          %v1517 = vpack.c.bf16 %v1516, %v1516
          %v1520 = vunpack.c.l.s4 1966171168
          %v1521 = vunpack.c.0.s8 %v1520
          %v1522 = vlaneseq
          %v1523 = vshrl.u32 %v1522, 7
          %v1524 = vsub.s32 %v1521, %v1523
          %v1525 = vrot.slane %v1517, %v1524
          %v1527 = vunpack.c.l.s4 1966171168
          %v1528 = vunpack.c.0.s8 %v1527
          %v1529 = vlaneseq
          %v1530 = vshrl.u32 %v1529, 7
          %v1531 = vsub.s32 %v1528, %v1530
          %v1532 = vrot.slane %v1525, %v1531
          %1533 = vrot.lane.b32.xlu0 %v1532, 32
          %v1534 = vpop.permute.xlu0 %1533
          %s1536 = scalar_lea.vmem %s263, 3
          %1537 = vst.msk [vmem:[%s1536] sm:$0x1] %vm1160, %v1534
          %s1538 = scalar_lea.vmem %s226, 2 [#allocation2]
          %v1539 = vld [vmem:[%s1538] sm:$0x1]
          %v1540 = vunpack.c.l.bf16 %v1539
          %1541 = vrot.lane.b32.xlu0 %v1517, 32
          %v1542 = vpop.permute.xlu0 %1541
          %v1544 = vsel %vm1071, %v1542, 0
          %1546 = vmatprep.subr.bf16.mxu0 0
          %1547 = vmatpush1.bf16.msra.mxu0 %v1067
          %1548 = vmatprep.subr.bf16.mxu0 0
          %1549 = vmatpush1.bf16.msra.mxu0 %v1068
          %1550 = vmatprep.subr.bf16.mxu0 0
          %1551 = vmatpush1.bf16.msra.mxu0 0
          %1552 = vmatprep.subr.bf16.mxu0 0
          %1553 = vmatpush1.bf16.msra.mxu0 0
          %1554 = vmatprep.subr.bf16.mxu0 0
          %1555 = vmatpush1.bf16.msra.mxu0 0
          %1556 = vmatprep.subr.bf16.mxu0 0
          %1557 = vmatpush1.bf16.msra.mxu0 0
          %1558 = vmatprep.subr.bf16.mxu0 0
          %1559 = vmatpush1.bf16.msra.mxu0 0
          %1560 = vmatprep.subr.bf16.mxu0 0
          %1561 = vmatpush1.bf16.msra.mxu0 0
          %1562 = vmatprep.subr.bf16.mxu0 0
          %1563 = vmatpush1.bf16.msra.mxu0 0
          %1564 = vmatprep.subr.bf16.mxu0 0
          %1565 = vmatpush1.bf16.msra.mxu0 0
          %1566 = vmatprep.subr.bf16.mxu0 0
          %1567 = vmatpush1.bf16.msra.mxu0 0
          %1568 = vmatprep.subr.bf16.mxu0 0
          %1569 = vmatpush1.bf16.msra.mxu0 0
          %1570 = vmatprep.subr.bf16.mxu0 0
          %1571 = vmatpush1.bf16.msra.mxu0 0
          %1572 = vmatprep.subr.bf16.mxu0 0
          %1573 = vmatpush1.bf16.msra.mxu0 0
          %1574 = vmatprep.subr.bf16.mxu0 0
          %1575 = vmatpush1.bf16.msra.mxu0 0
          %1576 = vmatprep.subr.bf16.mxu0 0
          %1577 = vmatpush1.bf16.msra.mxu0 0
          %1578 = vmatprep.mubr.bf16.mxu0 0
          %1579 = vmatmul.mubr.bf16.gmra.mrb[0].mxu0 %v1544
          %v1580 = vpop.f32.mrb[0].mxu0
          %v1581 = vadd.f32 0.0, %v1580
          %v1582 = vpop.f32.mrb[0].mxu0
          %v1583 = vpop.f32.mrb[0].mxu0
          %v1584 = vpop.f32.mrb[0].mxu0
          %1585 = vdwg.mxu0
          %v1586 = vadd.f32 %v1540, %v1581
          %v1587 = vxor.u32 %v1586, 2147483648
          %v1588 = vmul.f32 %v1587, 1.442695
          %v1589 = vpow.pop %v1588
          %v1590 = vadd.f32 %v1589, 1.0
          %v1591 = vrcp.pop %v1590
          %v1592 = vmul.f32 1.0, %v1591
          %v1593 = vtanh.pop %v1586
          %v1594 = vmul.f32 %v1592, %v1510
          %1596 = vrot.lane.b32.xlu0 %v1593, 64
          %v1597 = vpop.permute.xlu0 %1596
          %v1599 = vmul.f32 %v1592, %v1597
          %1601 = vrot.lane.b32.xlu0 %v1599, 32
          %v1602 = vpop.permute.xlu0 %1601
          %v1604 = vadd.f32 %v1594, %v1602
          %v1605 = vtanh.pop %v1604
          %1607 = vrot.lane.b32.xlu0 %v1605, 64
          %v1608 = vpop.permute.xlu0 %1607
          %v1610 = vmul.f32 %v1592, %v1608
          %v1611 = vpack.c.bf16 %v1610, %v1610
          %v1614 = vunpack.c.l.s4 1966171168
          %v1615 = vunpack.c.0.s8 %v1614
          %v1616 = vlaneseq
          %v1617 = vshrl.u32 %v1616, 7
          %v1618 = vsub.s32 %v1615, %v1617
          %v1619 = vrot.slane %v1611, %v1618
          %v1621 = vunpack.c.l.s4 1966171168
          %v1622 = vunpack.c.0.s8 %v1621
          %v1623 = vlaneseq
          %v1624 = vshrl.u32 %v1623, 7
          %v1625 = vsub.s32 %v1622, %v1624
          %v1626 = vrot.slane %v1619, %v1625
          %1627 = vrot.lane.b32.xlu0 %v1626, 32
          %v1628 = vpop.permute.xlu0 %1627
          %s1630 = scalar_lea.vmem %s263, 2
          %1631 = vst.msk [vmem:[%s1630] sm:$0x1] %vm1160, %v1628
          %s1632 = scalar_lea.vmem %s226, 1 [#allocation2]
          %v1633 = vld [vmem:[%s1632] sm:$0x1]
          %v1634 = vunpack.c.l.bf16 %v1633
          %1635 = vrot.lane.b32.xlu0 %v1611, 32
          %v1636 = vpop.permute.xlu0 %1635
          %v1638 = vsel %vm1071, %v1636, 0
          %1640 = vmatprep.subr.bf16.mxu0 0
          %1641 = vmatpush1.bf16.msra.mxu0 %v1067
          %1642 = vmatprep.subr.bf16.mxu0 0
          %1643 = vmatpush1.bf16.msra.mxu0 %v1068
          %1644 = vmatprep.subr.bf16.mxu0 0
          %1645 = vmatpush1.bf16.msra.mxu0 0
          %1646 = vmatprep.subr.bf16.mxu0 0
          %1647 = vmatpush1.bf16.msra.mxu0 0
          %1648 = vmatprep.subr.bf16.mxu0 0
          %1649 = vmatpush1.bf16.msra.mxu0 0
          %1650 = vmatprep.subr.bf16.mxu0 0
          %1651 = vmatpush1.bf16.msra.mxu0 0
          %1652 = vmatprep.subr.bf16.mxu0 0
          %1653 = vmatpush1.bf16.msra.mxu0 0
          %1654 = vmatprep.subr.bf16.mxu0 0
          %1655 = vmatpush1.bf16.msra.mxu0 0
          %1656 = vmatprep.subr.bf16.mxu0 0
          %1657 = vmatpush1.bf16.msra.mxu0 0
          %1658 = vmatprep.subr.bf16.mxu0 0
          %1659 = vmatpush1.bf16.msra.mxu0 0
          %1660 = vmatprep.subr.bf16.mxu0 0
          %1661 = vmatpush1.bf16.msra.mxu0 0
          %1662 = vmatprep.subr.bf16.mxu0 0
          %1663 = vmatpush1.bf16.msra.mxu0 0
          %1664 = vmatprep.subr.bf16.mxu0 0
          %1665 = vmatpush1.bf16.msra.mxu0 0
          %1666 = vmatprep.subr.bf16.mxu0 0
          %1667 = vmatpush1.bf16.msra.mxu0 0
          %1668 = vmatprep.subr.bf16.mxu0 0
          %1669 = vmatpush1.bf16.msra.mxu0 0
          %1670 = vmatprep.subr.bf16.mxu0 0
          %1671 = vmatpush1.bf16.msra.mxu0 0
          %1672 = vmatprep.mubr.bf16.mxu0 0
          %1673 = vmatmul.mubr.bf16.gmra.mrb[0].mxu0 %v1638
          %v1674 = vpop.f32.mrb[0].mxu0
          %v1675 = vadd.f32 0.0, %v1674
          %v1676 = vpop.f32.mrb[0].mxu0
          %v1677 = vpop.f32.mrb[0].mxu0
          %v1678 = vpop.f32.mrb[0].mxu0
          %1679 = vdwg.mxu0
          %v1680 = vadd.f32 %v1634, %v1675
          %v1681 = vxor.u32 %v1680, 2147483648
          %v1682 = vmul.f32 %v1681, 1.442695
          %v1683 = vpow.pop %v1682
          %v1684 = vadd.f32 %v1683, 1.0
          %v1685 = vrcp.pop %v1684
          %v1686 = vmul.f32 1.0, %v1685
          %v1687 = vtanh.pop %v1680
          %v1688 = vmul.f32 %v1686, %v1604
          %1690 = vrot.lane.b32.xlu0 %v1687, 64
          %v1691 = vpop.permute.xlu0 %1690
          %v1693 = vmul.f32 %v1686, %v1691
          %1695 = vrot.lane.b32.xlu0 %v1693, 32
          %v1696 = vpop.permute.xlu0 %1695
          %v1698 = vadd.f32 %v1688, %v1696
          %v1699 = vtanh.pop %v1698
          %1701 = vrot.lane.b32.xlu0 %v1699, 64
          %v1702 = vpop.permute.xlu0 %1701
          %v1704 = vmul.f32 %v1686, %v1702
          %v1705 = vpack.c.bf16 %v1704, %v1704
          %v1708 = vunpack.c.l.s4 1966171168
          %v1709 = vunpack.c.0.s8 %v1708
          %v1710 = vlaneseq
          %v1711 = vshrl.u32 %v1710, 7
          %v1712 = vsub.s32 %v1709, %v1711
          %v1713 = vrot.slane %v1705, %v1712
          %v1715 = vunpack.c.l.s4 1966171168
          %v1716 = vunpack.c.0.s8 %v1715
          %v1717 = vlaneseq
          %v1718 = vshrl.u32 %v1717, 7
          %v1719 = vsub.s32 %v1716, %v1718
          %v1720 = vrot.slane %v1713, %v1719
          %1721 = vrot.lane.b32.xlu0 %v1720, 32
          %v1722 = vpop.permute.xlu0 %1721
          %s1724 = scalar_lea.vmem %s263, 1
          %1725 = vst.msk [vmem:[%s1724] sm:$0x1] %vm1160, %v1722
          %v1726 = vld [vmem:[%s226] sm:$0x1]
          %v1727 = vunpack.c.l.bf16 %v1726
          %1728 = vrot.lane.b32.xlu0 %v1705, 32
          %v1729 = vpop.permute.xlu0 %1728
          %v1731 = vsel %vm1071, %v1729, 0
          %1733 = vmatprep.subr.bf16.mxu0 0
          %1734 = vmatpush1.bf16.msra.mxu0 %v1067
          %1735 = vmatprep.subr.bf16.mxu0 0
          %1736 = vmatpush1.bf16.msra.mxu0 %v1068
          %1737 = vmatprep.subr.bf16.mxu0 0
          %1738 = vmatpush1.bf16.msra.mxu0 0
          %1739 = vmatprep.subr.bf16.mxu0 0
          %1740 = vmatpush1.bf16.msra.mxu0 0
          %1741 = vmatprep.subr.bf16.mxu0 0
          %1742 = vmatpush1.bf16.msra.mxu0 0
          %1743 = vmatprep.subr.bf16.mxu0 0
          %1744 = vmatpush1.bf16.msra.mxu0 0
          %1745 = vmatprep.subr.bf16.mxu0 0
          %1746 = vmatpush1.bf16.msra.mxu0 0
          %1747 = vmatprep.subr.bf16.mxu0 0
          %1748 = vmatpush1.bf16.msra.mxu0 0
          %1749 = vmatprep.subr.bf16.mxu0 0
          %1750 = vmatpush1.bf16.msra.mxu0 0
          %1751 = vmatprep.subr.bf16.mxu0 0
          %1752 = vmatpush1.bf16.msra.mxu0 0
          %1753 = vmatprep.subr.bf16.mxu0 0
          %1754 = vmatpush1.bf16.msra.mxu0 0
          %1755 = vmatprep.subr.bf16.mxu0 0
          %1756 = vmatpush1.bf16.msra.mxu0 0
          %1757 = vmatprep.subr.bf16.mxu0 0
          %1758 = vmatpush1.bf16.msra.mxu0 0
          %1759 = vmatprep.subr.bf16.mxu0 0
          %1760 = vmatpush1.bf16.msra.mxu0 0
          %1761 = vmatprep.subr.bf16.mxu0 0
          %1762 = vmatpush1.bf16.msra.mxu0 0
          %1763 = vmatprep.subr.bf16.mxu0 0
          %1764 = vmatpush1.bf16.msra.mxu0 0
          %1765 = vmatprep.mubr.bf16.mxu0 0
          %1766 = vmatmul.mubr.bf16.gmra.mrb[0].mxu0 %v1731
          %v1767 = vpop.f32.mrb[0].mxu0
          %v1768 = vadd.f32 0.0, %v1767
          %v1769 = vpop.f32.mrb[0].mxu0
          %v1770 = vpop.f32.mrb[0].mxu0
          %v1771 = vpop.f32.mrb[0].mxu0
          %1772 = vdwg.mxu0
          %v1773 = vadd.f32 %v1727, %v1768
          %v1774 = vxor.u32 %v1773, 2147483648
          %v1775 = vmul.f32 %v1774, 1.442695
          %v1776 = vpow.pop %v1775
          %v1777 = vadd.f32 %v1776, 1.0
          %v1778 = vrcp.pop %v1777
          %v1779 = vmul.f32 1.0, %v1778
          %v1780 = vtanh.pop %v1773
          %v1781 = vmul.f32 %v1779, %v1698
          %1783 = vrot.lane.b32.xlu0 %v1780, 64
          %v1784 = vpop.permute.xlu0 %1783
          %v1786 = vmul.f32 %v1779, %v1784
          %1788 = vrot.lane.b32.xlu0 %v1786, 32
          %v1789 = vpop.permute.xlu0 %1788
          %v1791 = vadd.f32 %v1781, %v1789
          %v1792 = vtanh.pop %v1791
          %1794 = vrot.lane.b32.xlu0 %v1792, 64
          %v1795 = vpop.permute.xlu0 %1794
          %v1797 = vmul.f32 %v1779, %v1795
          %v1798 = vpack.c.bf16 %v1797, %v1797
          %v1801 = vunpack.c.l.s4 1966171168
          %v1802 = vunpack.c.0.s8 %v1801
          %v1803 = vlaneseq
          %v1804 = vshrl.u32 %v1803, 7
          %v1805 = vsub.s32 %v1802, %v1804
          %v1806 = vrot.slane %v1798, %v1805
          %v1808 = vunpack.c.l.s4 1966171168
          %v1809 = vunpack.c.0.s8 %v1808
          %v1810 = vlaneseq
          %v1811 = vshrl.u32 %v1810, 7
          %v1812 = vsub.s32 %v1809, %v1811
          %v1813 = vrot.slane %v1806, %v1812
          %1814 = vrot.lane.b32.xlu0 %v1813, 32
          %v1815 = vpop.permute.xlu0 %1814
          %1817 = vst.msk [vmem:[%s263] sm:$0x1] %vm1160, %v1815
          %v1820 = vunpack.c.l.s4 1983009808
          %v1821 = vunpack.c.0.s8 %v1820
          %v1822 = vlaneseq
          %v1823 = vshrl.u32 %v1822, 7
          %v1824 = vsub.s32 %v1821, %v1823
          %v1825 = vrot.slane %v1797, %v1824
          %1826 = vrot.lane.b32.xlu0 %v1825, 32
          %v1827 = vpop.permute.xlu0 %1826
          %vm1829 = vcmask 254976
          %1830 = vst.msk [vmem:[%s267] sm:$0x3] %vm1829, %v1827
        $region77: #{encoder_forward.5} parent=64 // pred_fallthru
          _
        %p1831 = scmp.lt.s32.totalorder %s15, 1
        %s1832 = scalar_select %p1831, %s15, 1
        %s1833 = smul.addr %s1832, 8
        %s1834 = scalar_lea.vmem %s2, %s1833
        %p1835 = scmp.lt.s32.totalorder %s15, 1
        %s1836 = scalar_select %p1835, %s15, 1
        %s1837 = smul.addr %s1836, 2
        %s1838 = scalar_lea.vmem %s3, %s1837
        // Predicated region
        $region78: #{encoder_forward.5} parent=64 // pred_check
          %p1839 = pneg %p85
        $region79: #{encoder_forward.5} parent=64 // pred_check_branch
          %1841 = sbr.rel (%p1839) target = $region81
        $region80: #{encoder_forward.5} parent=64 // pred_region
          _
        $region81: #{encoder_forward.5} parent=64 // pred_fallthru
          _
        // Predicated region
        $region82: #{encoder_forward.5} parent=64 // pred_check
          %p1842 = pneg %p111
        $region83: #{encoder_forward.5} parent=64 // pred_check_branch
          %1844 = sbr.rel (%p1842) target = $region85
        $region84: #{encoder_forward.5} parent=64 // pred_region
          _
        $region85: #{encoder_forward.5} parent=64 // pred_fallthru
          _
      $region65: #{encoder_forward.5} parent=5 // pred_fallthru
        _
      %p1845 = scmp.le.s32.totalorder 2, %s10
      // Predicated region
      $region86: #{encoder_forward.5} parent=5 // pred_check
        %p1846 = pneg %p1845
      $region87: #{encoder_forward.5} parent=5 // pred_check_branch
        %1848 = sbr.rel (%p1846) target = $region89
      $region88: #{encoder_forward.5} parent=5 // pred_region
        %s1849 = ssub.s32 %s10, 2
        // Predicated region
        $region90: #{encoder_forward.5} parent=88 // pred_check
          %p1850 = pneg %p91
        $region91: #{encoder_forward.5} parent=88 // pred_check_branch
          %1852 = sbr.rel (%p1850) target = $region93
        $region92: #{encoder_forward.5} parent=88 // pred_region
          %p1853 = scmp.lt.s32.totalorder %s16, 1
          %s1854 = scalar_select %p1853, %s16, 1
          %s1855 = smul.addr %s1854, 8
          %s1856 = scalar_lea.vmem %s2, %s1855
        $region93: #{encoder_forward.5} parent=88 // pred_fallthru
          _
        // Predicated region
        $region94: #{encoder_forward.5} parent=88 // pred_check
          %p1857 = pneg %p117
        $region95: #{encoder_forward.5} parent=88 // pred_check_branch
          %1859 = sbr.rel (%p1857) target = $region97
        $region96: #{encoder_forward.5} parent=88 // pred_region
          %p1860 = scmp.lt.s32.totalorder %s16, 1
          %s1861 = scalar_select %p1860, %s16, 1
          %s1862 = smul.addr %s1861, 2
          %s1863 = scalar_lea.vmem %s3, %s1862
        $region97: #{encoder_forward.5} parent=88 // pred_fallthru
          _
      $region89: #{encoder_forward.5} parent=5 // pred_fallthru
        _
    $region6: #{encoder_forward.5} parent=1 // loop_footer
      %s14 = sadd.s32 1, %s10
    $region7: #{encoder_forward.5} parent=1 // loop_footer_branch
      %9 = sbr.rel target = $region3
    $region8: #{encoder_forward.5} parent=1 // loop_exit
      _

</llo_original>
